<compile_context>
chip_gen: v6e
topology: v6e:2x2x1
jax: 0.10.0
libtpu: 0.0.40
codegen_flags: <defaults>
</compile_context>

<pallas_src>
import jax
import jax.numpy as jnp
from jax import lax
from jax.experimental import pallas as pl
from jax.experimental.pallas import tpu as pltpu

PAD = 5                     # max dilation of the three 3x3 branches
DILATIONS = (1, 3, 5)


# ----------------------------------------------------------------------------
# Pallas kernel: full MSLayer forward for one batch image.
# ----------------------------------------------------------------------------
def ms_layer_kernel(xp_ref, wconv_ref, bcat_ref, mcat_ref, bout_ref, o_ref):
    """MSLayer forward for one image.

    xp_ref   : (1, H+2*PAD, W+2*PAD, C)  zero-padded NHWC input
    wconv_ref: (3, 9*C, Cr)   im2col-flattened weight-normed 3x3 weights
                              (one per dilation 1 / 3 / 5)
    bcat_ref : (1, 3*Cr)      concatenated 3x3 conv biases (inside the ReLU)
    mcat_ref : (3*Cr, C)      folded 1x1 chain, branch matrices stacked on K
    bout_ref : (1, C)         folded output bias
    o_ref    : (1, H*W, C)    output (residual already added)
    """
    _, Hp, Wp, C = xp_ref.shape
    H, W = Hp - 2 * PAD, Wp - 2 * PAD

    xp = xp_ref[0]                                           # (Hp, Wp, C)

    def window(oy, ox):
        # W is a multiple of 8 here, so this reshape keeps the lane dim and
        # only restacks sublane tiles (cheap).
        return xp[oy:oy + H, ox:ox + W, :].reshape(H * W, C)

    # Center window: residual AND the (ki=1, kj=1) tap of every dilation.
    center = window(PAD, PAD)                                # (H*W, C)

    # Residual recovered from the padded block (no second HBM read of x),
    # with the folded output bias added once.
    acc = center + bout_ref[...]                             # (H*W, C) f32

    # First stage: one im2col matmul per dilation -> (H*W, Cr) each.
    zs = []
    for idx, d in enumerate(DILATIONS):
        taps = [center if (ki == 1 and kj == 1)
                else window(PAD + d * (ki - 1), PAD + d * (kj - 1))
                for ki in range(3) for kj in range(3)]
        patch = jnp.concatenate(taps, axis=1)                # (H*W, 9*C)
        zs.append(jnp.dot(patch, wconv_ref[idx],
                          preferred_element_type=jnp.float32))

    # Second stage fused across branches: single bias-add + ReLU + matmul.
    zcat = jnp.concatenate(zs, axis=1)                       # (H*W, 3*Cr)
    branch = jnp.maximum(zcat + bcat_ref[...], 0.0)          # fused ReLU
    out = acc + jnp.dot(branch, mcat_ref[...],
                        preferred_element_type=jnp.float32)  # (H*W, C)

    o_ref[...] = out.reshape(1, H * W, C).astype(o_ref.dtype)


# ----------------------------------------------------------------------------
# Wrapper
# ----------------------------------------------------------------------------
def ms_layer_pallas(x_nhwc, packed):
    N, H, W, C = x_nhwc.shape
    Hp, Wp = H + 2 * PAD, W + 2 * PAD

    xp = jnp.pad(x_nhwc, ((0, 0), (PAD, PAD), (PAD, PAD), (0, 0)))

    wconv = packed["wconv"]
    bcat = packed["bcat"]
    mcat = packed["mcat"]
    bout = packed["bout"]

    def full_spec(arr):
        nd = arr.ndim
        return pl.BlockSpec(arr.shape, lambda n, _nd=nd: (0,) * _nd)

    out_flat = pl.pallas_call(
        ms_layer_kernel,
        out_shape=jax.ShapeDtypeStruct((N, H * W, C), x_nhwc.dtype),
        grid=(N,),
        in_specs=[
            pl.BlockSpec((1, Hp, Wp, C), lambda n: (n, 0, 0, 0)),  # padded x
            full_spec(wconv), full_spec(bcat),
            full_spec(mcat), full_spec(bout),
        ],
        out_specs=pl.BlockSpec((1, H * W, C), lambda n: (n, 0, 0)),
        compiler_params=pltpu.CompilerParams(
            dimension_semantics=("parallel",)),
    )(xp, wconv, bcat, mcat, bout)

    # (N, H*W, C) and (N, H, W, C) are the same row-major bytes: free reshape.
    return out_flat.reshape(N, H, W, C)


# ----------------------------------------------------------------------------
# Parameter construction (deterministic, synthetic; includes weight norm)
# ----------------------------------------------------------------------------
def _weight_norm(v, g):
    # PyTorch nn.utils.weight_norm with dim=0: per-output-channel normalization.
    norm = jnp.sqrt(jnp.sum(v * v, axis=(1, 2, 3), keepdims=True))
    return g.reshape(-1, 1, 1, 1) * v / norm


def make_params(key, channel, reduction=8):
    Cr = channel // reduction
    keys = jax.random.split(key, 12)

    def conv_params(kv, kg, kb, cout, cin, k):
        v = jax.random.normal(kv, (cout, cin, k, k), jnp.float32) * 0.1
        g = 1.0 + 0.1 * jax.random.normal(kg, (cout,), jnp.float32)
        w = _weight_norm(v, g)                    # (cout, cin, kh, kw)
        b = jax.random.normal(kb, (cout,), jnp.float32) * 0.1
        return w, b

    w1, b1 = conv_params(keys[0], keys[1], keys[2], Cr, channel, 3)
    w2, b2 = conv_params(keys[3], keys[4], keys[5], Cr, channel, 3)
    w3, b3 = conv_params(keys[6], keys[7], keys[8], Cr, channel, 3)
    w0, b0 = conv_params(keys[9], keys[10], keys[11], Cr, 2 * Cr, 1)
    kA = jax.random.split(keys[0], 3)
    wA, bA = conv_params(kA[0], kA[1], kA[2], Cr, 2 * Cr, 1)
    kB = jax.random.split(keys[3], 3)
    wB, bB = conv_params(kB[0], kB[1], kB[2], channel, 3 * Cr, 1)

    def to_hwio(w):   # (Cout, Cin, kh, kw) -> (kh, kw, Cin, Cout)
        return jnp.transpose(w, (2, 3, 1, 0))

    def to_io(w):     # (Cout, Cin, 1, 1) -> (Cin, Cout)
        return jnp.transpose(w[:, :, 0, 0], (1, 0))

    w0_io = to_io(w0)
    wA_io = to_io(wA)
    wB_io = to_io(wB)

    return {
        "w1": to_hwio(w1), "b1": b1.reshape(1, -1),
        "w2": to_hwio(w2), "b2": b2.reshape(1, -1),
        "w3": to_hwio(w3), "b3": b3.reshape(1, -1),
        # split 1x1 weights along the (concatenated) input-channel axis
        "w0a": w0_io[:Cr], "w0b": w0_io[Cr:], "b0": b0.reshape(1, -1),
        "wAa": wA_io[:Cr], "wAb": wA_io[Cr:], "bA": bA.reshape(1, -1),
        "wB1": wB_io[:Cr], "wB2": wB_io[Cr:2 * Cr], "wB3": wB_io[2 * Cr:],
        "bB": bB.reshape(1, -1),
    }


def fold_and_pack(p):
    """Fold the ReLU-free 1x1 chain and pack all weights into 4 dense refs.

    out22 = out1 @ w0a + out2 @ w0b + b0
    out33 = out22 @ wAa + out3 @ wAb + bA
    out   = out1 @ wB1 + out22 @ wB2 + out33 @ wB3 + bB + x
          = [out1 | out2 | out3] @ [M1; M2; M3] + bout + x
    with  T  = wB2 + wAa @ wB3
          M1 = wB1 + w0a @ T,   M2 = w0b @ T,   M3 = wAb @ wB3
          bout = bB + b0 @ T + bA @ wB3
    (exact: the 1x1 chain is purely affine, no activation in between).
    """
    Cin = p["w1"].shape[2]            # = channel
    Cr = p["w1"].shape[3]

    T = p["wB2"] + p["wAa"] @ p["wB3"]                      # (Cr, C)
    M1 = p["wB1"] + p["w0a"] @ T
    M2 = p["w0b"] @ T
    M3 = p["wAb"] @ p["wB3"]
    bout = p["bB"] + p["b0"] @ T + p["bA"] @ p["wB3"]       # (1, C)

    # im2col-flattened 3x3 weights: (3,3,Cin,Cr) -> (9*Cin, Cr), row-major
    # matches the kernel's tap order (ki outer, kj inner, then channels).
    wconv = jnp.stack([p["w1"].reshape(9 * Cin, Cr),
                       p["w2"].reshape(9 * Cin, Cr),
                       p["w3"].reshape(9 * Cin, Cr)])        # (3, 9*C, Cr)
    # Concatenated conv biases and branch matrices for the fused second stage.
    bcat = jnp.concatenate([p["b1"], p["b2"], p["b3"]], axis=1)  # (1, 3*Cr)
    mcat = jnp.concatenate([M1, M2, M3], axis=0)                 # (3*Cr, C)

    return {"wconv": wconv, "bcat": bcat, "mcat": mcat, "bout": bout}


# ----------------------------------------------------------------------------
# Pure-JAX reference (unfolded; validates the algebraic folding too)
# ----------------------------------------------------------------------------
def ms_layer_ref(x_nhwc, p):
    def conv3(x, w, b, d):
        y = lax.conv_general_dilated(
            x, w, window_strides=(1, 1), padding=((d, d), (d, d)),
            rhs_dilation=(d, d), dimension_numbers=("NHWC", "HWIO", "NHWC"))
        return jax.nn.relu(y + b)

    def conv1(x, w, b):
        return jnp.einsum("nhwc,cd->nhwd", x, w) + b

    out1 = conv3(x_nhwc, p["w1"], p["b1"][0], 1)
    out2 = conv3(x_nhwc, p["w2"], p["b2"][0], 3)
    out3 = conv3(x_nhwc, p["w3"], p["b3"][0], 5)
    out22 = conv1(jnp.concatenate([out1, out2], -1),
                  jnp.concatenate([p["w0a"], p["w0b"]], 0), p["b0"][0])
    out33 = conv1(jnp.concatenate([out22, out3], -1),
                  jnp.concatenate([p["wAa"], p["wAb"]], 0), p["bA"][0])
    out = conv1(jnp.concatenate([out1, out22, out33], -1),
                jnp.concatenate([p["wB1"], p["wB2"], p["wB3"]], 0),
                p["bB"][0]) + x_nhwc
    return out


# ----------------------------------------------------------------------------
if __name__ == "__main__":
    N, C, H, W = 2, 32, 16, 16         # channel=32, reduction=8 -> Cr=4
    key = jax.random.PRNGKey(0)
    kx, kp = jax.random.split(key)

    # PyTorch-convention NCHW input
    x_nchw = jax.random.normal(kx, (N, C, H, W), jnp.float32)
    # layout: convert NCHW -> NHWC for the TPU kernel
    x_nhwc = jnp.transpose(x_nchw, (0, 2, 3, 1))

    params = make_params(kp, C, reduction=8)
    packed = fold_and_pack(params)

    out_nhwc = jax.block_until_ready(ms_layer_pallas(x_nhwc, packed))

    ref = ms_layer_ref(x_nhwc, params)
    max_err = float(jnp.max(jnp.abs(out_nhwc - ref)))
    assert jnp.allclose(out_nhwc, ref, atol=2e-3, rtol=2e-3), max_err

    # back to PyTorch NCHW convention if needed downstream
    out_nchw = jnp.transpose(out_nhwc, (0, 3, 1, 2))
    assert out_nchw.shape == (N, C, H, W)

    print("KERNEL_OK")
</pallas_src>

<mosaic_0001>
module attributes {stable_mosaic.version = 11 : i64} {
  func.func @ms_layer_kernel(%arg0: i32, %arg1: memref<1x26x26x32xf32, #tpu.memory_space<vmem>>, %arg2: memref<3x288x4xf32, #tpu.memory_space<vmem>>, %arg3: memref<1x12xf32, #tpu.memory_space<vmem>>, %arg4: memref<12x32xf32, #tpu.memory_space<vmem>>, %arg5: memref<1x32xf32, #tpu.memory_space<vmem>>, %arg6: memref<1x256x32xf32, #tpu.memory_space<vmem>>) attributes {dimension_semantics = [#tpu.dimension_semantics<parallel>], iteration_bounds = array<i64: 2>, scalar_prefetch = 0 : i64, scratch_operands = 0 : i64, tpu.core_type = #tpu.core_type<tc>, window_params = [{transform_indices = @transform_0, window_bounds = array<i64: 1, 26, 26, 32>}, {pipeline_mode = #tpu.pipeline_mode<synchronous>, transform_indices = @transform_1, window_bounds = array<i64: 3, 288, 4>}, {pipeline_mode = #tpu.pipeline_mode<synchronous>, transform_indices = @transform_2, window_bounds = array<i64: 1, 12>}, {pipeline_mode = #tpu.pipeline_mode<synchronous>, transform_indices = @transform_3, window_bounds = array<i64: 12, 32>}, {pipeline_mode = #tpu.pipeline_mode<synchronous>, transform_indices = @transform_4, window_bounds = array<i64: 1, 32>}, {transform_indices = @transform_5, window_bounds = array<i64: 1, 256, 32>}]} {
    %c0 = arith.constant 0 : index
    %c0_0 = arith.constant 0 : index
    %c0_1 = arith.constant 0 : index
    %c0_2 = arith.constant 0 : index
    %0 = vector.load %arg1[%c0, %c0_0, %c0_1, %c0_2] : memref<1x26x26x32xf32, #tpu.memory_space<vmem>>, vector<1x26x26x32xf32>
    %1 = vector.shape_cast %0 : vector<1x26x26x32xf32> to vector<26x26x32xf32>
    %2 = vector.extract_strided_slice %1 {offsets = [5, 5, 0], sizes = [16, 16, 32], strides = [1, 1, 1]} : vector<26x26x32xf32> to vector<16x16x32xf32>
    %3 = vector.shape_cast %2 : vector<16x16x32xf32> to vector<256x32xf32>
    %c0_3 = arith.constant 0 : index
    %c0_4 = arith.constant 0 : index
    %4 = vector.load %arg5[%c0_3, %c0_4] : memref<1x32xf32, #tpu.memory_space<vmem>>, vector<1x32xf32>
    %5 = vector.broadcast %4 : vector<1x32xf32> to vector<256x32xf32>
    %6 = arith.addf %3, %5 : vector<256x32xf32>
    %7 = vector.extract_strided_slice %1 {offsets = [4, 4, 0], sizes = [16, 16, 32], strides = [1, 1, 1]} : vector<26x26x32xf32> to vector<16x16x32xf32>
    %8 = vector.shape_cast %7 : vector<16x16x32xf32> to vector<256x32xf32>
    %9 = vector.extract_strided_slice %1 {offsets = [4, 5, 0], sizes = [16, 16, 32], strides = [1, 1, 1]} : vector<26x26x32xf32> to vector<16x16x32xf32>
    %10 = vector.shape_cast %9 : vector<16x16x32xf32> to vector<256x32xf32>
    %11 = vector.extract_strided_slice %1 {offsets = [4, 6, 0], sizes = [16, 16, 32], strides = [1, 1, 1]} : vector<26x26x32xf32> to vector<16x16x32xf32>
    %12 = vector.shape_cast %11 : vector<16x16x32xf32> to vector<256x32xf32>
    %13 = vector.extract_strided_slice %1 {offsets = [5, 4, 0], sizes = [16, 16, 32], strides = [1, 1, 1]} : vector<26x26x32xf32> to vector<16x16x32xf32>
    %14 = vector.shape_cast %13 : vector<16x16x32xf32> to vector<256x32xf32>
    %15 = vector.extract_strided_slice %1 {offsets = [5, 6, 0], sizes = [16, 16, 32], strides = [1, 1, 1]} : vector<26x26x32xf32> to vector<16x16x32xf32>
    %16 = vector.shape_cast %15 : vector<16x16x32xf32> to vector<256x32xf32>
    %17 = vector.extract_strided_slice %1 {offsets = [6, 4, 0], sizes = [16, 16, 32], strides = [1, 1, 1]} : vector<26x26x32xf32> to vector<16x16x32xf32>
    %18 = vector.shape_cast %17 : vector<16x16x32xf32> to vector<256x32xf32>
    %19 = vector.extract_strided_slice %1 {offsets = [6, 5, 0], sizes = [16, 16, 32], strides = [1, 1, 1]} : vector<26x26x32xf32> to vector<16x16x32xf32>
    %20 = vector.shape_cast %19 : vector<16x16x32xf32> to vector<256x32xf32>
    %21 = vector.extract_strided_slice %1 {offsets = [6, 6, 0], sizes = [16, 16, 32], strides = [1, 1, 1]} : vector<26x26x32xf32> to vector<16x16x32xf32>
    %22 = vector.shape_cast %21 : vector<16x16x32xf32> to vector<256x32xf32>
    %23 = tpu.concatenate %8, %10, %12, %14, %3, %16, %18, %20, %22 in 1 : vector<256x32xf32>, vector<256x32xf32>, vector<256x32xf32>, vector<256x32xf32>, vector<256x32xf32>, vector<256x32xf32>, vector<256x32xf32>, vector<256x32xf32>, vector<256x32xf32> -> vector<256x288xf32>
    %c0_5 = arith.constant 0 : index
    %c0_6 = arith.constant 0 : index
    %c0_7 = arith.constant 0 : index
    %24 = vector.load %arg2[%c0_5, %c0_6, %c0_7] : memref<3x288x4xf32, #tpu.memory_space<vmem>>, vector<1x288x4xf32>
    %25 = vector.shape_cast %24 : vector<1x288x4xf32> to vector<288x4xf32>
    %cst = arith.constant dense<0.000000e+00> : vector<256x4xf32>
    %26 = tpu.matmul %23, %25, %cst {dimension_numbers = #tpu.dot_dimension_numbers<[1], [0], [0], [1], [0, 0, 1, 1], [], []>} : vector<256x288xf32>, vector<288x4xf32>, vector<256x4xf32> -> vector<256x4xf32>
    %27 = vector.extract_strided_slice %1 {offsets = [2, 2, 0], sizes = [16, 16, 32], strides = [1, 1, 1]} : vector<26x26x32xf32> to vector<16x16x32xf32>
    %28 = vector.shape_cast %27 : vector<16x16x32xf32> to vector<256x32xf32>
    %29 = vector.extract_strided_slice %1 {offsets = [2, 5, 0], sizes = [16, 16, 32], strides = [1, 1, 1]} : vector<26x26x32xf32> to vector<16x16x32xf32>
    %30 = vector.shape_cast %29 : vector<16x16x32xf32> to vector<256x32xf32>
    %31 = vector.extract_strided_slice %1 {offsets = [2, 8, 0], sizes = [16, 16, 32], strides = [1, 1, 1]} : vector<26x26x32xf32> to vector<16x16x32xf32>
    %32 = vector.shape_cast %31 : vector<16x16x32xf32> to vector<256x32xf32>
    %33 = vector.extract_strided_slice %1 {offsets = [5, 2, 0], sizes = [16, 16, 32], strides = [1, 1, 1]} : vector<26x26x32xf32> to vector<16x16x32xf32>
    %34 = vector.shape_cast %33 : vector<16x16x32xf32> to vector<256x32xf32>
    %35 = vector.extract_strided_slice %1 {offsets = [5, 8, 0], sizes = [16, 16, 32], strides = [1, 1, 1]} : vector<26x26x32xf32> to vector<16x16x32xf32>
    %36 = vector.shape_cast %35 : vector<16x16x32xf32> to vector<256x32xf32>
    %37 = vector.extract_strided_slice %1 {offsets = [8, 2, 0], sizes = [16, 16, 32], strides = [1, 1, 1]} : vector<26x26x32xf32> to vector<16x16x32xf32>
    %38 = vector.shape_cast %37 : vector<16x16x32xf32> to vector<256x32xf32>
    %39 = vector.extract_strided_slice %1 {offsets = [8, 5, 0], sizes = [16, 16, 32], strides = [1, 1, 1]} : vector<26x26x32xf32> to vector<16x16x32xf32>
    %40 = vector.shape_cast %39 : vector<16x16x32xf32> to vector<256x32xf32>
    %41 = vector.extract_strided_slice %1 {offsets = [8, 8, 0], sizes = [16, 16, 32], strides = [1, 1, 1]} : vector<26x26x32xf32> to vector<16x16x32xf32>
    %42 = vector.shape_cast %41 : vector<16x16x32xf32> to vector<256x32xf32>
    %43 = tpu.concatenate %28, %30, %32, %34, %3, %36, %38, %40, %42 in 1 : vector<256x32xf32>, vector<256x32xf32>, vector<256x32xf32>, vector<256x32xf32>, vector<256x32xf32>, vector<256x32xf32>, vector<256x32xf32>, vector<256x32xf32>, vector<256x32xf32> -> vector<256x288xf32>
    %c1 = arith.constant 1 : index
    %c0_8 = arith.constant 0 : index
    %c0_9 = arith.constant 0 : index
    %44 = vector.load %arg2[%c1, %c0_8, %c0_9] : memref<3x288x4xf32, #tpu.memory_space<vmem>>, vector<1x288x4xf32>
    %45 = vector.shape_cast %44 : vector<1x288x4xf32> to vector<288x4xf32>
    %cst_10 = arith.constant dense<0.000000e+00> : vector<256x4xf32>
    %46 = tpu.matmul %43, %45, %cst_10 {dimension_numbers = #tpu.dot_dimension_numbers<[1], [0], [0], [1], [0, 0, 1, 1], [], []>} : vector<256x288xf32>, vector<288x4xf32>, vector<256x4xf32> -> vector<256x4xf32>
    %47 = vector.extract_strided_slice %1 {offsets = [0, 0, 0], sizes = [16, 16, 32], strides = [1, 1, 1]} : vector<26x26x32xf32> to vector<16x16x32xf32>
    %48 = vector.shape_cast %47 : vector<16x16x32xf32> to vector<256x32xf32>
    %49 = vector.extract_strided_slice %1 {offsets = [0, 5, 0], sizes = [16, 16, 32], strides = [1, 1, 1]} : vector<26x26x32xf32> to vector<16x16x32xf32>
    %50 = vector.shape_cast %49 : vector<16x16x32xf32> to vector<256x32xf32>
    %51 = vector.extract_strided_slice %1 {offsets = [0, 10, 0], sizes = [16, 16, 32], strides = [1, 1, 1]} : vector<26x26x32xf32> to vector<16x16x32xf32>
    %52 = vector.shape_cast %51 : vector<16x16x32xf32> to vector<256x32xf32>
    %53 = vector.extract_strided_slice %1 {offsets = [5, 0, 0], sizes = [16, 16, 32], strides = [1, 1, 1]} : vector<26x26x32xf32> to vector<16x16x32xf32>
    %54 = vector.shape_cast %53 : vector<16x16x32xf32> to vector<256x32xf32>
    %55 = vector.extract_strided_slice %1 {offsets = [5, 10, 0], sizes = [16, 16, 32], strides = [1, 1, 1]} : vector<26x26x32xf32> to vector<16x16x32xf32>
    %56 = vector.shape_cast %55 : vector<16x16x32xf32> to vector<256x32xf32>
    %57 = vector.extract_strided_slice %1 {offsets = [10, 0, 0], sizes = [16, 16, 32], strides = [1, 1, 1]} : vector<26x26x32xf32> to vector<16x16x32xf32>
    %58 = vector.shape_cast %57 : vector<16x16x32xf32> to vector<256x32xf32>
    %59 = vector.extract_strided_slice %1 {offsets = [10, 5, 0], sizes = [16, 16, 32], strides = [1, 1, 1]} : vector<26x26x32xf32> to vector<16x16x32xf32>
    %60 = vector.shape_cast %59 : vector<16x16x32xf32> to vector<256x32xf32>
    %61 = vector.extract_strided_slice %1 {offsets = [10, 10, 0], sizes = [16, 16, 32], strides = [1, 1, 1]} : vector<26x26x32xf32> to vector<16x16x32xf32>
    %62 = vector.shape_cast %61 : vector<16x16x32xf32> to vector<256x32xf32>
    %63 = tpu.concatenate %48, %50, %52, %54, %3, %56, %58, %60, %62 in 1 : vector<256x32xf32>, vector<256x32xf32>, vector<256x32xf32>, vector<256x32xf32>, vector<256x32xf32>, vector<256x32xf32>, vector<256x32xf32>, vector<256x32xf32>, vector<256x32xf32> -> vector<256x288xf32>
    %c2 = arith.constant 2 : index
    %c0_11 = arith.constant 0 : index
    %c0_12 = arith.constant 0 : index
    %64 = vector.load %arg2[%c2, %c0_11, %c0_12] : memref<3x288x4xf32, #tpu.memory_space<vmem>>, vector<1x288x4xf32>
    %65 = vector.shape_cast %64 : vector<1x288x4xf32> to vector<288x4xf32>
    %cst_13 = arith.constant dense<0.000000e+00> : vector<256x4xf32>
    %66 = tpu.matmul %63, %65, %cst_13 {dimension_numbers = #tpu.dot_dimension_numbers<[1], [0], [0], [1], [0, 0, 1, 1], [], []>} : vector<256x288xf32>, vector<288x4xf32>, vector<256x4xf32> -> vector<256x4xf32>
    %67 = tpu.concatenate %26, %46, %66 in 1 : vector<256x4xf32>, vector<256x4xf32>, vector<256x4xf32> -> vector<256x12xf32>
    %c0_14 = arith.constant 0 : index
    %c0_15 = arith.constant 0 : index
    %68 = vector.load %arg3[%c0_14, %c0_15] : memref<1x12xf32, #tpu.memory_space<vmem>>, vector<1x12xf32>
    %69 = vector.broadcast %68 : vector<1x12xf32> to vector<256x12xf32>
    %70 = arith.addf %67, %69 : vector<256x12xf32>
    %cst_16 = arith.constant 0.000000e+00 : f32
    %71 = vector.broadcast %cst_16 : f32 to vector<256x12xf32>
    %72 = arith.maximumf %70, %71 : vector<256x12xf32>
    %c0_17 = arith.constant 0 : index
    %c0_18 = arith.constant 0 : index
    %73 = vector.load %arg4[%c0_17, %c0_18] : memref<12x32xf32, #tpu.memory_space<vmem>>, vector<12x32xf32>
    %cst_19 = arith.constant dense<0.000000e+00> : vector<256x32xf32>
    %74 = tpu.matmul %72, %73, %cst_19 {dimension_numbers = #tpu.dot_dimension_numbers<[1], [0], [0], [1], [0, 0, 1, 1], [], []>} : vector<256x12xf32>, vector<12x32xf32>, vector<256x32xf32> -> vector<256x32xf32>
    %75 = arith.addf %6, %74 : vector<256x32xf32>
    %76 = vector.shape_cast %75 : vector<256x32xf32> to vector<1x256x32xf32>
    %c0_20 = arith.constant 0 : index
    %c0_21 = arith.constant 0 : index
    %c0_22 = arith.constant 0 : index
    %77 = vector.load %arg6[%c0_20, %c0_21, %c0_22] : memref<1x256x32xf32, #tpu.memory_space<vmem>>, vector<1x256x32xf32>
    tpu.vector_store %arg6[%c0_20, %c0_21, %c0_22], %76 {strides = array<i32>} : memref<1x256x32xf32, #tpu.memory_space<vmem>>, vector<1x256x32xf32>,
    return
  }
  func.func @transform_0(%arg0: i32) -> (i32, i32, i32, i32) {
    %c0_i32 = arith.constant 0 : i32
    %c0_i32_0 = arith.constant 0 : i32
    %c0_i32_1 = arith.constant 0 : i32
    %c0_i32_2 = arith.constant 0 : i32
    return %arg0, %c0_i32, %c0_i32_0, %c0_i32_1 : i32, i32, i32, i32
  }
  func.func @transform_1(%arg0: i32) -> (i32, i32, i32) {
    %c0_i32 = arith.constant 0 : i32
    %c0_i32_0 = arith.constant 0 : i32
    %c0_i32_1 = arith.constant 0 : i32
    %c0_i32_2 = arith.constant 0 : i32
    return %c0_i32, %c0_i32_0, %c0_i32_1 : i32, i32, i32
  }
  func.func @transform_2(%arg0: i32) -> (i32, i32) {
    %c0_i32 = arith.constant 0 : i32
    %c0_i32_0 = arith.constant 0 : i32
    %c0_i32_1 = arith.constant 0 : i32
    return %c0_i32, %c0_i32_0 : i32, i32
  }
  func.func @transform_3(%arg0: i32) -> (i32, i32) {
    %c0_i32 = arith.constant 0 : i32
    %c0_i32_0 = arith.constant 0 : i32
    %c0_i32_1 = arith.constant 0 : i32
    return %c0_i32, %c0_i32_0 : i32, i32
  }
  func.func @transform_4(%arg0: i32) -> (i32, i32) {
    %c0_i32 = arith.constant 0 : i32
    %c0_i32_0 = arith.constant 0 : i32
    %c0_i32_1 = arith.constant 0 : i32
    return %c0_i32, %c0_i32_0 : i32, i32
  }
  func.func @transform_5(%arg0: i32) -> (i32, i32, i32) {
    %c0_i32 = arith.constant 0 : i32
    %c0_i32_0 = arith.constant 0 : i32
    %c0_i32_1 = arith.constant 0 : i32
    return %arg0, %c0_i32, %c0_i32_0 : i32, i32, i32
  }
}

</mosaic_0001>

<llo_original>
// kernel: tpu_custom_call.1
$region0: #{tpu_custom_call.1}
  #allocation0 [shape = 'u32[]', space=smem, size = 0x4, offset = 0x4, fixed_abs, tag = 'smem constant byte address 0x4 - core index']
  #allocation1 [shape = 'u32[144,128]{1,0:T(1,128)}', space=vmem, size = 0x12000, scoped, tag = 'internal scratch']
  %s0 = inlined_call_operand.vmem [shape: f32[2,26,26,32], index: 0, kind: input, shape index: {}]
  %s1 = inlined_call_operand.vmem [shape: f32[3,288,4], index: 1, kind: input, shape index: {}]
  %s2 = inlined_call_operand.vmem [shape: f32[1,12], index: 2, kind: input, shape index: {}]
  %s3 = inlined_call_operand.vmem [shape: f32[12,32], index: 3, kind: input, shape index: {}]
  %s4 = inlined_call_operand.vmem [shape: f32[1,32], index: 4, kind: input, shape index: {}]
  %s5 = inlined_call_operand.vmem [shape: f32[2,256,32], index: 5, kind: output, shape index: {}]
  %s6 = sld [smem:[#allocation0]]
  $region53: #{tpu_custom_call.1} parent=0
    _
  %s8 = ssub.s32 1, %s6
  %s9 = scalar_select 0, %s8, %s6
  loop: start=0, step=1, limit=4
  $region2: #{tpu_custom_call.1} parent=0 // loop_pre_header
    _
  $region3: #{tpu_custom_call.1} parent=0 // loop_header
    %s11 = sphi 0, %s15
    %p12 = scmp.ge.s32.totalorder %s11, 4
    %s21 = sphi 0, %s23
    %s24 = sphi 0, %s21
    %s25 = sphi 0, %s24
    %s41 = sphi 0, %s25
    %s45 = sphi 0, %s45
    %s47 = sphi 0, %s45
    %s48 = sphi 0, %s47
    %s62 = sphi 0, %s48
    %s66 = sphi 0, %s66
    %s68 = sphi 0, %s66
    %s69 = sphi 0, %s68
    %s83 = sphi 0, %s69
    %s87 = sphi 0, %s87
    %s89 = sphi 0, %s87
    %s90 = sphi 0, %s89
    %s104 = sphi 0, %s90
    %s108 = sphi 0, %s108
    %s110 = sphi 0, %s108
    %s111 = sphi 0, %s110
    %s125 = sphi 0, %s111
    %s131 = sphi 0, %s133
    %s134 = sphi 0, %s131
    %s135 = sphi 0, %s134
    %s151 = sphi 0, %s135
  $region4: #{tpu_custom_call.1} parent=0 // loop_header_branch
    %14 = sbr.rel (%p12) target = $region8
  $region5: #{tpu_custom_call.1} parent=0 // loop_body
    %s16 = ssub.s32 %s11, 1
    %s17 = ssub.s32 %s11, 2
    %s18 = sadd.s32 %s11, 1
    %s19 = ssub.s32 %s11, %s18
    %p20 = scmp.eq.s32.totalorder %s19, 0
    %s22 = sadd.s32 %s21, 1
    %s23 = scalar_select %p20, %s21, %s22
    %p26 = pneg %p20
    %p27 = scmp.eq.s32.totalorder %s11, 1
    %p28 = por %p26, %p27
    %p29 = scmp.ne.s32.totalorder %s21, %s24
    %p30 = scmp.eq.s32.totalorder %s11, 0
    %p31 = por %p29, %p30
    %p32 = scmp.ne.s32.totalorder %s21, %s24
    %p33 = scmp.eq.s32.totalorder %s16, 1
    %p34 = por %p32, %p33
    %p35 = scmp.ne.s32.totalorder %s24, %s25
    %p36 = scmp.eq.s32.totalorder %s16, 0
    %p37 = por %p35, %p36
    %p38 = scmp.ne.s32.totalorder %s24, %s25
    %p39 = scmp.eq.s32.totalorder %s17, 1
    %p40 = por %p38, %p39
    %p42 = scmp.ne.s32.totalorder %s25, %s41
    %p43 = scmp.eq.s32.totalorder %s17, 0
    %p44 = por %p42, %p43
    %s46 = sadd.s32 %s45, 1
    %p49 = scmp.eq.s32.totalorder %s11, 1
    %p50 = scmp.ne.s32.totalorder %s45, %s47
    %p51 = scmp.eq.s32.totalorder %s11, 0
    %p52 = por %p50, %p51
    %p53 = scmp.ne.s32.totalorder %s45, %s47
    %p54 = scmp.eq.s32.totalorder %s16, 1
    %p55 = por %p53, %p54
    %p56 = scmp.ne.s32.totalorder %s47, %s48
    %p57 = scmp.eq.s32.totalorder %s16, 0
    %p58 = por %p56, %p57
    %p59 = scmp.ne.s32.totalorder %s47, %s48
    %p60 = scmp.eq.s32.totalorder %s17, 1
    %p61 = por %p59, %p60
    %p63 = scmp.ne.s32.totalorder %s48, %s62
    %p64 = scmp.eq.s32.totalorder %s17, 0
    %p65 = por %p63, %p64
    %s67 = sadd.s32 %s66, 1
    %p70 = scmp.eq.s32.totalorder %s11, 1
    %p71 = scmp.ne.s32.totalorder %s66, %s68
    %p72 = scmp.eq.s32.totalorder %s11, 0
    %p73 = por %p71, %p72
    %p74 = scmp.ne.s32.totalorder %s66, %s68
    %p75 = scmp.eq.s32.totalorder %s16, 1
    %p76 = por %p74, %p75
    %p77 = scmp.ne.s32.totalorder %s68, %s69
    %p78 = scmp.eq.s32.totalorder %s16, 0
    %p79 = por %p77, %p78
    %p80 = scmp.ne.s32.totalorder %s68, %s69
    %p81 = scmp.eq.s32.totalorder %s17, 1
    %p82 = por %p80, %p81
    %p84 = scmp.ne.s32.totalorder %s69, %s83
    %p85 = scmp.eq.s32.totalorder %s17, 0
    %p86 = por %p84, %p85
    %s88 = sadd.s32 %s87, 1
    %p91 = scmp.eq.s32.totalorder %s11, 1
    %p92 = scmp.ne.s32.totalorder %s87, %s89
    %p93 = scmp.eq.s32.totalorder %s11, 0
    %p94 = por %p92, %p93
    %p95 = scmp.ne.s32.totalorder %s87, %s89
    %p96 = scmp.eq.s32.totalorder %s16, 1
    %p97 = por %p95, %p96
    %p98 = scmp.ne.s32.totalorder %s89, %s90
    %p99 = scmp.eq.s32.totalorder %s16, 0
    %p100 = por %p98, %p99
    %p101 = scmp.ne.s32.totalorder %s89, %s90
    %p102 = scmp.eq.s32.totalorder %s17, 1
    %p103 = por %p101, %p102
    %p105 = scmp.ne.s32.totalorder %s90, %s104
    %p106 = scmp.eq.s32.totalorder %s17, 0
    %p107 = por %p105, %p106
    %s109 = sadd.s32 %s108, 1
    %p112 = scmp.eq.s32.totalorder %s11, 1
    %p113 = scmp.ne.s32.totalorder %s108, %s110
    %p114 = scmp.eq.s32.totalorder %s11, 0
    %p115 = por %p113, %p114
    %p116 = scmp.ne.s32.totalorder %s108, %s110
    %p117 = scmp.eq.s32.totalorder %s16, 1
    %p118 = por %p116, %p117
    %p119 = scmp.ne.s32.totalorder %s110, %s111
    %p120 = scmp.eq.s32.totalorder %s16, 0
    %p121 = por %p119, %p120
    %p122 = scmp.ne.s32.totalorder %s110, %s111
    %p123 = scmp.eq.s32.totalorder %s17, 1
    %p124 = por %p122, %p123
    %p126 = scmp.ne.s32.totalorder %s111, %s125
    %p127 = scmp.eq.s32.totalorder %s17, 0
    %p128 = por %p126, %p127
    %s129 = ssub.s32 %s11, %s18
    %p130 = scmp.eq.s32.totalorder %s129, 0
    %s132 = sadd.s32 %s131, 1
    %s133 = scalar_select %p130, %s131, %s132
    %p136 = pneg %p130
    %p137 = scmp.eq.s32.totalorder %s11, 1
    %p138 = por %p136, %p137
    %p139 = scmp.ne.s32.totalorder %s131, %s134
    %p140 = scmp.eq.s32.totalorder %s11, 0
    %p141 = por %p139, %p140
    %p142 = scmp.ne.s32.totalorder %s131, %s134
    %p143 = scmp.eq.s32.totalorder %s16, 1
    %p144 = por %p142, %p143
    %p145 = scmp.ne.s32.totalorder %s134, %s135
    %p146 = scmp.eq.s32.totalorder %s16, 0
    %p147 = por %p145, %p146
    %p148 = scmp.ne.s32.totalorder %s134, %s135
    %p149 = scmp.eq.s32.totalorder %s17, 1
    %p150 = por %p148, %p149
    %p152 = scmp.ne.s32.totalorder %s135, %s151
    %p153 = scmp.eq.s32.totalorder %s17, 0
    %p154 = por %p152, %p153
    %p155 = scmp.le.s32.totalorder 1, %s11
    %p156 = scmp.lt.s32.totalorder %s11, 3
    %p157 = pnand %p155, %p156
    %p158 = pneg %p157
    // Predicated region
    $region9: #{tpu_custom_call.1} parent=5 // pred_check
      _
    $region10: #{tpu_custom_call.1} parent=5 // pred_check_branch
      %160 = sbr.rel (%p157) target = $region12
    $region11: #{tpu_custom_call.1} parent=5 // pred_region
      %s161 = ssub.s32 %s11, 1
      // Predicated region
      $region13: #{tpu_custom_call.1} parent=11 // pred_check
        %p162 = pneg %p58
      $region14: #{tpu_custom_call.1} parent=11 // pred_check_branch
        %164 = sbr.rel (%p162) target = $region16
      $region15: #{tpu_custom_call.1} parent=11 // pred_region
        _
      $region16: #{tpu_custom_call.1} parent=11 // pred_fallthru
        _
      // Predicated region
      $region17: #{tpu_custom_call.1} parent=11 // pred_check
        %p165 = pneg %p79
      $region18: #{tpu_custom_call.1} parent=11 // pred_check_branch
        %167 = sbr.rel (%p165) target = $region20
      $region19: #{tpu_custom_call.1} parent=11 // pred_region
        _
      $region20: #{tpu_custom_call.1} parent=11 // pred_fallthru
        _
      // Predicated region
      $region21: #{tpu_custom_call.1} parent=11 // pred_check
        %p168 = pneg %p100
      $region22: #{tpu_custom_call.1} parent=11 // pred_check_branch
        %170 = sbr.rel (%p168) target = $region24
      $region23: #{tpu_custom_call.1} parent=11 // pred_region
        _
      $region24: #{tpu_custom_call.1} parent=11 // pred_fallthru
        _
      // Predicated region
      $region25: #{tpu_custom_call.1} parent=11 // pred_check
        %p171 = pneg %p121
      $region26: #{tpu_custom_call.1} parent=11 // pred_check_branch
        %173 = sbr.rel (%p171) target = $region28
      $region27: #{tpu_custom_call.1} parent=11 // pred_region
        _
      $region28: #{tpu_custom_call.1} parent=11 // pred_fallthru
        _
    $region12: #{tpu_custom_call.1} parent=5 // pred_fallthru
      _
    %p174 = scmp.lt.s32.totalorder %s11, 2
    // Predicated region
    $region29: #{tpu_custom_call.1} parent=5 // pred_check
      %p175 = pneg %p174
    $region30: #{tpu_custom_call.1} parent=5 // pred_check_branch
      %177 = sbr.rel (%p175) target = $region32
    $region31: #{tpu_custom_call.1} parent=5 // pred_region
      // Predicated region
      $region33: #{tpu_custom_call.1} parent=31 // pred_check
        %p178 = pneg %p31
      $region34: #{tpu_custom_call.1} parent=31 // pred_check_branch
        %180 = sbr.rel (%p178) target = $region36
      $region35: #{tpu_custom_call.1} parent=31 // pred_region
        %p181 = scmp.lt.s32.totalorder %s11, 1
        %s182 = scalar_select %p181, %s11, 1
        %s183 = smul.addr %s182, 104
        %s184 = smul.addr %s183, 8
        %s185 = scalar_lea.vmem %s0, %s184
      $region36: #{tpu_custom_call.1} parent=31 // pred_fallthru
        _
    $region32: #{tpu_custom_call.1} parent=5 // pred_fallthru
      _
    %p186 = scmp.le.s32.totalorder 1, %s11
    %p187 = scmp.lt.s32.totalorder %s11, 3
    %p188 = pnand %p186, %p187
    %p189 = pneg %p188
    // Predicated region
    $region37: #{tpu_custom_call.1} parent=5 // pred_check
      _
    $region38: #{tpu_custom_call.1} parent=5 // pred_check_branch
      %191 = sbr.rel (%p188) target = $region40
    $region39: #{tpu_custom_call.1} parent=5 // pred_region
      %s192 = ssub.s32 %s11, 1
      %p193 = scmp.lt.s32.totalorder %s16, 1
      %s194 = scalar_select %p193, %s16, 1
      %s195 = smul.addr %s194, 104
      %s196 = smul.addr %s195, 8
      %s197 = scalar_lea.vmem %s0, %s196
      %p198 = pneg %p37
      %p199 = pneg %p34
      %p200 = pneg %p58
      %p201 = pneg %p55
      %p202 = pneg %p79
      %p203 = pneg %p76
      %p204 = pneg %p100
      %p205 = pneg %p97
      %p206 = pneg %p121
      %p207 = pneg %p118
      %p208 = pneg %p147
      %p209 = pneg %p144
      %p210 = scmp.lt.s32.totalorder %s16, 1
      %s211 = scalar_select %p210, %s16, 1
      %s212 = smul.addr %s211, 32
      %s213 = smul.addr %s212, 8
      %s214 = scalar_lea.vmem %s5, %s213
      %p215 = scmp.lt.s32.totalorder %s16, 1
      %s216 = scalar_select %p215, %s16, 1
      %s217 = smul.addr %s216, 104
      %s218 = smul.addr %s217, 8
      %s219 = scalar_lea.vmem %s0, %s218
      %p220 = scmp.lt.s32.totalorder %s16, 1
      %s221 = scalar_select %p220, %s16, 1
      %s222 = smul.addr %s221, 32
      %s223 = smul.addr %s222, 8
      %s224 = scalar_lea.vmem %s5, %s223
      %v225 = vld [vmem:[%s219] sm:$0xff]
      %v226 = vld [vmem:[%s219 + $0x8] sm:$0xff]
      %v227 = vld [vmem:[%s219 + $0x10] sm:$0xff]
      %v228 = vld [vmem:[%s219 + $0x18] sm:$0x3]
      %v229 = vld [vmem:[%s219 + $0x20] sm:$0xff]
      %v230 = vld [vmem:[%s219 + $0x28] sm:$0xff]
      %v231 = vld [vmem:[%s219 + $0x30] sm:$0xff]
      %v232 = vld [vmem:[%s219 + $0x38] sm:$0x3]
      %v233 = vld [vmem:[%s219 + $0x40] sm:$0xff]
      %v234 = vld [vmem:[%s219 + $0x48] sm:$0xff]
      %v235 = vld [vmem:[%s219 + $0x50] sm:$0xff]
      %v236 = vld [vmem:[%s219 + $0x58] sm:$0x3]
      %v237 = vld [vmem:[%s219 + $0x60] sm:$0xff]
      %v238 = vld [vmem:[%s219 + $0x68] sm:$0xff]
      %v239 = vld [vmem:[%s219 + $0x70] sm:$0xff]
      %v240 = vld [vmem:[%s219 + $0x78] sm:$0x3]
      %v241 = vld [vmem:[%s219 + $0x80] sm:$0xff]
      %v242 = vld [vmem:[%s219 + $0x88] sm:$0xff]
      %v243 = vld [vmem:[%s219 + $0x90] sm:$0xff]
      %v244 = vld [vmem:[%s219 + $0x98] sm:$0x3]
      %v245 = vld [vmem:[%s219 + $0xa0] sm:$0xff]
      %v246 = vld [vmem:[%s219 + $0xa8] sm:$0xff]
      %v247 = vld [vmem:[%s219 + $0xb0] sm:$0xff]
      %v248 = vld [vmem:[%s219 + $0xb8] sm:$0x3]
      %v249 = vld [vmem:[%s219 + $0xc0] sm:$0xff]
      %v250 = vld [vmem:[%s219 + $0xc8] sm:$0xff]
      %v251 = vld [vmem:[%s219 + $0xd0] sm:$0xff]
      %v252 = vld [vmem:[%s219 + $0xd8] sm:$0x3]
      %v253 = vld [vmem:[%s219 + $0xe0] sm:$0xff]
      %v254 = vld [vmem:[%s219 + $0xe8] sm:$0xff]
      %v255 = vld [vmem:[%s219 + $0xf0] sm:$0xff]
      %v256 = vld [vmem:[%s219 + $0xf8] sm:$0x3]
      %v257 = vld [vmem:[%s219 + $0x100] sm:$0xff]
      %v258 = vld [vmem:[%s219 + $0x108] sm:$0xff]
      %v259 = vld [vmem:[%s219 + $0x110] sm:$0xff]
      %v260 = vld [vmem:[%s219 + $0x118] sm:$0x3]
      %v261 = vld [vmem:[%s219 + $0x120] sm:$0xff]
      %v262 = vld [vmem:[%s219 + $0x128] sm:$0xff]
      %v263 = vld [vmem:[%s219 + $0x130] sm:$0xff]
      %v264 = vld [vmem:[%s219 + $0x138] sm:$0x3]
      %v265 = vld [vmem:[%s219 + $0x140] sm:$0xff]
      %v266 = vld [vmem:[%s219 + $0x148] sm:$0xff]
      %v267 = vld [vmem:[%s219 + $0x150] sm:$0xff]
      %v268 = vld [vmem:[%s219 + $0x158] sm:$0x3]
      %v269 = vld [vmem:[%s219 + $0x160] sm:$0xff]
      %v270 = vld [vmem:[%s219 + $0x168] sm:$0xff]
      %v271 = vld [vmem:[%s219 + $0x170] sm:$0xff]
      %v272 = vld [vmem:[%s219 + $0x178] sm:$0x3]
      %v273 = vld [vmem:[%s219 + $0x180] sm:$0xff]
      %v274 = vld [vmem:[%s219 + $0x188] sm:$0xff]
      %v275 = vld [vmem:[%s219 + $0x190] sm:$0xff]
      %v276 = vld [vmem:[%s219 + $0x198] sm:$0x3]
      %v277 = vld [vmem:[%s219 + $0x1a0] sm:$0xff]
      %v278 = vld [vmem:[%s219 + $0x1a8] sm:$0xff]
      %v279 = vld [vmem:[%s219 + $0x1b0] sm:$0xff]
      %v280 = vld [vmem:[%s219 + $0x1b8] sm:$0x3]
      %v281 = vld [vmem:[%s219 + $0x1c0] sm:$0xff]
      %v282 = vld [vmem:[%s219 + $0x1c8] sm:$0xff]
      %v283 = vld [vmem:[%s219 + $0x1d0] sm:$0xff]
      %v284 = vld [vmem:[%s219 + $0x1d8] sm:$0x3]
      %v285 = vld [vmem:[%s219 + $0x1e0] sm:$0xff]
      %v286 = vld [vmem:[%s219 + $0x1e8] sm:$0xff]
      %v287 = vld [vmem:[%s219 + $0x1f0] sm:$0xff]
      %v288 = vld [vmem:[%s219 + $0x1f8] sm:$0x3]
      %v289 = vld [vmem:[%s219 + $0x200] sm:$0xff]
      %v290 = vld [vmem:[%s219 + $0x208] sm:$0xff]
      %v291 = vld [vmem:[%s219 + $0x210] sm:$0xff]
      %v292 = vld [vmem:[%s219 + $0x218] sm:$0x3]
      %v293 = vld [vmem:[%s219 + $0x220] sm:$0xff]
      %v294 = vld [vmem:[%s219 + $0x228] sm:$0xff]
      %v295 = vld [vmem:[%s219 + $0x230] sm:$0xff]
      %v296 = vld [vmem:[%s219 + $0x238] sm:$0x3]
      %v297 = vld [vmem:[%s219 + $0x240] sm:$0xff]
      %v298 = vld [vmem:[%s219 + $0x248] sm:$0xff]
      %v299 = vld [vmem:[%s219 + $0x250] sm:$0xff]
      %v300 = vld [vmem:[%s219 + $0x258] sm:$0x3]
      %v301 = vld [vmem:[%s219 + $0x260] sm:$0xff]
      %v302 = vld [vmem:[%s219 + $0x268] sm:$0xff]
      %v303 = vld [vmem:[%s219 + $0x270] sm:$0xff]
      %v304 = vld [vmem:[%s219 + $0x278] sm:$0x3]
      %v305 = vld [vmem:[%s219 + $0x280] sm:$0xff]
      %v306 = vld [vmem:[%s219 + $0x288] sm:$0xff]
      %v307 = vld [vmem:[%s219 + $0x290] sm:$0xff]
      %v308 = vld [vmem:[%s219 + $0x298] sm:$0x3]
      %v309 = vld [vmem:[%s219 + $0x2a0] sm:$0xff]
      %v310 = vld [vmem:[%s219 + $0x2a8] sm:$0xff]
      %v311 = vld [vmem:[%s219 + $0x2b0] sm:$0xff]
      %v312 = vld [vmem:[%s219 + $0x2b8] sm:$0x3]
      %v313 = vld [vmem:[%s219 + $0x2c0] sm:$0xff]
      %v314 = vld [vmem:[%s219 + $0x2c8] sm:$0xff]
      %v315 = vld [vmem:[%s219 + $0x2d0] sm:$0xff]
      %v316 = vld [vmem:[%s219 + $0x2d8] sm:$0x3]
      %v317 = vld [vmem:[%s219 + $0x2e0] sm:$0xff]
      %v318 = vld [vmem:[%s219 + $0x2e8] sm:$0xff]
      %v319 = vld [vmem:[%s219 + $0x2f0] sm:$0xff]
      %v320 = vld [vmem:[%s219 + $0x2f8] sm:$0x3]
      %v321 = vld [vmem:[%s219 + $0x300] sm:$0xff]
      %v322 = vld [vmem:[%s219 + $0x308] sm:$0xff]
      %v323 = vld [vmem:[%s219 + $0x310] sm:$0xff]
      %v324 = vld [vmem:[%s219 + $0x318] sm:$0x3]
      %v325 = vld [vmem:[%s219 + $0x320] sm:$0xff]
      %v326 = vld [vmem:[%s219 + $0x328] sm:$0xff]
      %v327 = vld [vmem:[%s219 + $0x330] sm:$0xff]
      %v328 = vld [vmem:[%s219 + $0x338] sm:$0x3]
      %vm377 = vcmask 1042432
      %v378 = vrot.slane %v245, 5
      %v379 = vrot.slane %v246, 5
      %v380 = vsel %vm377, %v378, %v379
      %v381 = vrot.slane %v247, 5
      %v382 = vsel %vm377, %v379, %v381
      %v383 = vrot.slane %v249, 5
      %v384 = vrot.slane %v250, 5
      %v385 = vsel %vm377, %v383, %v384
      %v386 = vrot.slane %v251, 5
      %v387 = vsel %vm377, %v384, %v386
      %v388 = vrot.slane %v253, 5
      %v389 = vrot.slane %v254, 5
      %v390 = vsel %vm377, %v388, %v389
      %v391 = vrot.slane %v255, 5
      %v392 = vsel %vm377, %v389, %v391
      %v393 = vrot.slane %v257, 5
      %v394 = vrot.slane %v258, 5
      %v395 = vsel %vm377, %v393, %v394
      %v396 = vrot.slane %v259, 5
      %v397 = vsel %vm377, %v394, %v396
      %v398 = vrot.slane %v261, 5
      %v399 = vrot.slane %v262, 5
      %v400 = vsel %vm377, %v398, %v399
      %v401 = vrot.slane %v263, 5
      %v402 = vsel %vm377, %v399, %v401
      %v403 = vrot.slane %v265, 5
      %v404 = vrot.slane %v266, 5
      %v405 = vsel %vm377, %v403, %v404
      %v406 = vrot.slane %v267, 5
      %v407 = vsel %vm377, %v404, %v406
      %v408 = vrot.slane %v269, 5
      %v409 = vrot.slane %v270, 5
      %v410 = vsel %vm377, %v408, %v409
      %v411 = vrot.slane %v271, 5
      %v412 = vsel %vm377, %v409, %v411
      %v413 = vrot.slane %v273, 5
      %v414 = vrot.slane %v274, 5
      %v415 = vsel %vm377, %v413, %v414
      %v416 = vrot.slane %v275, 5
      %v417 = vsel %vm377, %v414, %v416
      %v418 = vrot.slane %v277, 5
      %v419 = vrot.slane %v278, 5
      %v420 = vsel %vm377, %v418, %v419
      %v421 = vrot.slane %v279, 5
      %v422 = vsel %vm377, %v419, %v421
      %v423 = vrot.slane %v281, 5
      %v424 = vrot.slane %v282, 5
      %v425 = vsel %vm377, %v423, %v424
      %v426 = vrot.slane %v283, 5
      %v427 = vsel %vm377, %v424, %v426
      %v428 = vrot.slane %v285, 5
      %v429 = vrot.slane %v286, 5
      %v430 = vsel %vm377, %v428, %v429
      %v431 = vrot.slane %v287, 5
      %v432 = vsel %vm377, %v429, %v431
      %v433 = vrot.slane %v289, 5
      %v434 = vrot.slane %v290, 5
      %v435 = vsel %vm377, %v433, %v434
      %v436 = vrot.slane %v291, 5
      %v437 = vsel %vm377, %v434, %v436
      %v438 = vrot.slane %v293, 5
      %v439 = vrot.slane %v294, 5
      %v440 = vsel %vm377, %v438, %v439
      %v441 = vrot.slane %v295, 5
      %v442 = vsel %vm377, %v439, %v441
      %v443 = vrot.slane %v297, 5
      %v444 = vrot.slane %v298, 5
      %v445 = vsel %vm377, %v443, %v444
      %v446 = vrot.slane %v299, 5
      %v447 = vsel %vm377, %v444, %v446
      %v448 = vrot.slane %v301, 5
      %v449 = vrot.slane %v302, 5
      %v450 = vsel %vm377, %v448, %v449
      %v451 = vrot.slane %v303, 5
      %v452 = vsel %vm377, %v449, %v451
      %v453 = vrot.slane %v305, 5
      %v454 = vrot.slane %v306, 5
      %v455 = vsel %vm377, %v453, %v454
      %v456 = vrot.slane %v307, 5
      %v457 = vsel %vm377, %v454, %v456
      %v490 = vld [vmem:[%s4] sm:$0x1]
      %v492 = vlaneseq
      %v493 = vshrl.u32 %v492, 7
      %v494 = vsub.s32 0, %v493
      %v495 = vrot.slane %v490, %v494
      %v497 = vadd.f32 %v380, %v495
      %v498 = vadd.f32 %v382, %v495
      %v499 = vadd.f32 %v385, %v495
      %v500 = vadd.f32 %v387, %v495
      %v501 = vadd.f32 %v390, %v495
      %v502 = vadd.f32 %v392, %v495
      %v503 = vadd.f32 %v395, %v495
      %v504 = vadd.f32 %v397, %v495
      %v505 = vadd.f32 %v400, %v495
      %v506 = vadd.f32 %v402, %v495
      %v507 = vadd.f32 %v405, %v495
      %v508 = vadd.f32 %v407, %v495
      %v509 = vadd.f32 %v410, %v495
      %v510 = vadd.f32 %v412, %v495
      %v511 = vadd.f32 %v415, %v495
      %v512 = vadd.f32 %v417, %v495
      %v513 = vadd.f32 %v420, %v495
      %v514 = vadd.f32 %v422, %v495
      %v515 = vadd.f32 %v425, %v495
      %v516 = vadd.f32 %v427, %v495
      %v517 = vadd.f32 %v430, %v495
      %v518 = vadd.f32 %v432, %v495
      %v519 = vadd.f32 %v435, %v495
      %v520 = vadd.f32 %v437, %v495
      %v521 = vadd.f32 %v440, %v495
      %v522 = vadd.f32 %v442, %v495
      %v523 = vadd.f32 %v445, %v495
      %v524 = vadd.f32 %v447, %v495
      %v525 = vadd.f32 %v450, %v495
      %v526 = vadd.f32 %v452, %v495
      %v527 = vadd.f32 %v455, %v495
      %v528 = vadd.f32 %v457, %v495
      %vm532 = vcmask 1043456
      %v533 = vrot.slane %v241, 4
      %v534 = vrot.slane %v242, 4
      %v535 = vsel %vm532, %v533, %v534
      %v536 = vrot.slane %v243, 4
      %v537 = vsel %vm532, %v534, %v536
      %v538 = vrot.slane %v245, 4
      %v539 = vrot.slane %v246, 4
      %v540 = vsel %vm532, %v538, %v539
      %v541 = vrot.slane %v247, 4
      %v542 = vsel %vm532, %v539, %v541
      %v543 = vrot.slane %v249, 4
      %v544 = vrot.slane %v250, 4
      %v545 = vsel %vm532, %v543, %v544
      %v546 = vrot.slane %v251, 4
      %v547 = vsel %vm532, %v544, %v546
      %v548 = vrot.slane %v253, 4
      %v549 = vrot.slane %v254, 4
      %v550 = vsel %vm532, %v548, %v549
      %v551 = vrot.slane %v255, 4
      %v552 = vsel %vm532, %v549, %v551
      %v553 = vrot.slane %v257, 4
      %v554 = vrot.slane %v258, 4
      %v555 = vsel %vm532, %v553, %v554
      %v556 = vrot.slane %v259, 4
      %v557 = vsel %vm532, %v554, %v556
      %v558 = vrot.slane %v261, 4
      %v559 = vrot.slane %v262, 4
      %v560 = vsel %vm532, %v558, %v559
      %v561 = vrot.slane %v263, 4
      %v562 = vsel %vm532, %v559, %v561
      %v563 = vrot.slane %v265, 4
      %v564 = vrot.slane %v266, 4
      %v565 = vsel %vm532, %v563, %v564
      %v566 = vrot.slane %v267, 4
      %v567 = vsel %vm532, %v564, %v566
      %v568 = vrot.slane %v269, 4
      %v569 = vrot.slane %v270, 4
      %v570 = vsel %vm532, %v568, %v569
      %v571 = vrot.slane %v271, 4
      %v572 = vsel %vm532, %v569, %v571
      %v573 = vrot.slane %v273, 4
      %v574 = vrot.slane %v274, 4
      %v575 = vsel %vm532, %v573, %v574
      %v576 = vrot.slane %v275, 4
      %v577 = vsel %vm532, %v574, %v576
      %v578 = vrot.slane %v277, 4
      %v579 = vrot.slane %v278, 4
      %v580 = vsel %vm532, %v578, %v579
      %v581 = vrot.slane %v279, 4
      %v582 = vsel %vm532, %v579, %v581
      %v583 = vrot.slane %v281, 4
      %v584 = vrot.slane %v282, 4
      %v585 = vsel %vm532, %v583, %v584
      %v586 = vrot.slane %v283, 4
      %v587 = vsel %vm532, %v584, %v586
      %v588 = vrot.slane %v285, 4
      %v589 = vrot.slane %v286, 4
      %v590 = vsel %vm532, %v588, %v589
      %v591 = vrot.slane %v287, 4
      %v592 = vsel %vm532, %v589, %v591
      %v593 = vrot.slane %v289, 4
      %v594 = vrot.slane %v290, 4
      %v595 = vsel %vm532, %v593, %v594
      %v596 = vrot.slane %v291, 4
      %v597 = vsel %vm532, %v594, %v596
      %v598 = vrot.slane %v293, 4
      %v599 = vrot.slane %v294, 4
      %v600 = vsel %vm532, %v598, %v599
      %v601 = vrot.slane %v295, 4
      %v602 = vsel %vm532, %v599, %v601
      %v603 = vrot.slane %v297, 4
      %v604 = vrot.slane %v298, 4
      %v605 = vsel %vm532, %v603, %v604
      %v606 = vrot.slane %v299, 4
      %v607 = vsel %vm532, %v604, %v606
      %v608 = vrot.slane %v301, 4
      %v609 = vrot.slane %v302, 4
      %v610 = vsel %vm532, %v608, %v609
      %v611 = vrot.slane %v303, 4
      %v612 = vsel %vm532, %v609, %v611
      %v645 = vrot.slane %v241, 5
      %v646 = vrot.slane %v242, 5
      %v647 = vsel %vm377, %v645, %v646
      %v648 = vrot.slane %v243, 5
      %v649 = vsel %vm377, %v646, %v648
      %vm650 = vcmask 1041408
      %v651 = vrot.slane %v241, 6
      %v652 = vrot.slane %v242, 6
      %v653 = vsel %vm650, %v651, %v652
      %v654 = vrot.slane %v243, 6
      %v655 = vsel %vm650, %v652, %v654
      %v656 = vrot.slane %v245, 6
      %v657 = vrot.slane %v246, 6
      %v658 = vsel %vm650, %v656, %v657
      %v659 = vrot.slane %v247, 6
      %v660 = vsel %vm650, %v657, %v659
      %v661 = vrot.slane %v249, 6
      %v662 = vrot.slane %v250, 6
      %v663 = vsel %vm650, %v661, %v662
      %v664 = vrot.slane %v251, 6
      %v665 = vsel %vm650, %v662, %v664
      %v666 = vrot.slane %v253, 6
      %v667 = vrot.slane %v254, 6
      %v668 = vsel %vm650, %v666, %v667
      %v669 = vrot.slane %v255, 6
      %v670 = vsel %vm650, %v667, %v669
      %v671 = vrot.slane %v257, 6
      %v672 = vrot.slane %v258, 6
      %v673 = vsel %vm650, %v671, %v672
      %v674 = vrot.slane %v259, 6
      %v675 = vsel %vm650, %v672, %v674
      %v676 = vrot.slane %v261, 6
      %v677 = vrot.slane %v262, 6
      %v678 = vsel %vm650, %v676, %v677
      %v679 = vrot.slane %v263, 6
      %v680 = vsel %vm650, %v677, %v679
      %v681 = vrot.slane %v265, 6
      %v682 = vrot.slane %v266, 6
      %v683 = vsel %vm650, %v681, %v682
      %v684 = vrot.slane %v267, 6
      %v685 = vsel %vm650, %v682, %v684
      %v686 = vrot.slane %v269, 6
      %v687 = vrot.slane %v270, 6
      %v688 = vsel %vm650, %v686, %v687
      %v689 = vrot.slane %v271, 6
      %v690 = vsel %vm650, %v687, %v689
      %v691 = vrot.slane %v273, 6
      %v692 = vrot.slane %v274, 6
      %v693 = vsel %vm650, %v691, %v692
      %v694 = vrot.slane %v275, 6
      %v695 = vsel %vm650, %v692, %v694
      %v696 = vrot.slane %v277, 6
      %v697 = vrot.slane %v278, 6
      %v698 = vsel %vm650, %v696, %v697
      %v699 = vrot.slane %v279, 6
      %v700 = vsel %vm650, %v697, %v699
      %v701 = vrot.slane %v281, 6
      %v702 = vrot.slane %v282, 6
      %v703 = vsel %vm650, %v701, %v702
      %v704 = vrot.slane %v283, 6
      %v705 = vsel %vm650, %v702, %v704
      %v706 = vrot.slane %v285, 6
      %v707 = vrot.slane %v286, 6
      %v708 = vsel %vm650, %v706, %v707
      %v709 = vrot.slane %v287, 6
      %v710 = vsel %vm650, %v707, %v709
      %v711 = vrot.slane %v289, 6
      %v712 = vrot.slane %v290, 6
      %v713 = vsel %vm650, %v711, %v712
      %v714 = vrot.slane %v291, 6
      %v715 = vsel %vm650, %v712, %v714
      %v716 = vrot.slane %v293, 6
      %v717 = vrot.slane %v294, 6
      %v718 = vsel %vm650, %v716, %v717
      %v719 = vrot.slane %v295, 6
      %v720 = vsel %vm650, %v717, %v719
      %v721 = vrot.slane %v297, 6
      %v722 = vrot.slane %v298, 6
      %v723 = vsel %vm650, %v721, %v722
      %v724 = vrot.slane %v299, 6
      %v725 = vsel %vm650, %v722, %v724
      %v726 = vrot.slane %v301, 6
      %v727 = vrot.slane %v302, 6
      %v728 = vsel %vm650, %v726, %v727
      %v729 = vrot.slane %v303, 6
      %v730 = vsel %vm650, %v727, %v729
      %v731 = vrot.slane %v305, 4
      %v732 = vrot.slane %v306, 4
      %v733 = vsel %vm532, %v731, %v732
      %v734 = vrot.slane %v307, 4
      %v735 = vsel %vm532, %v732, %v734
      %v736 = vrot.slane %v305, 6
      %v737 = vrot.slane %v306, 6
      %v738 = vsel %vm650, %v736, %v737
      %v739 = vrot.slane %v307, 6
      %v740 = vsel %vm650, %v737, %v739
      %v744 = vrot.slane %v309, 4
      %v745 = vrot.slane %v310, 4
      %v746 = vsel %vm532, %v744, %v745
      %v747 = vrot.slane %v311, 4
      %v748 = vsel %vm532, %v745, %v747
      %v749 = vrot.slane %v309, 5
      %v750 = vrot.slane %v310, 5
      %v751 = vsel %vm377, %v749, %v750
      %v752 = vrot.slane %v311, 5
      %v753 = vsel %vm377, %v750, %v752
      %v754 = vrot.slane %v309, 6
      %v755 = vrot.slane %v310, 6
      %v756 = vsel %vm650, %v754, %v755
      %v757 = vrot.slane %v311, 6
      %v758 = vsel %vm650, %v755, %v757
      %759 = vrot.lane.b32.xlu0 %v647, 32
      %v760 = vpop.permute.xlu0 %759
      %761 = vrot.lane.b32.xlu0 %v649, 32
      %v762 = vpop.permute.xlu0 %761
      %763 = vrot.lane.b32.xlu0 %v380, 32
      %v764 = vpop.permute.xlu0 %763
      %765 = vrot.lane.b32.xlu0 %v382, 32
      %v766 = vpop.permute.xlu0 %765
      %767 = vrot.lane.b32.xlu0 %v385, 32
      %v768 = vpop.permute.xlu0 %767
      %769 = vrot.lane.b32.xlu0 %v387, 32
      %v770 = vpop.permute.xlu0 %769
      %771 = vrot.lane.b32.xlu0 %v390, 32
      %v772 = vpop.permute.xlu0 %771
      %773 = vrot.lane.b32.xlu0 %v392, 32
      %v774 = vpop.permute.xlu0 %773
      %775 = vrot.lane.b32.xlu0 %v395, 32
      %v776 = vpop.permute.xlu0 %775
      %777 = vrot.lane.b32.xlu0 %v397, 32
      %v778 = vpop.permute.xlu0 %777
      %779 = vrot.lane.b32.xlu0 %v400, 32
      %v780 = vpop.permute.xlu0 %779
      %781 = vrot.lane.b32.xlu0 %v402, 32
      %v782 = vpop.permute.xlu0 %781
      %783 = vrot.lane.b32.xlu0 %v405, 32
      %v784 = vpop.permute.xlu0 %783
      %785 = vrot.lane.b32.xlu0 %v407, 32
      %v786 = vpop.permute.xlu0 %785
      %787 = vrot.lane.b32.xlu0 %v410, 32
      %v788 = vpop.permute.xlu0 %787
      %789 = vrot.lane.b32.xlu0 %v412, 32
      %v790 = vpop.permute.xlu0 %789
      %791 = vrot.lane.b32.xlu0 %v415, 32
      %v792 = vpop.permute.xlu0 %791
      %793 = vrot.lane.b32.xlu0 %v417, 32
      %v794 = vpop.permute.xlu0 %793
      %795 = vrot.lane.b32.xlu0 %v420, 32
      %v796 = vpop.permute.xlu0 %795
      %797 = vrot.lane.b32.xlu0 %v422, 32
      %v798 = vpop.permute.xlu0 %797
      %799 = vrot.lane.b32.xlu0 %v425, 32
      %v800 = vpop.permute.xlu0 %799
      %801 = vrot.lane.b32.xlu0 %v427, 32
      %v802 = vpop.permute.xlu0 %801
      %803 = vrot.lane.b32.xlu0 %v430, 32
      %v804 = vpop.permute.xlu0 %803
      %805 = vrot.lane.b32.xlu0 %v432, 32
      %v806 = vpop.permute.xlu0 %805
      %807 = vrot.lane.b32.xlu0 %v435, 32
      %v808 = vpop.permute.xlu0 %807
      %809 = vrot.lane.b32.xlu0 %v437, 32
      %v810 = vpop.permute.xlu0 %809
      %811 = vrot.lane.b32.xlu0 %v440, 32
      %v812 = vpop.permute.xlu0 %811
      %813 = vrot.lane.b32.xlu0 %v442, 32
      %v814 = vpop.permute.xlu0 %813
      %815 = vrot.lane.b32.xlu0 %v445, 32
      %v816 = vpop.permute.xlu0 %815
      %817 = vrot.lane.b32.xlu0 %v447, 32
      %v818 = vpop.permute.xlu0 %817
      %819 = vrot.lane.b32.xlu0 %v450, 32
      %v820 = vpop.permute.xlu0 %819
      %821 = vrot.lane.b32.xlu0 %v452, 32
      %v822 = vpop.permute.xlu0 %821
      %855 = vrot.lane.b32.xlu0 %v653, 64
      %v856 = vpop.permute.xlu0 %855
      %857 = vrot.lane.b32.xlu0 %v655, 64
      %v858 = vpop.permute.xlu0 %857
      %859 = vrot.lane.b32.xlu0 %v658, 64
      %v860 = vpop.permute.xlu0 %859
      %861 = vrot.lane.b32.xlu0 %v660, 64
      %v862 = vpop.permute.xlu0 %861
      %863 = vrot.lane.b32.xlu0 %v663, 64
      %v864 = vpop.permute.xlu0 %863
      %865 = vrot.lane.b32.xlu0 %v665, 64
      %v866 = vpop.permute.xlu0 %865
      %867 = vrot.lane.b32.xlu0 %v668, 64
      %v868 = vpop.permute.xlu0 %867
      %869 = vrot.lane.b32.xlu0 %v670, 64
      %v870 = vpop.permute.xlu0 %869
      %871 = vrot.lane.b32.xlu0 %v673, 64
      %v872 = vpop.permute.xlu0 %871
      %873 = vrot.lane.b32.xlu0 %v675, 64
      %v874 = vpop.permute.xlu0 %873
      %875 = vrot.lane.b32.xlu0 %v678, 64
      %v876 = vpop.permute.xlu0 %875
      %877 = vrot.lane.b32.xlu0 %v680, 64
      %v878 = vpop.permute.xlu0 %877
      %879 = vrot.lane.b32.xlu0 %v683, 64
      %v880 = vpop.permute.xlu0 %879
      %881 = vrot.lane.b32.xlu0 %v685, 64
      %v882 = vpop.permute.xlu0 %881
      %883 = vrot.lane.b32.xlu0 %v688, 64
      %v884 = vpop.permute.xlu0 %883
      %885 = vrot.lane.b32.xlu0 %v690, 64
      %v886 = vpop.permute.xlu0 %885
      %887 = vrot.lane.b32.xlu0 %v693, 64
      %v888 = vpop.permute.xlu0 %887
      %889 = vrot.lane.b32.xlu0 %v695, 64
      %v890 = vpop.permute.xlu0 %889
      %891 = vrot.lane.b32.xlu0 %v698, 64
      %v892 = vpop.permute.xlu0 %891
      %893 = vrot.lane.b32.xlu0 %v700, 64
      %v894 = vpop.permute.xlu0 %893
      %895 = vrot.lane.b32.xlu0 %v703, 64
      %v896 = vpop.permute.xlu0 %895
      %897 = vrot.lane.b32.xlu0 %v705, 64
      %v898 = vpop.permute.xlu0 %897
      %899 = vrot.lane.b32.xlu0 %v708, 64
      %v900 = vpop.permute.xlu0 %899
      %901 = vrot.lane.b32.xlu0 %v710, 64
      %v902 = vpop.permute.xlu0 %901
      %903 = vrot.lane.b32.xlu0 %v713, 64
      %v904 = vpop.permute.xlu0 %903
      %905 = vrot.lane.b32.xlu0 %v715, 64
      %v906 = vpop.permute.xlu0 %905
      %907 = vrot.lane.b32.xlu0 %v718, 64
      %v908 = vpop.permute.xlu0 %907
      %909 = vrot.lane.b32.xlu0 %v720, 64
      %v910 = vpop.permute.xlu0 %909
      %911 = vrot.lane.b32.xlu0 %v723, 64
      %v912 = vpop.permute.xlu0 %911
      %913 = vrot.lane.b32.xlu0 %v725, 64
      %v914 = vpop.permute.xlu0 %913
      %915 = vrot.lane.b32.xlu0 %v728, 64
      %v916 = vpop.permute.xlu0 %915
      %917 = vrot.lane.b32.xlu0 %v730, 64
      %v918 = vpop.permute.xlu0 %917
      %951 = vrot.lane.b32.xlu0 %v540, 96
      %v952 = vpop.permute.xlu0 %951
      %953 = vrot.lane.b32.xlu0 %v542, 96
      %v954 = vpop.permute.xlu0 %953
      %955 = vrot.lane.b32.xlu0 %v545, 96
      %v956 = vpop.permute.xlu0 %955
      %957 = vrot.lane.b32.xlu0 %v547, 96
      %v958 = vpop.permute.xlu0 %957
      %959 = vrot.lane.b32.xlu0 %v550, 96
      %v960 = vpop.permute.xlu0 %959
      %961 = vrot.lane.b32.xlu0 %v552, 96
      %v962 = vpop.permute.xlu0 %961
      %963 = vrot.lane.b32.xlu0 %v555, 96
      %v964 = vpop.permute.xlu0 %963
      %965 = vrot.lane.b32.xlu0 %v557, 96
      %v966 = vpop.permute.xlu0 %965
      %967 = vrot.lane.b32.xlu0 %v560, 96
      %v968 = vpop.permute.xlu0 %967
      %969 = vrot.lane.b32.xlu0 %v562, 96
      %v970 = vpop.permute.xlu0 %969
      %971 = vrot.lane.b32.xlu0 %v565, 96
      %v972 = vpop.permute.xlu0 %971
      %973 = vrot.lane.b32.xlu0 %v567, 96
      %v974 = vpop.permute.xlu0 %973
      %975 = vrot.lane.b32.xlu0 %v570, 96
      %v976 = vpop.permute.xlu0 %975
      %977 = vrot.lane.b32.xlu0 %v572, 96
      %v978 = vpop.permute.xlu0 %977
      %979 = vrot.lane.b32.xlu0 %v575, 96
      %v980 = vpop.permute.xlu0 %979
      %981 = vrot.lane.b32.xlu0 %v577, 96
      %v982 = vpop.permute.xlu0 %981
      %983 = vrot.lane.b32.xlu0 %v580, 96
      %v984 = vpop.permute.xlu0 %983
      %985 = vrot.lane.b32.xlu0 %v582, 96
      %v986 = vpop.permute.xlu0 %985
      %987 = vrot.lane.b32.xlu0 %v585, 96
      %v988 = vpop.permute.xlu0 %987
      %989 = vrot.lane.b32.xlu0 %v587, 96
      %v990 = vpop.permute.xlu0 %989
      %991 = vrot.lane.b32.xlu0 %v590, 96
      %v992 = vpop.permute.xlu0 %991
      %993 = vrot.lane.b32.xlu0 %v592, 96
      %v994 = vpop.permute.xlu0 %993
      %995 = vrot.lane.b32.xlu0 %v595, 96
      %v996 = vpop.permute.xlu0 %995
      %997 = vrot.lane.b32.xlu0 %v597, 96
      %v998 = vpop.permute.xlu0 %997
      %999 = vrot.lane.b32.xlu0 %v600, 96
      %v1000 = vpop.permute.xlu0 %999
      %1001 = vrot.lane.b32.xlu0 %v602, 96
      %v1002 = vpop.permute.xlu0 %1001
      %1003 = vrot.lane.b32.xlu0 %v605, 96
      %v1004 = vpop.permute.xlu0 %1003
      %1005 = vrot.lane.b32.xlu0 %v607, 96
      %v1006 = vpop.permute.xlu0 %1005
      %1007 = vrot.lane.b32.xlu0 %v610, 96
      %v1008 = vpop.permute.xlu0 %1007
      %1009 = vrot.lane.b32.xlu0 %v612, 96
      %v1010 = vpop.permute.xlu0 %1009
      %1011 = vrot.lane.b32.xlu0 %v733, 96
      %v1012 = vpop.permute.xlu0 %1011
      %1013 = vrot.lane.b32.xlu0 %v735, 96
      %v1014 = vpop.permute.xlu0 %1013
      %1047 = vrot.lane.b32.xlu0 %v658, 32
      %v1048 = vpop.permute.xlu0 %1047
      %1049 = vrot.lane.b32.xlu0 %v660, 32
      %v1050 = vpop.permute.xlu0 %1049
      %1051 = vrot.lane.b32.xlu0 %v663, 32
      %v1052 = vpop.permute.xlu0 %1051
      %1053 = vrot.lane.b32.xlu0 %v665, 32
      %v1054 = vpop.permute.xlu0 %1053
      %1055 = vrot.lane.b32.xlu0 %v668, 32
      %v1056 = vpop.permute.xlu0 %1055
      %1057 = vrot.lane.b32.xlu0 %v670, 32
      %v1058 = vpop.permute.xlu0 %1057
      %1059 = vrot.lane.b32.xlu0 %v673, 32
      %v1060 = vpop.permute.xlu0 %1059
      %1061 = vrot.lane.b32.xlu0 %v675, 32
      %v1062 = vpop.permute.xlu0 %1061
      %1063 = vrot.lane.b32.xlu0 %v678, 32
      %v1064 = vpop.permute.xlu0 %1063
      %1065 = vrot.lane.b32.xlu0 %v680, 32
      %v1066 = vpop.permute.xlu0 %1065
      %1067 = vrot.lane.b32.xlu0 %v683, 32
      %v1068 = vpop.permute.xlu0 %1067
      %1069 = vrot.lane.b32.xlu0 %v685, 32
      %v1070 = vpop.permute.xlu0 %1069
      %1071 = vrot.lane.b32.xlu0 %v688, 32
      %v1072 = vpop.permute.xlu0 %1071
      %1073 = vrot.lane.b32.xlu0 %v690, 32
      %v1074 = vpop.permute.xlu0 %1073
      %1075 = vrot.lane.b32.xlu0 %v693, 32
      %v1076 = vpop.permute.xlu0 %1075
      %1077 = vrot.lane.b32.xlu0 %v695, 32
      %v1078 = vpop.permute.xlu0 %1077
      %1079 = vrot.lane.b32.xlu0 %v698, 32
      %v1080 = vpop.permute.xlu0 %1079
      %1081 = vrot.lane.b32.xlu0 %v700, 32
      %v1082 = vpop.permute.xlu0 %1081
      %1083 = vrot.lane.b32.xlu0 %v703, 32
      %v1084 = vpop.permute.xlu0 %1083
      %1085 = vrot.lane.b32.xlu0 %v705, 32
      %v1086 = vpop.permute.xlu0 %1085
      %1087 = vrot.lane.b32.xlu0 %v708, 32
      %v1088 = vpop.permute.xlu0 %1087
      %1089 = vrot.lane.b32.xlu0 %v710, 32
      %v1090 = vpop.permute.xlu0 %1089
      %1091 = vrot.lane.b32.xlu0 %v713, 32
      %v1092 = vpop.permute.xlu0 %1091
      %1093 = vrot.lane.b32.xlu0 %v715, 32
      %v1094 = vpop.permute.xlu0 %1093
      %1095 = vrot.lane.b32.xlu0 %v718, 32
      %v1096 = vpop.permute.xlu0 %1095
      %1097 = vrot.lane.b32.xlu0 %v720, 32
      %v1098 = vpop.permute.xlu0 %1097
      %1099 = vrot.lane.b32.xlu0 %v723, 32
      %v1100 = vpop.permute.xlu0 %1099
      %1101 = vrot.lane.b32.xlu0 %v725, 32
      %v1102 = vpop.permute.xlu0 %1101
      %1103 = vrot.lane.b32.xlu0 %v728, 32
      %v1104 = vpop.permute.xlu0 %1103
      %1105 = vrot.lane.b32.xlu0 %v730, 32
      %v1106 = vpop.permute.xlu0 %1105
      %1107 = vrot.lane.b32.xlu0 %v738, 32
      %v1108 = vpop.permute.xlu0 %1107
      %1109 = vrot.lane.b32.xlu0 %v740, 32
      %v1110 = vpop.permute.xlu0 %1109
      %1143 = vrot.lane.b32.xlu0 %v545, 64
      %v1144 = vpop.permute.xlu0 %1143
      %1145 = vrot.lane.b32.xlu0 %v547, 64
      %v1146 = vpop.permute.xlu0 %1145
      %1147 = vrot.lane.b32.xlu0 %v550, 64
      %v1148 = vpop.permute.xlu0 %1147
      %1149 = vrot.lane.b32.xlu0 %v552, 64
      %v1150 = vpop.permute.xlu0 %1149
      %1151 = vrot.lane.b32.xlu0 %v555, 64
      %v1152 = vpop.permute.xlu0 %1151
      %1153 = vrot.lane.b32.xlu0 %v557, 64
      %v1154 = vpop.permute.xlu0 %1153
      %1155 = vrot.lane.b32.xlu0 %v560, 64
      %v1156 = vpop.permute.xlu0 %1155
      %1157 = vrot.lane.b32.xlu0 %v562, 64
      %v1158 = vpop.permute.xlu0 %1157
      %1159 = vrot.lane.b32.xlu0 %v565, 64
      %v1160 = vpop.permute.xlu0 %1159
      %1161 = vrot.lane.b32.xlu0 %v567, 64
      %v1162 = vpop.permute.xlu0 %1161
      %1163 = vrot.lane.b32.xlu0 %v570, 64
      %v1164 = vpop.permute.xlu0 %1163
      %1165 = vrot.lane.b32.xlu0 %v572, 64
      %v1166 = vpop.permute.xlu0 %1165
      %1167 = vrot.lane.b32.xlu0 %v575, 64
      %v1168 = vpop.permute.xlu0 %1167
      %1169 = vrot.lane.b32.xlu0 %v577, 64
      %v1170 = vpop.permute.xlu0 %1169
      %1171 = vrot.lane.b32.xlu0 %v580, 64
      %v1172 = vpop.permute.xlu0 %1171
      %1173 = vrot.lane.b32.xlu0 %v582, 64
      %v1174 = vpop.permute.xlu0 %1173
      %1175 = vrot.lane.b32.xlu0 %v585, 64
      %v1176 = vpop.permute.xlu0 %1175
      %1177 = vrot.lane.b32.xlu0 %v587, 64
      %v1178 = vpop.permute.xlu0 %1177
      %1179 = vrot.lane.b32.xlu0 %v590, 64
      %v1180 = vpop.permute.xlu0 %1179
      %1181 = vrot.lane.b32.xlu0 %v592, 64
      %v1182 = vpop.permute.xlu0 %1181
      %1183 = vrot.lane.b32.xlu0 %v595, 64
      %v1184 = vpop.permute.xlu0 %1183
      %1185 = vrot.lane.b32.xlu0 %v597, 64
      %v1186 = vpop.permute.xlu0 %1185
      %1187 = vrot.lane.b32.xlu0 %v600, 64
      %v1188 = vpop.permute.xlu0 %1187
      %1189 = vrot.lane.b32.xlu0 %v602, 64
      %v1190 = vpop.permute.xlu0 %1189
      %1191 = vrot.lane.b32.xlu0 %v605, 64
      %v1192 = vpop.permute.xlu0 %1191
      %1193 = vrot.lane.b32.xlu0 %v607, 64
      %v1194 = vpop.permute.xlu0 %1193
      %1195 = vrot.lane.b32.xlu0 %v610, 64
      %v1196 = vpop.permute.xlu0 %1195
      %1197 = vrot.lane.b32.xlu0 %v612, 64
      %v1198 = vpop.permute.xlu0 %1197
      %1199 = vrot.lane.b32.xlu0 %v733, 64
      %v1200 = vpop.permute.xlu0 %1199
      %1201 = vrot.lane.b32.xlu0 %v735, 64
      %v1202 = vpop.permute.xlu0 %1201
      %1203 = vrot.lane.b32.xlu0 %v746, 64
      %v1204 = vpop.permute.xlu0 %1203
      %1205 = vrot.lane.b32.xlu0 %v748, 64
      %v1206 = vpop.permute.xlu0 %1205
      %1239 = vrot.lane.b32.xlu0 %v385, 96
      %v1240 = vpop.permute.xlu0 %1239
      %1241 = vrot.lane.b32.xlu0 %v387, 96
      %v1242 = vpop.permute.xlu0 %1241
      %1243 = vrot.lane.b32.xlu0 %v390, 96
      %v1244 = vpop.permute.xlu0 %1243
      %1245 = vrot.lane.b32.xlu0 %v392, 96
      %v1246 = vpop.permute.xlu0 %1245
      %1247 = vrot.lane.b32.xlu0 %v395, 96
      %v1248 = vpop.permute.xlu0 %1247
      %1249 = vrot.lane.b32.xlu0 %v397, 96
      %v1250 = vpop.permute.xlu0 %1249
      %1251 = vrot.lane.b32.xlu0 %v400, 96
      %v1252 = vpop.permute.xlu0 %1251
      %1253 = vrot.lane.b32.xlu0 %v402, 96
      %v1254 = vpop.permute.xlu0 %1253
      %1255 = vrot.lane.b32.xlu0 %v405, 96
      %v1256 = vpop.permute.xlu0 %1255
      %1257 = vrot.lane.b32.xlu0 %v407, 96
      %v1258 = vpop.permute.xlu0 %1257
      %1259 = vrot.lane.b32.xlu0 %v410, 96
      %v1260 = vpop.permute.xlu0 %1259
      %1261 = vrot.lane.b32.xlu0 %v412, 96
      %v1262 = vpop.permute.xlu0 %1261
      %1263 = vrot.lane.b32.xlu0 %v415, 96
      %v1264 = vpop.permute.xlu0 %1263
      %1265 = vrot.lane.b32.xlu0 %v417, 96
      %v1266 = vpop.permute.xlu0 %1265
      %1267 = vrot.lane.b32.xlu0 %v420, 96
      %v1268 = vpop.permute.xlu0 %1267
      %1269 = vrot.lane.b32.xlu0 %v422, 96
      %v1270 = vpop.permute.xlu0 %1269
      %1271 = vrot.lane.b32.xlu0 %v425, 96
      %v1272 = vpop.permute.xlu0 %1271
      %1273 = vrot.lane.b32.xlu0 %v427, 96
      %v1274 = vpop.permute.xlu0 %1273
      %1275 = vrot.lane.b32.xlu0 %v430, 96
      %v1276 = vpop.permute.xlu0 %1275
      %1277 = vrot.lane.b32.xlu0 %v432, 96
      %v1278 = vpop.permute.xlu0 %1277
      %1279 = vrot.lane.b32.xlu0 %v435, 96
      %v1280 = vpop.permute.xlu0 %1279
      %1281 = vrot.lane.b32.xlu0 %v437, 96
      %v1282 = vpop.permute.xlu0 %1281
      %1283 = vrot.lane.b32.xlu0 %v440, 96
      %v1284 = vpop.permute.xlu0 %1283
      %1285 = vrot.lane.b32.xlu0 %v442, 96
      %v1286 = vpop.permute.xlu0 %1285
      %1287 = vrot.lane.b32.xlu0 %v445, 96
      %v1288 = vpop.permute.xlu0 %1287
      %1289 = vrot.lane.b32.xlu0 %v447, 96
      %v1290 = vpop.permute.xlu0 %1289
      %1291 = vrot.lane.b32.xlu0 %v450, 96
      %v1292 = vpop.permute.xlu0 %1291
      %1293 = vrot.lane.b32.xlu0 %v452, 96
      %v1294 = vpop.permute.xlu0 %1293
      %1295 = vrot.lane.b32.xlu0 %v455, 96
      %v1296 = vpop.permute.xlu0 %1295
      %1297 = vrot.lane.b32.xlu0 %v457, 96
      %v1298 = vpop.permute.xlu0 %1297
      %1299 = vrot.lane.b32.xlu0 %v751, 96
      %v1300 = vpop.permute.xlu0 %1299
      %1301 = vrot.lane.b32.xlu0 %v753, 96
      %v1302 = vpop.permute.xlu0 %1301
      %vm1335 = vcmask 261120
      %v1336 = vsel %vm1335, %v535, %v760
      %v1337 = vsel %vm1335, %v537, %v762
      %v1338 = vsel %vm1335, %v540, %v764
      %v1339 = vsel %vm1335, %v542, %v766
      %v1340 = vsel %vm1335, %v545, %v768
      %v1341 = vsel %vm1335, %v547, %v770
      %v1342 = vsel %vm1335, %v550, %v772
      %v1343 = vsel %vm1335, %v552, %v774
      %v1344 = vsel %vm1335, %v555, %v776
      %v1345 = vsel %vm1335, %v557, %v778
      %v1346 = vsel %vm1335, %v560, %v780
      %v1347 = vsel %vm1335, %v562, %v782
      %v1348 = vsel %vm1335, %v565, %v784
      %v1349 = vsel %vm1335, %v567, %v786
      %v1350 = vsel %vm1335, %v570, %v788
      %v1351 = vsel %vm1335, %v572, %v790
      %v1352 = vsel %vm1335, %v575, %v792
      %v1353 = vsel %vm1335, %v577, %v794
      %v1354 = vsel %vm1335, %v580, %v796
      %v1355 = vsel %vm1335, %v582, %v798
      %v1356 = vsel %vm1335, %v585, %v800
      %v1357 = vsel %vm1335, %v587, %v802
      %v1358 = vsel %vm1335, %v590, %v804
      %v1359 = vsel %vm1335, %v592, %v806
      %v1360 = vsel %vm1335, %v595, %v808
      %v1361 = vsel %vm1335, %v597, %v810
      %v1362 = vsel %vm1335, %v600, %v812
      %v1363 = vsel %vm1335, %v602, %v814
      %v1364 = vsel %vm1335, %v605, %v816
      %v1365 = vsel %vm1335, %v607, %v818
      %v1366 = vsel %vm1335, %v610, %v820
      %v1367 = vsel %vm1335, %v612, %v822
      %vm1368 = vcmask 523264
      %v1369 = vsel %vm1368, %v1336, %v856
      %v1370 = vsel %vm1368, %v1337, %v858
      %v1371 = vsel %vm1368, %v1338, %v860
      %v1372 = vsel %vm1368, %v1339, %v862
      %v1373 = vsel %vm1368, %v1340, %v864
      %v1374 = vsel %vm1368, %v1341, %v866
      %v1375 = vsel %vm1368, %v1342, %v868
      %v1376 = vsel %vm1368, %v1343, %v870
      %v1377 = vsel %vm1368, %v1344, %v872
      %v1378 = vsel %vm1368, %v1345, %v874
      %v1379 = vsel %vm1368, %v1346, %v876
      %v1380 = vsel %vm1368, %v1347, %v878
      %v1381 = vsel %vm1368, %v1348, %v880
      %v1382 = vsel %vm1368, %v1349, %v882
      %v1383 = vsel %vm1368, %v1350, %v884
      %v1384 = vsel %vm1368, %v1351, %v886
      %v1385 = vsel %vm1368, %v1352, %v888
      %v1386 = vsel %vm1368, %v1353, %v890
      %v1387 = vsel %vm1368, %v1354, %v892
      %v1388 = vsel %vm1368, %v1355, %v894
      %v1389 = vsel %vm1368, %v1356, %v896
      %v1390 = vsel %vm1368, %v1357, %v898
      %v1391 = vsel %vm1368, %v1358, %v900
      %v1392 = vsel %vm1368, %v1359, %v902
      %v1393 = vsel %vm1368, %v1360, %v904
      %v1394 = vsel %vm1368, %v1361, %v906
      %v1395 = vsel %vm1368, %v1362, %v908
      %v1396 = vsel %vm1368, %v1363, %v910
      %v1397 = vsel %vm1368, %v1364, %v912
      %v1398 = vsel %vm1368, %v1365, %v914
      %v1399 = vsel %vm1368, %v1366, %v916
      %v1400 = vsel %vm1368, %v1367, %v918
      %vm1401 = vcmask 785408
      %v1402 = vsel %vm1401, %v1369, %v952
      %v1403 = vsel %vm1401, %v1370, %v954
      %v1404 = vsel %vm1401, %v1371, %v956
      %v1405 = vsel %vm1401, %v1372, %v958
      %v1406 = vsel %vm1401, %v1373, %v960
      %v1407 = vsel %vm1401, %v1374, %v962
      %v1408 = vsel %vm1401, %v1375, %v964
      %v1409 = vsel %vm1401, %v1376, %v966
      %v1410 = vsel %vm1401, %v1377, %v968
      %v1411 = vsel %vm1401, %v1378, %v970
      %v1412 = vsel %vm1401, %v1379, %v972
      %v1413 = vsel %vm1401, %v1380, %v974
      %v1414 = vsel %vm1401, %v1381, %v976
      %v1415 = vsel %vm1401, %v1382, %v978
      %v1416 = vsel %vm1401, %v1383, %v980
      %v1417 = vsel %vm1401, %v1384, %v982
      %v1418 = vsel %vm1401, %v1385, %v984
      %v1419 = vsel %vm1401, %v1386, %v986
      %v1420 = vsel %vm1401, %v1387, %v988
      %v1421 = vsel %vm1401, %v1388, %v990
      %v1422 = vsel %vm1401, %v1389, %v992
      %v1423 = vsel %vm1401, %v1390, %v994
      %v1424 = vsel %vm1401, %v1391, %v996
      %v1425 = vsel %vm1401, %v1392, %v998
      %v1426 = vsel %vm1401, %v1393, %v1000
      %v1427 = vsel %vm1401, %v1394, %v1002
      %v1428 = vsel %vm1401, %v1395, %v1004
      %v1429 = vsel %vm1401, %v1396, %v1006
      %v1430 = vsel %vm1401, %v1397, %v1008
      %v1431 = vsel %vm1401, %v1398, %v1010
      %v1432 = vsel %vm1401, %v1399, %v1012
      %v1433 = vsel %vm1401, %v1400, %v1014
      %v1434 = vsel %vm1335, %v380, %v1048
      %v1435 = vsel %vm1335, %v382, %v1050
      %v1436 = vsel %vm1335, %v385, %v1052
      %v1437 = vsel %vm1335, %v387, %v1054
      %v1438 = vsel %vm1335, %v390, %v1056
      %v1439 = vsel %vm1335, %v392, %v1058
      %v1440 = vsel %vm1335, %v395, %v1060
      %v1441 = vsel %vm1335, %v397, %v1062
      %v1442 = vsel %vm1335, %v400, %v1064
      %v1443 = vsel %vm1335, %v402, %v1066
      %v1444 = vsel %vm1335, %v405, %v1068
      %v1445 = vsel %vm1335, %v407, %v1070
      %v1446 = vsel %vm1335, %v410, %v1072
      %v1447 = vsel %vm1335, %v412, %v1074
      %v1448 = vsel %vm1335, %v415, %v1076
      %v1449 = vsel %vm1335, %v417, %v1078
      %v1450 = vsel %vm1335, %v420, %v1080
      %v1451 = vsel %vm1335, %v422, %v1082
      %v1452 = vsel %vm1335, %v425, %v1084
      %v1453 = vsel %vm1335, %v427, %v1086
      %v1454 = vsel %vm1335, %v430, %v1088
      %v1455 = vsel %vm1335, %v432, %v1090
      %v1456 = vsel %vm1335, %v435, %v1092
      %v1457 = vsel %vm1335, %v437, %v1094
      %v1458 = vsel %vm1335, %v440, %v1096
      %v1459 = vsel %vm1335, %v442, %v1098
      %v1460 = vsel %vm1335, %v445, %v1100
      %v1461 = vsel %vm1335, %v447, %v1102
      %v1462 = vsel %vm1335, %v450, %v1104
      %v1463 = vsel %vm1335, %v452, %v1106
      %v1464 = vsel %vm1335, %v455, %v1108
      %v1465 = vsel %vm1335, %v457, %v1110
      %v1466 = vsel %vm1368, %v1434, %v1144
      %v1467 = vsel %vm1368, %v1435, %v1146
      %v1468 = vsel %vm1368, %v1436, %v1148
      %v1469 = vsel %vm1368, %v1437, %v1150
      %v1470 = vsel %vm1368, %v1438, %v1152
      %v1471 = vsel %vm1368, %v1439, %v1154
      %v1472 = vsel %vm1368, %v1440, %v1156
      %v1473 = vsel %vm1368, %v1441, %v1158
      %v1474 = vsel %vm1368, %v1442, %v1160
      %v1475 = vsel %vm1368, %v1443, %v1162
      %v1476 = vsel %vm1368, %v1444, %v1164
      %v1477 = vsel %vm1368, %v1445, %v1166
      %v1478 = vsel %vm1368, %v1446, %v1168
      %v1479 = vsel %vm1368, %v1447, %v1170
      %v1480 = vsel %vm1368, %v1448, %v1172
      %v1481 = vsel %vm1368, %v1449, %v1174
      %v1482 = vsel %vm1368, %v1450, %v1176
      %v1483 = vsel %vm1368, %v1451, %v1178
      %v1484 = vsel %vm1368, %v1452, %v1180
      %v1485 = vsel %vm1368, %v1453, %v1182
      %v1486 = vsel %vm1368, %v1454, %v1184
      %v1487 = vsel %vm1368, %v1455, %v1186
      %v1488 = vsel %vm1368, %v1456, %v1188
      %v1489 = vsel %vm1368, %v1457, %v1190
      %v1490 = vsel %vm1368, %v1458, %v1192
      %v1491 = vsel %vm1368, %v1459, %v1194
      %v1492 = vsel %vm1368, %v1460, %v1196
      %v1493 = vsel %vm1368, %v1461, %v1198
      %v1494 = vsel %vm1368, %v1462, %v1200
      %v1495 = vsel %vm1368, %v1463, %v1202
      %v1496 = vsel %vm1368, %v1464, %v1204
      %v1497 = vsel %vm1368, %v1465, %v1206
      %v1498 = vsel %vm1401, %v1466, %v1240
      %v1499 = vsel %vm1401, %v1467, %v1242
      %v1500 = vsel %vm1401, %v1468, %v1244
      %v1501 = vsel %vm1401, %v1469, %v1246
      %v1502 = vsel %vm1401, %v1470, %v1248
      %v1503 = vsel %vm1401, %v1471, %v1250
      %v1504 = vsel %vm1401, %v1472, %v1252
      %v1505 = vsel %vm1401, %v1473, %v1254
      %v1506 = vsel %vm1401, %v1474, %v1256
      %v1507 = vsel %vm1401, %v1475, %v1258
      %v1508 = vsel %vm1401, %v1476, %v1260
      %v1509 = vsel %vm1401, %v1477, %v1262
      %v1510 = vsel %vm1401, %v1478, %v1264
      %v1511 = vsel %vm1401, %v1479, %v1266
      %v1512 = vsel %vm1401, %v1480, %v1268
      %v1513 = vsel %vm1401, %v1481, %v1270
      %v1514 = vsel %vm1401, %v1482, %v1272
      %v1515 = vsel %vm1401, %v1483, %v1274
      %v1516 = vsel %vm1401, %v1484, %v1276
      %v1517 = vsel %vm1401, %v1485, %v1278
      %v1518 = vsel %vm1401, %v1486, %v1280
      %v1519 = vsel %vm1401, %v1487, %v1282
      %v1520 = vsel %vm1401, %v1488, %v1284
      %v1521 = vsel %vm1401, %v1489, %v1286
      %v1522 = vsel %vm1401, %v1490, %v1288
      %v1523 = vsel %vm1401, %v1491, %v1290
      %v1524 = vsel %vm1401, %v1492, %v1292
      %v1525 = vsel %vm1401, %v1493, %v1294
      %v1526 = vsel %vm1401, %v1494, %v1296
      %v1527 = vsel %vm1401, %v1495, %v1298
      %v1528 = vsel %vm1401, %v1496, %v1300
      %v1529 = vsel %vm1401, %v1497, %v1302
      %v1530 = vld [vmem:[%s1] sm:$0xff]
      %v1531 = vld [vmem:[%s1 + $0x8] sm:$0xff]
      %v1532 = vld [vmem:[%s1 + $0x10] sm:$0xff]
      %v1533 = vld [vmem:[%s1 + $0x18] sm:$0xff]
      %v1534 = vld [vmem:[%s1 + $0x20] sm:$0xff]
      %v1535 = vld [vmem:[%s1 + $0x28] sm:$0xff]
      %v1536 = vld [vmem:[%s1 + $0x30] sm:$0xff]
      %v1537 = vld [vmem:[%s1 + $0x38] sm:$0xff]
      %v1538 = vld [vmem:[%s1 + $0x40] sm:$0xff]
      %v1539 = vld [vmem:[%s1 + $0x48] sm:$0xff]
      %v1540 = vld [vmem:[%s1 + $0x50] sm:$0xff]
      %v1541 = vld [vmem:[%s1 + $0x58] sm:$0xff]
      %v1542 = vld [vmem:[%s1 + $0x60] sm:$0xff]
      %v1543 = vld [vmem:[%s1 + $0x68] sm:$0xff]
      %v1544 = vld [vmem:[%s1 + $0x70] sm:$0xff]
      %v1545 = vld [vmem:[%s1 + $0x78] sm:$0xff]
      %v1546 = vld [vmem:[%s1 + $0x80] sm:$0xff]
      %v1547 = vld [vmem:[%s1 + $0x88] sm:$0xff]
      %v1548 = vld [vmem:[%s1 + $0x90] sm:$0xff]
      %v1549 = vld [vmem:[%s1 + $0x98] sm:$0xff]
      %v1550 = vld [vmem:[%s1 + $0xa0] sm:$0xff]
      %v1551 = vld [vmem:[%s1 + $0xa8] sm:$0xff]
      %v1552 = vld [vmem:[%s1 + $0xb0] sm:$0xff]
      %v1553 = vld [vmem:[%s1 + $0xb8] sm:$0xff]
      %v1554 = vld [vmem:[%s1 + $0xc0] sm:$0xff]
      %v1555 = vld [vmem:[%s1 + $0xc8] sm:$0xff]
      %v1556 = vld [vmem:[%s1 + $0xd0] sm:$0xff]
      %v1557 = vld [vmem:[%s1 + $0xd8] sm:$0xff]
      %v1558 = vld [vmem:[%s1 + $0xe0] sm:$0xff]
      %v1559 = vld [vmem:[%s1 + $0xe8] sm:$0xff]
      %v1560 = vld [vmem:[%s1 + $0xf0] sm:$0xff]
      %v1561 = vld [vmem:[%s1 + $0xf8] sm:$0xff]
      %v1562 = vld [vmem:[%s1 + $0x100] sm:$0xff]
      %v1563 = vld [vmem:[%s1 + $0x108] sm:$0xff]
      %v1564 = vld [vmem:[%s1 + $0x110] sm:$0xff]
      %v1565 = vld [vmem:[%s1 + $0x118] sm:$0xff]
      %v1566 = vsel %vm1335, %v663, 0
      %v1568 = vsel %vm1335, %v665, 0
      %v1570 = vsel %vm1335, %v668, 0
      %v1572 = vsel %vm1335, %v670, 0
      %v1574 = vsel %vm1335, %v673, 0
      %v1576 = vsel %vm1335, %v675, 0
      %v1578 = vsel %vm1335, %v678, 0
      %v1580 = vsel %vm1335, %v680, 0
      %v1582 = vsel %vm1335, %v683, 0
      %v1584 = vsel %vm1335, %v685, 0
      %v1586 = vsel %vm1335, %v688, 0
      %v1588 = vsel %vm1335, %v690, 0
      %v1590 = vsel %vm1335, %v693, 0
      %v1592 = vsel %vm1335, %v695, 0
      %v1594 = vsel %vm1335, %v698, 0
      %v1596 = vsel %vm1335, %v700, 0
      %v1598 = vsel %vm1335, %v703, 0
      %v1600 = vsel %vm1335, %v705, 0
      %v1602 = vsel %vm1335, %v708, 0
      %v1604 = vsel %vm1335, %v710, 0
      %v1606 = vsel %vm1335, %v713, 0
      %v1608 = vsel %vm1335, %v715, 0
      %v1610 = vsel %vm1335, %v718, 0
      %v1612 = vsel %vm1335, %v720, 0
      %v1614 = vsel %vm1335, %v723, 0
      %v1616 = vsel %vm1335, %v725, 0
      %v1618 = vsel %vm1335, %v728, 0
      %v1620 = vsel %vm1335, %v730, 0
      %v1622 = vsel %vm1335, %v738, 0
      %v1624 = vsel %vm1335, %v740, 0
      %v1626 = vsel %vm1335, %v756, 0
      %v1628 = vsel %vm1335, %v758, 0
      %1630 = vmatprep.subr.mxu0 0.0
      %1631 = vmatpush1.msra.mxu0 %v1545
      %1632 = vmatprep.subr.mxu0 0.0
      %1633 = vmatpush1.msra.mxu0 %v1544
      %1634 = vmatprep.subr.mxu0 0.0
      %1635 = vmatpush1.msra.mxu0 %v1543
      %1636 = vmatprep.subr.mxu0 0.0
      %1637 = vmatpush1.msra.mxu0 %v1542
      %1638 = vmatprep.subr.mxu0 0.0
      %1639 = vmatpush1.msra.mxu0 %v1541
      %1640 = vmatprep.subr.mxu0 0.0
      %1641 = vmatpush1.msra.mxu0 %v1540
      %1642 = vmatprep.subr.mxu0 0.0
      %1643 = vmatpush1.msra.mxu0 %v1539
      %1644 = vmatprep.subr.mxu0 0.0
      %1645 = vmatpush1.msra.mxu0 %v1538
      %1646 = vmatprep.subr.mxu0 0.0
      %1647 = vmatpush1.msra.mxu0 %v1537
      %1648 = vmatprep.subr.mxu0 0.0
      %1649 = vmatpush1.msra.mxu0 %v1536
      %1650 = vmatprep.subr.mxu0 0.0
      %1651 = vmatpush1.msra.mxu0 %v1535
      %1652 = vmatprep.subr.mxu0 0.0
      %1653 = vmatpush1.msra.mxu0 %v1534
      %1654 = vmatprep.subr.mxu0 0.0
      %1655 = vmatpush1.msra.mxu0 %v1533
      %1656 = vmatprep.subr.mxu0 0.0
      %1657 = vmatpush1.msra.mxu0 %v1532
      %1658 = vmatprep.subr.mxu0 0.0
      %1659 = vmatpush1.msra.mxu0 %v1531
      %1660 = vmatprep.subr.mxu0 0.0
      %1661 = vmatpush1.msra.mxu0 %v1530
      %1662 = vmatprep.subr.mxu0 0.0
      %1663 = vmatpush2.msra.mxu0 %v1561
      %1664 = vmatprep.subr.mxu0 0.0
      %1665 = vmatpush2.msra.mxu0 %v1560
      %1666 = vmatprep.subr.mxu0 0.0
      %1667 = vmatpush2.msra.mxu0 %v1559
      %1668 = vmatprep.subr.mxu0 0.0
      %1669 = vmatpush2.msra.mxu0 %v1558
      %1670 = vmatprep.subr.mxu0 0.0
      %1671 = vmatpush2.msra.mxu0 %v1557
      %1672 = vmatprep.subr.mxu0 0.0
      %1673 = vmatpush2.msra.mxu0 %v1556
      %1674 = vmatprep.subr.mxu0 0.0
      %1675 = vmatpush2.msra.mxu0 %v1555
      %1676 = vmatprep.subr.mxu0 0.0
      %1677 = vmatpush2.msra.mxu0 %v1554
      %1678 = vmatprep.subr.mxu0 0.0
      %1679 = vmatpush2.msra.mxu0 %v1553
      %1680 = vmatprep.subr.mxu0 0.0
      %1681 = vmatpush2.msra.mxu0 %v1552
      %1682 = vmatprep.subr.mxu0 0.0
      %1683 = vmatpush2.msra.mxu0 %v1551
      %1684 = vmatprep.subr.mxu0 0.0
      %1685 = vmatpush2.msra.mxu0 %v1550
      %1686 = vmatprep.subr.mxu0 0.0
      %1687 = vmatpush2.msra.mxu0 %v1549
      %1688 = vmatprep.subr.mxu0 0.0
      %1689 = vmatpush2.msra.mxu0 %v1548
      %1690 = vmatprep.subr.mxu0 0.0
      %1691 = vmatpush2.msra.mxu0 %v1547
      %1692 = vmatprep.subr.mxu0 0.0
      %1693 = vmatpush2.msra.mxu0 %v1546
      %1694 = vmatprep.mubr.f32.mxu0 %v1498
      %1695 = vmatmul.mubr.f32.gmra.mxu0 %v1402
      %v1696 = vpop.f32.mrf.mxu0
      %v1697 = vadd.f32 0.0, %v1696
      %v1698 = vpop.f32.mrf.mxu0
      %1699 = vmatprep.mubr.f32.mxu0 %v1499
      %1700 = vmatmul.mubr.f32.gmra.mxu0 %v1403
      %v1701 = vpop.f32.mrf.mxu0
      %v1702 = vadd.f32 0.0, %v1701
      %v1703 = vpop.f32.mrf.mxu0
      %1704 = vmatprep.mubr.f32.mxu0 %v1500
      %1705 = vmatmul.mubr.f32.gmra.mxu0 %v1404
      %v1706 = vpop.f32.mrf.mxu0
      %v1707 = vadd.f32 0.0, %v1706
      %v1708 = vpop.f32.mrf.mxu0
      %1709 = vmatprep.mubr.f32.mxu0 %v1501
      %1710 = vmatmul.mubr.f32.gmra.mxu0 %v1405
      %v1711 = vpop.f32.mrf.mxu0
      %v1712 = vadd.f32 0.0, %v1711
      %v1713 = vpop.f32.mrf.mxu0
      %1714 = vmatprep.mubr.f32.mxu0 %v1502
      %1715 = vmatmul.mubr.f32.gmra.mxu0 %v1406
      %v1716 = vpop.f32.mrf.mxu0
      %v1717 = vadd.f32 0.0, %v1716
      %v1718 = vpop.f32.mrf.mxu0
      %1719 = vmatprep.mubr.f32.mxu0 %v1503
      %1720 = vmatmul.mubr.f32.gmra.mxu0 %v1407
      %v1721 = vpop.f32.mrf.mxu0
      %v1722 = vadd.f32 0.0, %v1721
      %v1723 = vpop.f32.mrf.mxu0
      %1724 = vmatprep.mubr.f32.mxu0 %v1504
      %1725 = vmatmul.mubr.f32.gmra.mxu0 %v1408
      %v1726 = vpop.f32.mrf.mxu0
      %v1727 = vadd.f32 0.0, %v1726
      %v1728 = vpop.f32.mrf.mxu0
      %1729 = vmatprep.mubr.f32.mxu0 %v1505
      %1730 = vmatmul.mubr.f32.gmra.mxu0 %v1409
      %v1731 = vpop.f32.mrf.mxu0
      %v1732 = vadd.f32 0.0, %v1731
      %v1733 = vpop.f32.mrf.mxu0
      %1734 = vmatprep.mubr.f32.mxu0 %v1506
      %1735 = vmatmul.mubr.f32.gmra.mxu0 %v1410
      %v1736 = vpop.f32.mrf.mxu0
      %v1737 = vadd.f32 0.0, %v1736
      %v1738 = vpop.f32.mrf.mxu0
      %1739 = vmatprep.mubr.f32.mxu0 %v1507
      %1740 = vmatmul.mubr.f32.gmra.mxu0 %v1411
      %v1741 = vpop.f32.mrf.mxu0
      %v1742 = vadd.f32 0.0, %v1741
      %v1743 = vpop.f32.mrf.mxu0
      %1744 = vmatprep.mubr.f32.mxu0 %v1508
      %1745 = vmatmul.mubr.f32.gmra.mxu0 %v1412
      %v1746 = vpop.f32.mrf.mxu0
      %v1747 = vadd.f32 0.0, %v1746
      %v1748 = vpop.f32.mrf.mxu0
      %1749 = vmatprep.mubr.f32.mxu0 %v1509
      %1750 = vmatmul.mubr.f32.gmra.mxu0 %v1413
      %v1751 = vpop.f32.mrf.mxu0
      %v1752 = vadd.f32 0.0, %v1751
      %v1753 = vpop.f32.mrf.mxu0
      %1754 = vmatprep.mubr.f32.mxu0 %v1510
      %1755 = vmatmul.mubr.f32.gmra.mxu0 %v1414
      %v1756 = vpop.f32.mrf.mxu0
      %v1757 = vadd.f32 0.0, %v1756
      %v1758 = vpop.f32.mrf.mxu0
      %1759 = vmatprep.mubr.f32.mxu0 %v1511
      %1760 = vmatmul.mubr.f32.gmra.mxu0 %v1415
      %v1761 = vpop.f32.mrf.mxu0
      %v1762 = vadd.f32 0.0, %v1761
      %v1763 = vpop.f32.mrf.mxu0
      %1764 = vmatprep.mubr.f32.mxu0 %v1512
      %1765 = vmatmul.mubr.f32.gmra.mxu0 %v1416
      %v1766 = vpop.f32.mrf.mxu0
      %v1767 = vadd.f32 0.0, %v1766
      %v1768 = vpop.f32.mrf.mxu0
      %1769 = vmatprep.mubr.f32.mxu0 %v1513
      %1770 = vmatmul.mubr.f32.gmra.mxu0 %v1417
      %v1771 = vpop.f32.mrf.mxu0
      %v1772 = vadd.f32 0.0, %v1771
      %v1773 = vpop.f32.mrf.mxu0
      %1774 = vmatprep.mubr.f32.mxu0 %v1514
      %1775 = vmatmul.mubr.f32.gmra.mxu0 %v1418
      %v1776 = vpop.f32.mrf.mxu0
      %v1777 = vadd.f32 0.0, %v1776
      %v1778 = vpop.f32.mrf.mxu0
      %1779 = vmatprep.mubr.f32.mxu0 %v1515
      %1780 = vmatmul.mubr.f32.gmra.mxu0 %v1419
      %v1781 = vpop.f32.mrf.mxu0
      %v1782 = vadd.f32 0.0, %v1781
      %v1783 = vpop.f32.mrf.mxu0
      %1784 = vmatprep.mubr.f32.mxu0 %v1516
      %1785 = vmatmul.mubr.f32.gmra.mxu0 %v1420
      %v1786 = vpop.f32.mrf.mxu0
      %v1787 = vadd.f32 0.0, %v1786
      %v1788 = vpop.f32.mrf.mxu0
      %1789 = vmatprep.mubr.f32.mxu0 %v1517
      %1790 = vmatmul.mubr.f32.gmra.mxu0 %v1421
      %v1791 = vpop.f32.mrf.mxu0
      %v1792 = vadd.f32 0.0, %v1791
      %v1793 = vpop.f32.mrf.mxu0
      %1794 = vmatprep.mubr.f32.mxu0 %v1518
      %1795 = vmatmul.mubr.f32.gmra.mxu0 %v1422
      %v1796 = vpop.f32.mrf.mxu0
      %v1797 = vadd.f32 0.0, %v1796
      %v1798 = vpop.f32.mrf.mxu0
      %1799 = vmatprep.mubr.f32.mxu0 %v1519
      %1800 = vmatmul.mubr.f32.gmra.mxu0 %v1423
      %v1801 = vpop.f32.mrf.mxu0
      %v1802 = vadd.f32 0.0, %v1801
      %v1803 = vpop.f32.mrf.mxu0
      %1804 = vmatprep.mubr.f32.mxu0 %v1520
      %1805 = vmatmul.mubr.f32.gmra.mxu0 %v1424
      %v1806 = vpop.f32.mrf.mxu0
      %v1807 = vadd.f32 0.0, %v1806
      %v1808 = vpop.f32.mrf.mxu0
      %1809 = vmatprep.mubr.f32.mxu0 %v1521
      %1810 = vmatmul.mubr.f32.gmra.mxu0 %v1425
      %v1811 = vpop.f32.mrf.mxu0
      %v1812 = vadd.f32 0.0, %v1811
      %v1813 = vpop.f32.mrf.mxu0
      %1814 = vmatprep.mubr.f32.mxu0 %v1522
      %1815 = vmatmul.mubr.f32.gmra.mxu0 %v1426
      %v1816 = vpop.f32.mrf.mxu0
      %v1817 = vadd.f32 0.0, %v1816
      %v1818 = vpop.f32.mrf.mxu0
      %1819 = vmatprep.mubr.f32.mxu0 %v1523
      %1820 = vmatmul.mubr.f32.gmra.mxu0 %v1427
      %v1821 = vpop.f32.mrf.mxu0
      %v1822 = vadd.f32 0.0, %v1821
      %v1823 = vpop.f32.mrf.mxu0
      %1824 = vmatprep.mubr.f32.mxu0 %v1524
      %1825 = vmatmul.mubr.f32.gmra.mxu0 %v1428
      %v1826 = vpop.f32.mrf.mxu0
      %v1827 = vadd.f32 0.0, %v1826
      %v1828 = vpop.f32.mrf.mxu0
      %1829 = vmatprep.mubr.f32.mxu0 %v1525
      %1830 = vmatmul.mubr.f32.gmra.mxu0 %v1429
      %v1831 = vpop.f32.mrf.mxu0
      %v1832 = vadd.f32 0.0, %v1831
      %v1833 = vpop.f32.mrf.mxu0
      %1834 = vmatprep.mubr.f32.mxu0 %v1526
      %1835 = vmatmul.mubr.f32.gmra.mxu0 %v1430
      %v1836 = vpop.f32.mrf.mxu0
      %v1837 = vadd.f32 0.0, %v1836
      %v1838 = vpop.f32.mrf.mxu0
      %1839 = vmatprep.mubr.f32.mxu0 %v1527
      %1840 = vmatmul.mubr.f32.gmra.mxu0 %v1431
      %v1841 = vpop.f32.mrf.mxu0
      %v1842 = vadd.f32 0.0, %v1841
      %v1843 = vpop.f32.mrf.mxu0
      %1844 = vmatprep.mubr.f32.mxu0 %v1528
      %1845 = vmatmul.mubr.f32.gmra.mxu0 %v1432
      %v1846 = vpop.f32.mrf.mxu0
      %v1847 = vadd.f32 0.0, %v1846
      %v1848 = vpop.f32.mrf.mxu0
      %1849 = vmatprep.mubr.f32.mxu0 %v1529
      %1850 = vmatmul.mubr.f32.gmra.mxu0 %v1433
      %v1851 = vpop.f32.mrf.mxu0
      %v1852 = vadd.f32 0.0, %v1851
      %v1853 = vpop.f32.mrf.mxu0
      %1854 = vdwg.mxu0
      %1855 = vmatprep.subr.mxu0 0.0
      %1856 = vmatpush1.msra.mxu0 0.0
      %1857 = vmatprep.subr.mxu0 0.0
      %1858 = vmatpush1.msra.mxu0 0.0
      %1859 = vmatprep.subr.mxu0 0.0
      %1860 = vmatpush1.msra.mxu0 0.0
      %1861 = vmatprep.subr.mxu0 0.0
      %1862 = vmatpush1.msra.mxu0 0.0
      %1863 = vmatprep.subr.mxu0 0.0
      %1864 = vmatpush1.msra.mxu0 0.0
      %1865 = vmatprep.subr.mxu0 0.0
      %1866 = vmatpush1.msra.mxu0 0.0
      %1867 = vmatprep.subr.mxu0 0.0
      %1868 = vmatpush1.msra.mxu0 0.0
      %1869 = vmatprep.subr.mxu0 0.0
      %1870 = vmatpush1.msra.mxu0 0.0
      %1871 = vmatprep.subr.mxu0 0.0
      %1872 = vmatpush1.msra.mxu0 0.0
      %1873 = vmatprep.subr.mxu0 0.0
      %1874 = vmatpush1.msra.mxu0 0.0
      %1875 = vmatprep.subr.mxu0 0.0
      %1876 = vmatpush1.msra.mxu0 0.0
      %1877 = vmatprep.subr.mxu0 0.0
      %1878 = vmatpush1.msra.mxu0 0.0
      %1879 = vmatprep.subr.mxu0 0.0
      %1880 = vmatpush1.msra.mxu0 %v1565
      %1881 = vmatprep.subr.mxu0 0.0
      %1882 = vmatpush1.msra.mxu0 %v1564
      %1883 = vmatprep.subr.mxu0 0.0
      %1884 = vmatpush1.msra.mxu0 %v1563
      %1885 = vmatprep.subr.mxu0 0.0
      %1886 = vmatpush1.msra.mxu0 %v1562
      %1887 = vmatprep.subr.mxu0 0.0
      %1888 = vmatpush2.msra.mxu0 0.0
      %1889 = vmatprep.subr.mxu0 0.0
      %1890 = vmatpush2.msra.mxu0 0.0
      %1891 = vmatprep.subr.mxu0 0.0
      %1892 = vmatpush2.msra.mxu0 0.0
      %1893 = vmatprep.subr.mxu0 0.0
      %1894 = vmatpush2.msra.mxu0 0.0
      %1895 = vmatprep.subr.mxu0 0.0
      %1896 = vmatpush2.msra.mxu0 0.0
      %1897 = vmatprep.subr.mxu0 0.0
      %1898 = vmatpush2.msra.mxu0 0.0
      %1899 = vmatprep.subr.mxu0 0.0
      %1900 = vmatpush2.msra.mxu0 0.0
      %1901 = vmatprep.subr.mxu0 0.0
      %1902 = vmatpush2.msra.mxu0 0.0
      %1903 = vmatprep.subr.mxu0 0.0
      %1904 = vmatpush2.msra.mxu0 0.0
      %1905 = vmatprep.subr.mxu0 0.0
      %1906 = vmatpush2.msra.mxu0 0.0
      %1907 = vmatprep.subr.mxu0 0.0
      %1908 = vmatpush2.msra.mxu0 0.0
      %1909 = vmatprep.subr.mxu0 0.0
      %1910 = vmatpush2.msra.mxu0 0.0
      %1911 = vmatprep.subr.mxu0 0.0
      %1912 = vmatpush2.msra.mxu0 0.0
      %1913 = vmatprep.subr.mxu0 0.0
      %1914 = vmatpush2.msra.mxu0 0.0
      %1915 = vmatprep.subr.mxu0 0.0
      %1916 = vmatpush2.msra.mxu0 0.0
      %1917 = vmatprep.subr.mxu0 0.0
      %1918 = vmatpush2.msra.mxu0 0.0
      %1919 = vmatprep.mubr.f32.mxu0 0.0
      %1920 = vmatmul.mubr.f32.gmra.mxu0 %v1566
      %v1921 = vpop.f32.mrf.mxu0
      %v1922 = vadd.f32 %v1697, %v1921
      %v1923 = vpop.f32.mrf.mxu0
      %1924 = vmatprep.mubr.f32.mxu0 0.0
      %1925 = vmatmul.mubr.f32.gmra.mxu0 %v1568
      %v1926 = vpop.f32.mrf.mxu0
      %v1927 = vadd.f32 %v1702, %v1926
      %v1928 = vpop.f32.mrf.mxu0
      %1929 = vmatprep.mubr.f32.mxu0 0.0
      %1930 = vmatmul.mubr.f32.gmra.mxu0 %v1570
      %v1931 = vpop.f32.mrf.mxu0
      %v1932 = vadd.f32 %v1707, %v1931
      %v1933 = vpop.f32.mrf.mxu0
      %1934 = vmatprep.mubr.f32.mxu0 0.0
      %1935 = vmatmul.mubr.f32.gmra.mxu0 %v1572
      %v1936 = vpop.f32.mrf.mxu0
      %v1937 = vadd.f32 %v1712, %v1936
      %v1938 = vpop.f32.mrf.mxu0
      %1939 = vmatprep.mubr.f32.mxu0 0.0
      %1940 = vmatmul.mubr.f32.gmra.mxu0 %v1574
      %v1941 = vpop.f32.mrf.mxu0
      %v1942 = vadd.f32 %v1717, %v1941
      %v1943 = vpop.f32.mrf.mxu0
      %1944 = vmatprep.mubr.f32.mxu0 0.0
      %1945 = vmatmul.mubr.f32.gmra.mxu0 %v1576
      %v1946 = vpop.f32.mrf.mxu0
      %v1947 = vadd.f32 %v1722, %v1946
      %v1948 = vpop.f32.mrf.mxu0
      %1949 = vmatprep.mubr.f32.mxu0 0.0
      %1950 = vmatmul.mubr.f32.gmra.mxu0 %v1578
      %v1951 = vpop.f32.mrf.mxu0
      %v1952 = vadd.f32 %v1727, %v1951
      %v1953 = vpop.f32.mrf.mxu0
      %1954 = vmatprep.mubr.f32.mxu0 0.0
      %1955 = vmatmul.mubr.f32.gmra.mxu0 %v1580
      %v1956 = vpop.f32.mrf.mxu0
      %v1957 = vadd.f32 %v1732, %v1956
      %v1958 = vpop.f32.mrf.mxu0
      %1959 = vmatprep.mubr.f32.mxu0 0.0
      %1960 = vmatmul.mubr.f32.gmra.mxu0 %v1582
      %v1961 = vpop.f32.mrf.mxu0
      %v1962 = vadd.f32 %v1737, %v1961
      %v1963 = vpop.f32.mrf.mxu0
      %1964 = vmatprep.mubr.f32.mxu0 0.0
      %1965 = vmatmul.mubr.f32.gmra.mxu0 %v1584
      %v1966 = vpop.f32.mrf.mxu0
      %v1967 = vadd.f32 %v1742, %v1966
      %v1968 = vpop.f32.mrf.mxu0
      %1969 = vmatprep.mubr.f32.mxu0 0.0
      %1970 = vmatmul.mubr.f32.gmra.mxu0 %v1586
      %v1971 = vpop.f32.mrf.mxu0
      %v1972 = vadd.f32 %v1747, %v1971
      %v1973 = vpop.f32.mrf.mxu0
      %1974 = vmatprep.mubr.f32.mxu0 0.0
      %1975 = vmatmul.mubr.f32.gmra.mxu0 %v1588
      %v1976 = vpop.f32.mrf.mxu0
      %v1977 = vadd.f32 %v1752, %v1976
      %v1978 = vpop.f32.mrf.mxu0
      %1979 = vmatprep.mubr.f32.mxu0 0.0
      %1980 = vmatmul.mubr.f32.gmra.mxu0 %v1590
      %v1981 = vpop.f32.mrf.mxu0
      %v1982 = vadd.f32 %v1757, %v1981
      %v1983 = vpop.f32.mrf.mxu0
      %1984 = vmatprep.mubr.f32.mxu0 0.0
      %1985 = vmatmul.mubr.f32.gmra.mxu0 %v1592
      %v1986 = vpop.f32.mrf.mxu0
      %v1987 = vadd.f32 %v1762, %v1986
      %v1988 = vpop.f32.mrf.mxu0
      %1989 = vmatprep.mubr.f32.mxu0 0.0
      %1990 = vmatmul.mubr.f32.gmra.mxu0 %v1594
      %v1991 = vpop.f32.mrf.mxu0
      %v1992 = vadd.f32 %v1767, %v1991
      %v1993 = vpop.f32.mrf.mxu0
      %1994 = vmatprep.mubr.f32.mxu0 0.0
      %1995 = vmatmul.mubr.f32.gmra.mxu0 %v1596
      %v1996 = vpop.f32.mrf.mxu0
      %v1997 = vadd.f32 %v1772, %v1996
      %v1998 = vpop.f32.mrf.mxu0
      %1999 = vmatprep.mubr.f32.mxu0 0.0
      %2000 = vmatmul.mubr.f32.gmra.mxu0 %v1598
      %v2001 = vpop.f32.mrf.mxu0
      %v2002 = vadd.f32 %v1777, %v2001
      %v2003 = vpop.f32.mrf.mxu0
      %2004 = vmatprep.mubr.f32.mxu0 0.0
      %2005 = vmatmul.mubr.f32.gmra.mxu0 %v1600
      %v2006 = vpop.f32.mrf.mxu0
      %v2007 = vadd.f32 %v1782, %v2006
      %v2008 = vpop.f32.mrf.mxu0
      %2009 = vmatprep.mubr.f32.mxu0 0.0
      %2010 = vmatmul.mubr.f32.gmra.mxu0 %v1602
      %v2011 = vpop.f32.mrf.mxu0
      %v2012 = vadd.f32 %v1787, %v2011
      %v2013 = vpop.f32.mrf.mxu0
      %2014 = vmatprep.mubr.f32.mxu0 0.0
      %2015 = vmatmul.mubr.f32.gmra.mxu0 %v1604
      %v2016 = vpop.f32.mrf.mxu0
      %v2017 = vadd.f32 %v1792, %v2016
      %v2018 = vpop.f32.mrf.mxu0
      %2019 = vmatprep.mubr.f32.mxu0 0.0
      %2020 = vmatmul.mubr.f32.gmra.mxu0 %v1606
      %v2021 = vpop.f32.mrf.mxu0
      %v2022 = vadd.f32 %v1797, %v2021
      %v2023 = vpop.f32.mrf.mxu0
      %2024 = vmatprep.mubr.f32.mxu0 0.0
      %2025 = vmatmul.mubr.f32.gmra.mxu0 %v1608
      %v2026 = vpop.f32.mrf.mxu0
      %v2027 = vadd.f32 %v1802, %v2026
      %v2028 = vpop.f32.mrf.mxu0
      %2029 = vmatprep.mubr.f32.mxu0 0.0
      %2030 = vmatmul.mubr.f32.gmra.mxu0 %v1610
      %v2031 = vpop.f32.mrf.mxu0
      %v2032 = vadd.f32 %v1807, %v2031
      %v2033 = vpop.f32.mrf.mxu0
      %2034 = vmatprep.mubr.f32.mxu0 0.0
      %2035 = vmatmul.mubr.f32.gmra.mxu0 %v1612
      %v2036 = vpop.f32.mrf.mxu0
      %v2037 = vadd.f32 %v1812, %v2036
      %v2038 = vpop.f32.mrf.mxu0
      %2039 = vmatprep.mubr.f32.mxu0 0.0
      %2040 = vmatmul.mubr.f32.gmra.mxu0 %v1614
      %v2041 = vpop.f32.mrf.mxu0
      %v2042 = vadd.f32 %v1817, %v2041
      %v2043 = vpop.f32.mrf.mxu0
      %2044 = vmatprep.mubr.f32.mxu0 0.0
      %2045 = vmatmul.mubr.f32.gmra.mxu0 %v1616
      %v2046 = vpop.f32.mrf.mxu0
      %v2047 = vadd.f32 %v1822, %v2046
      %v2048 = vpop.f32.mrf.mxu0
      %2049 = vmatprep.mubr.f32.mxu0 0.0
      %2050 = vmatmul.mubr.f32.gmra.mxu0 %v1618
      %v2051 = vpop.f32.mrf.mxu0
      %v2052 = vadd.f32 %v1827, %v2051
      %v2053 = vpop.f32.mrf.mxu0
      %2054 = vmatprep.mubr.f32.mxu0 0.0
      %2055 = vmatmul.mubr.f32.gmra.mxu0 %v1620
      %v2056 = vpop.f32.mrf.mxu0
      %v2057 = vadd.f32 %v1832, %v2056
      %v2058 = vpop.f32.mrf.mxu0
      %2059 = vmatprep.mubr.f32.mxu0 0.0
      %2060 = vmatmul.mubr.f32.gmra.mxu0 %v1622
      %v2061 = vpop.f32.mrf.mxu0
      %v2062 = vadd.f32 %v1837, %v2061
      %v2063 = vpop.f32.mrf.mxu0
      %2064 = vmatprep.mubr.f32.mxu0 0.0
      %2065 = vmatmul.mubr.f32.gmra.mxu0 %v1624
      %v2066 = vpop.f32.mrf.mxu0
      %v2067 = vadd.f32 %v1842, %v2066
      %v2068 = vpop.f32.mrf.mxu0
      %2069 = vmatprep.mubr.f32.mxu0 0.0
      %2070 = vmatmul.mubr.f32.gmra.mxu0 %v1626
      %v2071 = vpop.f32.mrf.mxu0
      %v2072 = vadd.f32 %v1847, %v2071
      %v2073 = vpop.f32.mrf.mxu0
      %2074 = vmatprep.mubr.f32.mxu0 0.0
      %2075 = vmatmul.mubr.f32.gmra.mxu0 %v1628
      %v2076 = vpop.f32.mrf.mxu0
      %v2077 = vadd.f32 %v1852, %v2076
      %v2078 = vpop.f32.mrf.mxu0
      %2079 = vdwg.mxu0
      %vm2086 = vcmask 1045504
      %v2087 = vrot.slane %v233, 2
      %v2088 = vrot.slane %v234, 2
      %v2089 = vsel %vm2086, %v2087, %v2088
      %v2090 = vrot.slane %v235, 2
      %v2091 = vsel %vm2086, %v2088, %v2090
      %v2092 = vrot.slane %v237, 2
      %v2093 = vrot.slane %v238, 2
      %v2094 = vsel %vm2086, %v2092, %v2093
      %v2095 = vrot.slane %v239, 2
      %v2096 = vsel %vm2086, %v2093, %v2095
      %v2097 = vrot.slane %v241, 2
      %v2098 = vrot.slane %v242, 2
      %v2099 = vsel %vm2086, %v2097, %v2098
      %v2100 = vrot.slane %v243, 2
      %v2101 = vsel %vm2086, %v2098, %v2100
      %v2102 = vrot.slane %v245, 2
      %v2103 = vrot.slane %v246, 2
      %v2104 = vsel %vm2086, %v2102, %v2103
      %v2105 = vrot.slane %v247, 2
      %v2106 = vsel %vm2086, %v2103, %v2105
      %v2107 = vrot.slane %v249, 2
      %v2108 = vrot.slane %v250, 2
      %v2109 = vsel %vm2086, %v2107, %v2108
      %v2110 = vrot.slane %v251, 2
      %v2111 = vsel %vm2086, %v2108, %v2110
      %v2112 = vrot.slane %v253, 2
      %v2113 = vrot.slane %v254, 2
      %v2114 = vsel %vm2086, %v2112, %v2113
      %v2115 = vrot.slane %v255, 2
      %v2116 = vsel %vm2086, %v2113, %v2115
      %v2117 = vrot.slane %v257, 2
      %v2118 = vrot.slane %v258, 2
      %v2119 = vsel %vm2086, %v2117, %v2118
      %v2120 = vrot.slane %v259, 2
      %v2121 = vsel %vm2086, %v2118, %v2120
      %v2122 = vrot.slane %v261, 2
      %v2123 = vrot.slane %v262, 2
      %v2124 = vsel %vm2086, %v2122, %v2123
      %v2125 = vrot.slane %v263, 2
      %v2126 = vsel %vm2086, %v2123, %v2125
      %v2127 = vrot.slane %v265, 2
      %v2128 = vrot.slane %v266, 2
      %v2129 = vsel %vm2086, %v2127, %v2128
      %v2130 = vrot.slane %v267, 2
      %v2131 = vsel %vm2086, %v2128, %v2130
      %v2132 = vrot.slane %v269, 2
      %v2133 = vrot.slane %v270, 2
      %v2134 = vsel %vm2086, %v2132, %v2133
      %v2135 = vrot.slane %v271, 2
      %v2136 = vsel %vm2086, %v2133, %v2135
      %v2137 = vrot.slane %v273, 2
      %v2138 = vrot.slane %v274, 2
      %v2139 = vsel %vm2086, %v2137, %v2138
      %v2140 = vrot.slane %v275, 2
      %v2141 = vsel %vm2086, %v2138, %v2140
      %v2142 = vrot.slane %v277, 2
      %v2143 = vrot.slane %v278, 2
      %v2144 = vsel %vm2086, %v2142, %v2143
      %v2145 = vrot.slane %v279, 2
      %v2146 = vsel %vm2086, %v2143, %v2145
      %v2147 = vrot.slane %v281, 2
      %v2148 = vrot.slane %v282, 2
      %v2149 = vsel %vm2086, %v2147, %v2148
      %v2150 = vrot.slane %v283, 2
      %v2151 = vsel %vm2086, %v2148, %v2150
      %v2152 = vrot.slane %v285, 2
      %v2153 = vrot.slane %v286, 2
      %v2154 = vsel %vm2086, %v2152, %v2153
      %v2155 = vrot.slane %v287, 2
      %v2156 = vsel %vm2086, %v2153, %v2155
      %v2157 = vrot.slane %v289, 2
      %v2158 = vrot.slane %v290, 2
      %v2159 = vsel %vm2086, %v2157, %v2158
      %v2160 = vrot.slane %v291, 2
      %v2161 = vsel %vm2086, %v2158, %v2160
      %v2162 = vrot.slane %v293, 2
      %v2163 = vrot.slane %v294, 2
      %v2164 = vsel %vm2086, %v2162, %v2163
      %v2165 = vrot.slane %v295, 2
      %v2166 = vsel %vm2086, %v2163, %v2165
      %v2199 = vrot.slane %v233, 5
      %v2200 = vrot.slane %v234, 5
      %v2201 = vsel %vm377, %v2199, %v2200
      %v2202 = vrot.slane %v235, 5
      %v2203 = vsel %vm377, %v2200, %v2202
      %v2204 = vrot.slane %v237, 5
      %v2205 = vrot.slane %v238, 5
      %v2206 = vsel %vm377, %v2204, %v2205
      %v2207 = vrot.slane %v239, 5
      %v2208 = vsel %vm377, %v2205, %v2207
      %v2209 = vrot.slane %v297, 2
      %v2210 = vrot.slane %v298, 2
      %v2211 = vsel %vm2086, %v2209, %v2210
      %v2212 = vrot.slane %v299, 2
      %v2213 = vsel %vm2086, %v2210, %v2212
      %v2214 = vrot.slane %v301, 2
      %v2215 = vrot.slane %v302, 2
      %v2216 = vsel %vm2086, %v2214, %v2215
      %v2217 = vrot.slane %v303, 2
      %v2218 = vsel %vm2086, %v2215, %v2217
      %v2219 = vrot.slane %v305, 2
      %v2220 = vrot.slane %v306, 2
      %v2221 = vsel %vm2086, %v2219, %v2220
      %v2222 = vrot.slane %v307, 2
      %v2223 = vsel %vm2086, %v2220, %v2222
      %v2230 = vrot.slane %v309, 2
      %v2231 = vrot.slane %v310, 2
      %v2232 = vsel %vm2086, %v2230, %v2231
      %v2233 = vrot.slane %v311, 2
      %v2234 = vsel %vm2086, %v2231, %v2233
      %v2235 = vrot.slane %v313, 2
      %v2236 = vrot.slane %v314, 2
      %v2237 = vsel %vm2086, %v2235, %v2236
      %v2238 = vrot.slane %v315, 2
      %v2239 = vsel %vm2086, %v2236, %v2238
      %v2240 = vrot.slane %v317, 2
      %v2241 = vrot.slane %v318, 2
      %v2242 = vsel %vm2086, %v2240, %v2241
      %v2243 = vrot.slane %v319, 2
      %v2244 = vsel %vm2086, %v2241, %v2243
      %v2245 = vrot.slane %v313, 5
      %v2246 = vrot.slane %v314, 5
      %v2247 = vsel %vm377, %v2245, %v2246
      %v2248 = vrot.slane %v315, 5
      %v2249 = vsel %vm377, %v2246, %v2248
      %v2250 = vrot.slane %v317, 5
      %v2251 = vrot.slane %v318, 5
      %v2252 = vsel %vm377, %v2250, %v2251
      %v2253 = vrot.slane %v319, 5
      %v2254 = vsel %vm377, %v2251, %v2253
      %2255 = vrot.lane.b32.xlu0 %v2201, 32
      %v2256 = vpop.permute.xlu0 %2255
      %2257 = vrot.lane.b32.xlu0 %v2203, 32
      %v2258 = vpop.permute.xlu0 %2257
      %2259 = vrot.lane.b32.xlu0 %v2206, 32
      %v2260 = vpop.permute.xlu0 %2259
      %2261 = vrot.lane.b32.xlu0 %v2208, 32
      %v2262 = vpop.permute.xlu0 %2261
      %2267 = vrot.lane.b32.xlu0 %v234, 64
      %v2268 = vpop.permute.xlu0 %2267
      %2269 = vrot.lane.b32.xlu0 %v235, 64
      %v2270 = vpop.permute.xlu0 %2269
      %2271 = vrot.lane.b32.xlu0 %v238, 64
      %v2272 = vpop.permute.xlu0 %2271
      %2273 = vrot.lane.b32.xlu0 %v239, 64
      %v2274 = vpop.permute.xlu0 %2273
      %2275 = vrot.lane.b32.xlu0 %v242, 64
      %v2276 = vpop.permute.xlu0 %2275
      %2277 = vrot.lane.b32.xlu0 %v243, 64
      %v2278 = vpop.permute.xlu0 %2277
      %2279 = vrot.lane.b32.xlu0 %v246, 64
      %v2280 = vpop.permute.xlu0 %2279
      %2281 = vrot.lane.b32.xlu0 %v247, 64
      %v2282 = vpop.permute.xlu0 %2281
      %2283 = vrot.lane.b32.xlu0 %v250, 64
      %v2284 = vpop.permute.xlu0 %2283
      %2285 = vrot.lane.b32.xlu0 %v251, 64
      %v2286 = vpop.permute.xlu0 %2285
      %2287 = vrot.lane.b32.xlu0 %v254, 64
      %v2288 = vpop.permute.xlu0 %2287
      %2289 = vrot.lane.b32.xlu0 %v255, 64
      %v2290 = vpop.permute.xlu0 %2289
      %2291 = vrot.lane.b32.xlu0 %v258, 64
      %v2292 = vpop.permute.xlu0 %2291
      %2293 = vrot.lane.b32.xlu0 %v259, 64
      %v2294 = vpop.permute.xlu0 %2293
      %2295 = vrot.lane.b32.xlu0 %v262, 64
      %v2296 = vpop.permute.xlu0 %2295
      %2297 = vrot.lane.b32.xlu0 %v263, 64
      %v2298 = vpop.permute.xlu0 %2297
      %2299 = vrot.lane.b32.xlu0 %v266, 64
      %v2300 = vpop.permute.xlu0 %2299
      %2301 = vrot.lane.b32.xlu0 %v267, 64
      %v2302 = vpop.permute.xlu0 %2301
      %2303 = vrot.lane.b32.xlu0 %v270, 64
      %v2304 = vpop.permute.xlu0 %2303
      %2305 = vrot.lane.b32.xlu0 %v271, 64
      %v2306 = vpop.permute.xlu0 %2305
      %2307 = vrot.lane.b32.xlu0 %v274, 64
      %v2308 = vpop.permute.xlu0 %2307
      %2309 = vrot.lane.b32.xlu0 %v275, 64
      %v2310 = vpop.permute.xlu0 %2309
      %2311 = vrot.lane.b32.xlu0 %v278, 64
      %v2312 = vpop.permute.xlu0 %2311
      %2313 = vrot.lane.b32.xlu0 %v279, 64
      %v2314 = vpop.permute.xlu0 %2313
      %2315 = vrot.lane.b32.xlu0 %v282, 64
      %v2316 = vpop.permute.xlu0 %2315
      %2317 = vrot.lane.b32.xlu0 %v283, 64
      %v2318 = vpop.permute.xlu0 %2317
      %2319 = vrot.lane.b32.xlu0 %v286, 64
      %v2320 = vpop.permute.xlu0 %2319
      %2321 = vrot.lane.b32.xlu0 %v287, 64
      %v2322 = vpop.permute.xlu0 %2321
      %2323 = vrot.lane.b32.xlu0 %v290, 64
      %v2324 = vpop.permute.xlu0 %2323
      %2325 = vrot.lane.b32.xlu0 %v291, 64
      %v2326 = vpop.permute.xlu0 %2325
      %2327 = vrot.lane.b32.xlu0 %v294, 64
      %v2328 = vpop.permute.xlu0 %2327
      %2329 = vrot.lane.b32.xlu0 %v295, 64
      %v2330 = vpop.permute.xlu0 %2329
      %2363 = vrot.lane.b32.xlu0 %v2104, 96
      %v2364 = vpop.permute.xlu0 %2363
      %2365 = vrot.lane.b32.xlu0 %v2106, 96
      %v2366 = vpop.permute.xlu0 %2365
      %2367 = vrot.lane.b32.xlu0 %v2109, 96
      %v2368 = vpop.permute.xlu0 %2367
      %2369 = vrot.lane.b32.xlu0 %v2111, 96
      %v2370 = vpop.permute.xlu0 %2369
      %2371 = vrot.lane.b32.xlu0 %v2114, 96
      %v2372 = vpop.permute.xlu0 %2371
      %2373 = vrot.lane.b32.xlu0 %v2116, 96
      %v2374 = vpop.permute.xlu0 %2373
      %2375 = vrot.lane.b32.xlu0 %v2119, 96
      %v2376 = vpop.permute.xlu0 %2375
      %2377 = vrot.lane.b32.xlu0 %v2121, 96
      %v2378 = vpop.permute.xlu0 %2377
      %2379 = vrot.lane.b32.xlu0 %v2124, 96
      %v2380 = vpop.permute.xlu0 %2379
      %2381 = vrot.lane.b32.xlu0 %v2126, 96
      %v2382 = vpop.permute.xlu0 %2381
      %2383 = vrot.lane.b32.xlu0 %v2129, 96
      %v2384 = vpop.permute.xlu0 %2383
      %2385 = vrot.lane.b32.xlu0 %v2131, 96
      %v2386 = vpop.permute.xlu0 %2385
      %2387 = vrot.lane.b32.xlu0 %v2134, 96
      %v2388 = vpop.permute.xlu0 %2387
      %2389 = vrot.lane.b32.xlu0 %v2136, 96
      %v2390 = vpop.permute.xlu0 %2389
      %2391 = vrot.lane.b32.xlu0 %v2139, 96
      %v2392 = vpop.permute.xlu0 %2391
      %2393 = vrot.lane.b32.xlu0 %v2141, 96
      %v2394 = vpop.permute.xlu0 %2393
      %2395 = vrot.lane.b32.xlu0 %v2144, 96
      %v2396 = vpop.permute.xlu0 %2395
      %2397 = vrot.lane.b32.xlu0 %v2146, 96
      %v2398 = vpop.permute.xlu0 %2397
      %2399 = vrot.lane.b32.xlu0 %v2149, 96
      %v2400 = vpop.permute.xlu0 %2399
      %2401 = vrot.lane.b32.xlu0 %v2151, 96
      %v2402 = vpop.permute.xlu0 %2401
      %2403 = vrot.lane.b32.xlu0 %v2154, 96
      %v2404 = vpop.permute.xlu0 %2403
      %2405 = vrot.lane.b32.xlu0 %v2156, 96
      %v2406 = vpop.permute.xlu0 %2405
      %2407 = vrot.lane.b32.xlu0 %v2159, 96
      %v2408 = vpop.permute.xlu0 %2407
      %2409 = vrot.lane.b32.xlu0 %v2161, 96
      %v2410 = vpop.permute.xlu0 %2409
      %2411 = vrot.lane.b32.xlu0 %v2164, 96
      %v2412 = vpop.permute.xlu0 %2411
      %2413 = vrot.lane.b32.xlu0 %v2166, 96
      %v2414 = vpop.permute.xlu0 %2413
      %2415 = vrot.lane.b32.xlu0 %v2211, 96
      %v2416 = vpop.permute.xlu0 %2415
      %2417 = vrot.lane.b32.xlu0 %v2213, 96
      %v2418 = vpop.permute.xlu0 %2417
      %2419 = vrot.lane.b32.xlu0 %v2216, 96
      %v2420 = vpop.permute.xlu0 %2419
      %2421 = vrot.lane.b32.xlu0 %v2218, 96
      %v2422 = vpop.permute.xlu0 %2421
      %2423 = vrot.lane.b32.xlu0 %v2221, 96
      %v2424 = vpop.permute.xlu0 %2423
      %2425 = vrot.lane.b32.xlu0 %v2223, 96
      %v2426 = vpop.permute.xlu0 %2425
      %2459 = vrot.lane.b32.xlu0 %v246, 32
      %v2460 = vpop.permute.xlu0 %2459
      %2461 = vrot.lane.b32.xlu0 %v247, 32
      %v2462 = vpop.permute.xlu0 %2461
      %2463 = vrot.lane.b32.xlu0 %v250, 32
      %v2464 = vpop.permute.xlu0 %2463
      %2465 = vrot.lane.b32.xlu0 %v251, 32
      %v2466 = vpop.permute.xlu0 %2465
      %2467 = vrot.lane.b32.xlu0 %v254, 32
      %v2468 = vpop.permute.xlu0 %2467
      %2469 = vrot.lane.b32.xlu0 %v255, 32
      %v2470 = vpop.permute.xlu0 %2469
      %2471 = vrot.lane.b32.xlu0 %v258, 32
      %v2472 = vpop.permute.xlu0 %2471
      %2473 = vrot.lane.b32.xlu0 %v259, 32
      %v2474 = vpop.permute.xlu0 %2473
      %2475 = vrot.lane.b32.xlu0 %v262, 32
      %v2476 = vpop.permute.xlu0 %2475
      %2477 = vrot.lane.b32.xlu0 %v263, 32
      %v2478 = vpop.permute.xlu0 %2477
      %2479 = vrot.lane.b32.xlu0 %v266, 32
      %v2480 = vpop.permute.xlu0 %2479
      %2481 = vrot.lane.b32.xlu0 %v267, 32
      %v2482 = vpop.permute.xlu0 %2481
      %2483 = vrot.lane.b32.xlu0 %v270, 32
      %v2484 = vpop.permute.xlu0 %2483
      %2485 = vrot.lane.b32.xlu0 %v271, 32
      %v2486 = vpop.permute.xlu0 %2485
      %2487 = vrot.lane.b32.xlu0 %v274, 32
      %v2488 = vpop.permute.xlu0 %2487
      %2489 = vrot.lane.b32.xlu0 %v275, 32
      %v2490 = vpop.permute.xlu0 %2489
      %2491 = vrot.lane.b32.xlu0 %v278, 32
      %v2492 = vpop.permute.xlu0 %2491
      %2493 = vrot.lane.b32.xlu0 %v279, 32
      %v2494 = vpop.permute.xlu0 %2493
      %2495 = vrot.lane.b32.xlu0 %v282, 32
      %v2496 = vpop.permute.xlu0 %2495
      %2497 = vrot.lane.b32.xlu0 %v283, 32
      %v2498 = vpop.permute.xlu0 %2497
      %2499 = vrot.lane.b32.xlu0 %v286, 32
      %v2500 = vpop.permute.xlu0 %2499
      %2501 = vrot.lane.b32.xlu0 %v287, 32
      %v2502 = vpop.permute.xlu0 %2501
      %2503 = vrot.lane.b32.xlu0 %v290, 32
      %v2504 = vpop.permute.xlu0 %2503
      %2505 = vrot.lane.b32.xlu0 %v291, 32
      %v2506 = vpop.permute.xlu0 %2505
      %2507 = vrot.lane.b32.xlu0 %v294, 32
      %v2508 = vpop.permute.xlu0 %2507
      %2509 = vrot.lane.b32.xlu0 %v295, 32
      %v2510 = vpop.permute.xlu0 %2509
      %2511 = vrot.lane.b32.xlu0 %v298, 32
      %v2512 = vpop.permute.xlu0 %2511
      %2513 = vrot.lane.b32.xlu0 %v299, 32
      %v2514 = vpop.permute.xlu0 %2513
      %2515 = vrot.lane.b32.xlu0 %v302, 32
      %v2516 = vpop.permute.xlu0 %2515
      %2517 = vrot.lane.b32.xlu0 %v303, 32
      %v2518 = vpop.permute.xlu0 %2517
      %2519 = vrot.lane.b32.xlu0 %v306, 32
      %v2520 = vpop.permute.xlu0 %2519
      %2521 = vrot.lane.b32.xlu0 %v307, 32
      %v2522 = vpop.permute.xlu0 %2521
      %2555 = vrot.lane.b32.xlu0 %v2119, 64
      %v2556 = vpop.permute.xlu0 %2555
      %2557 = vrot.lane.b32.xlu0 %v2121, 64
      %v2558 = vpop.permute.xlu0 %2557
      %2559 = vrot.lane.b32.xlu0 %v2124, 64
      %v2560 = vpop.permute.xlu0 %2559
      %2561 = vrot.lane.b32.xlu0 %v2126, 64
      %v2562 = vpop.permute.xlu0 %2561
      %2563 = vrot.lane.b32.xlu0 %v2129, 64
      %v2564 = vpop.permute.xlu0 %2563
      %2565 = vrot.lane.b32.xlu0 %v2131, 64
      %v2566 = vpop.permute.xlu0 %2565
      %2567 = vrot.lane.b32.xlu0 %v2134, 64
      %v2568 = vpop.permute.xlu0 %2567
      %2569 = vrot.lane.b32.xlu0 %v2136, 64
      %v2570 = vpop.permute.xlu0 %2569
      %2571 = vrot.lane.b32.xlu0 %v2139, 64
      %v2572 = vpop.permute.xlu0 %2571
      %2573 = vrot.lane.b32.xlu0 %v2141, 64
      %v2574 = vpop.permute.xlu0 %2573
      %2575 = vrot.lane.b32.xlu0 %v2144, 64
      %v2576 = vpop.permute.xlu0 %2575
      %2577 = vrot.lane.b32.xlu0 %v2146, 64
      %v2578 = vpop.permute.xlu0 %2577
      %2579 = vrot.lane.b32.xlu0 %v2149, 64
      %v2580 = vpop.permute.xlu0 %2579
      %2581 = vrot.lane.b32.xlu0 %v2151, 64
      %v2582 = vpop.permute.xlu0 %2581
      %2583 = vrot.lane.b32.xlu0 %v2154, 64
      %v2584 = vpop.permute.xlu0 %2583
      %2585 = vrot.lane.b32.xlu0 %v2156, 64
      %v2586 = vpop.permute.xlu0 %2585
      %2587 = vrot.lane.b32.xlu0 %v2159, 64
      %v2588 = vpop.permute.xlu0 %2587
      %2589 = vrot.lane.b32.xlu0 %v2161, 64
      %v2590 = vpop.permute.xlu0 %2589
      %2591 = vrot.lane.b32.xlu0 %v2164, 64
      %v2592 = vpop.permute.xlu0 %2591
      %2593 = vrot.lane.b32.xlu0 %v2166, 64
      %v2594 = vpop.permute.xlu0 %2593
      %2595 = vrot.lane.b32.xlu0 %v2211, 64
      %v2596 = vpop.permute.xlu0 %2595
      %2597 = vrot.lane.b32.xlu0 %v2213, 64
      %v2598 = vpop.permute.xlu0 %2597
      %2599 = vrot.lane.b32.xlu0 %v2216, 64
      %v2600 = vpop.permute.xlu0 %2599
      %2601 = vrot.lane.b32.xlu0 %v2218, 64
      %v2602 = vpop.permute.xlu0 %2601
      %2603 = vrot.lane.b32.xlu0 %v2221, 64
      %v2604 = vpop.permute.xlu0 %2603
      %2605 = vrot.lane.b32.xlu0 %v2223, 64
      %v2606 = vpop.permute.xlu0 %2605
      %2607 = vrot.lane.b32.xlu0 %v2232, 64
      %v2608 = vpop.permute.xlu0 %2607
      %2609 = vrot.lane.b32.xlu0 %v2234, 64
      %v2610 = vpop.permute.xlu0 %2609
      %2611 = vrot.lane.b32.xlu0 %v2237, 64
      %v2612 = vpop.permute.xlu0 %2611
      %2613 = vrot.lane.b32.xlu0 %v2239, 64
      %v2614 = vpop.permute.xlu0 %2613
      %2615 = vrot.lane.b32.xlu0 %v2242, 64
      %v2616 = vpop.permute.xlu0 %2615
      %2617 = vrot.lane.b32.xlu0 %v2244, 64
      %v2618 = vpop.permute.xlu0 %2617
      %2651 = vrot.lane.b32.xlu0 %v2247, 96
      %v2652 = vpop.permute.xlu0 %2651
      %2653 = vrot.lane.b32.xlu0 %v2249, 96
      %v2654 = vpop.permute.xlu0 %2653
      %2655 = vrot.lane.b32.xlu0 %v2252, 96
      %v2656 = vpop.permute.xlu0 %2655
      %2657 = vrot.lane.b32.xlu0 %v2254, 96
      %v2658 = vpop.permute.xlu0 %2657
      %v2663 = vsel %vm1335, %v2089, %v2256
      %v2664 = vsel %vm1335, %v2091, %v2258
      %v2665 = vsel %vm1335, %v2094, %v2260
      %v2666 = vsel %vm1335, %v2096, %v2262
      %v2667 = vsel %vm1335, %v2099, %v760
      %v2668 = vsel %vm1335, %v2101, %v762
      %v2669 = vsel %vm1335, %v2104, %v764
      %v2670 = vsel %vm1335, %v2106, %v766
      %v2671 = vsel %vm1335, %v2109, %v768
      %v2672 = vsel %vm1335, %v2111, %v770
      %v2673 = vsel %vm1335, %v2114, %v772
      %v2674 = vsel %vm1335, %v2116, %v774
      %v2675 = vsel %vm1335, %v2119, %v776
      %v2676 = vsel %vm1335, %v2121, %v778
      %v2677 = vsel %vm1335, %v2124, %v780
      %v2678 = vsel %vm1335, %v2126, %v782
      %v2679 = vsel %vm1335, %v2129, %v784
      %v2680 = vsel %vm1335, %v2131, %v786
      %v2681 = vsel %vm1335, %v2134, %v788
      %v2682 = vsel %vm1335, %v2136, %v790
      %v2683 = vsel %vm1335, %v2139, %v792
      %v2684 = vsel %vm1335, %v2141, %v794
      %v2685 = vsel %vm1335, %v2144, %v796
      %v2686 = vsel %vm1335, %v2146, %v798
      %v2687 = vsel %vm1335, %v2149, %v800
      %v2688 = vsel %vm1335, %v2151, %v802
      %v2689 = vsel %vm1335, %v2154, %v804
      %v2690 = vsel %vm1335, %v2156, %v806
      %v2691 = vsel %vm1335, %v2159, %v808
      %v2692 = vsel %vm1335, %v2161, %v810
      %v2693 = vsel %vm1335, %v2164, %v812
      %v2694 = vsel %vm1335, %v2166, %v814
      %v2695 = vsel %vm1368, %v2663, %v2268
      %v2696 = vsel %vm1368, %v2664, %v2270
      %v2697 = vsel %vm1368, %v2665, %v2272
      %v2698 = vsel %vm1368, %v2666, %v2274
      %v2699 = vsel %vm1368, %v2667, %v2276
      %v2700 = vsel %vm1368, %v2668, %v2278
      %v2701 = vsel %vm1368, %v2669, %v2280
      %v2702 = vsel %vm1368, %v2670, %v2282
      %v2703 = vsel %vm1368, %v2671, %v2284
      %v2704 = vsel %vm1368, %v2672, %v2286
      %v2705 = vsel %vm1368, %v2673, %v2288
      %v2706 = vsel %vm1368, %v2674, %v2290
      %v2707 = vsel %vm1368, %v2675, %v2292
      %v2708 = vsel %vm1368, %v2676, %v2294
      %v2709 = vsel %vm1368, %v2677, %v2296
      %v2710 = vsel %vm1368, %v2678, %v2298
      %v2711 = vsel %vm1368, %v2679, %v2300
      %v2712 = vsel %vm1368, %v2680, %v2302
      %v2713 = vsel %vm1368, %v2681, %v2304
      %v2714 = vsel %vm1368, %v2682, %v2306
      %v2715 = vsel %vm1368, %v2683, %v2308
      %v2716 = vsel %vm1368, %v2684, %v2310
      %v2717 = vsel %vm1368, %v2685, %v2312
      %v2718 = vsel %vm1368, %v2686, %v2314
      %v2719 = vsel %vm1368, %v2687, %v2316
      %v2720 = vsel %vm1368, %v2688, %v2318
      %v2721 = vsel %vm1368, %v2689, %v2320
      %v2722 = vsel %vm1368, %v2690, %v2322
      %v2723 = vsel %vm1368, %v2691, %v2324
      %v2724 = vsel %vm1368, %v2692, %v2326
      %v2725 = vsel %vm1368, %v2693, %v2328
      %v2726 = vsel %vm1368, %v2694, %v2330
      %v2727 = vsel %vm1401, %v2695, %v2364
      %v2728 = vsel %vm1401, %v2696, %v2366
      %v2729 = vsel %vm1401, %v2697, %v2368
      %v2730 = vsel %vm1401, %v2698, %v2370
      %v2731 = vsel %vm1401, %v2699, %v2372
      %v2732 = vsel %vm1401, %v2700, %v2374
      %v2733 = vsel %vm1401, %v2701, %v2376
      %v2734 = vsel %vm1401, %v2702, %v2378
      %v2735 = vsel %vm1401, %v2703, %v2380
      %v2736 = vsel %vm1401, %v2704, %v2382
      %v2737 = vsel %vm1401, %v2705, %v2384
      %v2738 = vsel %vm1401, %v2706, %v2386
      %v2739 = vsel %vm1401, %v2707, %v2388
      %v2740 = vsel %vm1401, %v2708, %v2390
      %v2741 = vsel %vm1401, %v2709, %v2392
      %v2742 = vsel %vm1401, %v2710, %v2394
      %v2743 = vsel %vm1401, %v2711, %v2396
      %v2744 = vsel %vm1401, %v2712, %v2398
      %v2745 = vsel %vm1401, %v2713, %v2400
      %v2746 = vsel %vm1401, %v2714, %v2402
      %v2747 = vsel %vm1401, %v2715, %v2404
      %v2748 = vsel %vm1401, %v2716, %v2406
      %v2749 = vsel %vm1401, %v2717, %v2408
      %v2750 = vsel %vm1401, %v2718, %v2410
      %v2751 = vsel %vm1401, %v2719, %v2412
      %v2752 = vsel %vm1401, %v2720, %v2414
      %v2753 = vsel %vm1401, %v2721, %v2416
      %v2754 = vsel %vm1401, %v2722, %v2418
      %v2755 = vsel %vm1401, %v2723, %v2420
      %v2756 = vsel %vm1401, %v2724, %v2422
      %v2757 = vsel %vm1401, %v2725, %v2424
      %v2758 = vsel %vm1401, %v2726, %v2426
      %v2759 = vsel %vm1335, %v380, %v2460
      %v2760 = vsel %vm1335, %v382, %v2462
      %v2761 = vsel %vm1335, %v385, %v2464
      %v2762 = vsel %vm1335, %v387, %v2466
      %v2763 = vsel %vm1335, %v390, %v2468
      %v2764 = vsel %vm1335, %v392, %v2470
      %v2765 = vsel %vm1335, %v395, %v2472
      %v2766 = vsel %vm1335, %v397, %v2474
      %v2767 = vsel %vm1335, %v400, %v2476
      %v2768 = vsel %vm1335, %v402, %v2478
      %v2769 = vsel %vm1335, %v405, %v2480
      %v2770 = vsel %vm1335, %v407, %v2482
      %v2771 = vsel %vm1335, %v410, %v2484
      %v2772 = vsel %vm1335, %v412, %v2486
      %v2773 = vsel %vm1335, %v415, %v2488
      %v2774 = vsel %vm1335, %v417, %v2490
      %v2775 = vsel %vm1335, %v420, %v2492
      %v2776 = vsel %vm1335, %v422, %v2494
      %v2777 = vsel %vm1335, %v425, %v2496
      %v2778 = vsel %vm1335, %v427, %v2498
      %v2779 = vsel %vm1335, %v430, %v2500
      %v2780 = vsel %vm1335, %v432, %v2502
      %v2781 = vsel %vm1335, %v435, %v2504
      %v2782 = vsel %vm1335, %v437, %v2506
      %v2783 = vsel %vm1335, %v440, %v2508
      %v2784 = vsel %vm1335, %v442, %v2510
      %v2785 = vsel %vm1335, %v445, %v2512
      %v2786 = vsel %vm1335, %v447, %v2514
      %v2787 = vsel %vm1335, %v450, %v2516
      %v2788 = vsel %vm1335, %v452, %v2518
      %v2789 = vsel %vm1335, %v455, %v2520
      %v2790 = vsel %vm1335, %v457, %v2522
      %v2791 = vsel %vm1368, %v2759, %v2556
      %v2792 = vsel %vm1368, %v2760, %v2558
      %v2793 = vsel %vm1368, %v2761, %v2560
      %v2794 = vsel %vm1368, %v2762, %v2562
      %v2795 = vsel %vm1368, %v2763, %v2564
      %v2796 = vsel %vm1368, %v2764, %v2566
      %v2797 = vsel %vm1368, %v2765, %v2568
      %v2798 = vsel %vm1368, %v2766, %v2570
      %v2799 = vsel %vm1368, %v2767, %v2572
      %v2800 = vsel %vm1368, %v2768, %v2574
      %v2801 = vsel %vm1368, %v2769, %v2576
      %v2802 = vsel %vm1368, %v2770, %v2578
      %v2803 = vsel %vm1368, %v2771, %v2580
      %v2804 = vsel %vm1368, %v2772, %v2582
      %v2805 = vsel %vm1368, %v2773, %v2584
      %v2806 = vsel %vm1368, %v2774, %v2586
      %v2807 = vsel %vm1368, %v2775, %v2588
      %v2808 = vsel %vm1368, %v2776, %v2590
      %v2809 = vsel %vm1368, %v2777, %v2592
      %v2810 = vsel %vm1368, %v2778, %v2594
      %v2811 = vsel %vm1368, %v2779, %v2596
      %v2812 = vsel %vm1368, %v2780, %v2598
      %v2813 = vsel %vm1368, %v2781, %v2600
      %v2814 = vsel %vm1368, %v2782, %v2602
      %v2815 = vsel %vm1368, %v2783, %v2604
      %v2816 = vsel %vm1368, %v2784, %v2606
      %v2817 = vsel %vm1368, %v2785, %v2608
      %v2818 = vsel %vm1368, %v2786, %v2610
      %v2819 = vsel %vm1368, %v2787, %v2612
      %v2820 = vsel %vm1368, %v2788, %v2614
      %v2821 = vsel %vm1368, %v2789, %v2616
      %v2822 = vsel %vm1368, %v2790, %v2618
      %v2823 = vsel %vm1401, %v2791, %v1248
      %v2824 = vsel %vm1401, %v2792, %v1250
      %v2825 = vsel %vm1401, %v2793, %v1252
      %v2826 = vsel %vm1401, %v2794, %v1254
      %v2827 = vsel %vm1401, %v2795, %v1256
      %v2828 = vsel %vm1401, %v2796, %v1258
      %v2829 = vsel %vm1401, %v2797, %v1260
      %v2830 = vsel %vm1401, %v2798, %v1262
      %v2831 = vsel %vm1401, %v2799, %v1264
      %v2832 = vsel %vm1401, %v2800, %v1266
      %v2833 = vsel %vm1401, %v2801, %v1268
      %v2834 = vsel %vm1401, %v2802, %v1270
      %v2835 = vsel %vm1401, %v2803, %v1272
      %v2836 = vsel %vm1401, %v2804, %v1274
      %v2837 = vsel %vm1401, %v2805, %v1276
      %v2838 = vsel %vm1401, %v2806, %v1278
      %v2839 = vsel %vm1401, %v2807, %v1280
      %v2840 = vsel %vm1401, %v2808, %v1282
      %v2841 = vsel %vm1401, %v2809, %v1284
      %v2842 = vsel %vm1401, %v2810, %v1286
      %v2843 = vsel %vm1401, %v2811, %v1288
      %v2844 = vsel %vm1401, %v2812, %v1290
      %v2845 = vsel %vm1401, %v2813, %v1292
      %v2846 = vsel %vm1401, %v2814, %v1294
      %v2847 = vsel %vm1401, %v2815, %v1296
      %v2848 = vsel %vm1401, %v2816, %v1298
      %v2849 = vsel %vm1401, %v2817, %v1300
      %v2850 = vsel %vm1401, %v2818, %v1302
      %v2851 = vsel %vm1401, %v2819, %v2652
      %v2852 = vsel %vm1401, %v2820, %v2654
      %v2853 = vsel %vm1401, %v2821, %v2656
      %v2854 = vsel %vm1401, %v2822, %v2658
      %s2855 = scalar_lea.vmem %s1, 288
      %v2856 = vld [vmem:[%s2855] sm:$0xff]
      %v2857 = vld [vmem:[%s2855 + $0x8] sm:$0xff]
      %v2858 = vld [vmem:[%s2855 + $0x10] sm:$0xff]
      %v2859 = vld [vmem:[%s2855 + $0x18] sm:$0xff]
      %v2860 = vld [vmem:[%s2855 + $0x20] sm:$0xff]
      %v2861 = vld [vmem:[%s2855 + $0x28] sm:$0xff]
      %v2862 = vld [vmem:[%s2855 + $0x30] sm:$0xff]
      %v2863 = vld [vmem:[%s2855 + $0x38] sm:$0xff]
      %v2864 = vld [vmem:[%s2855 + $0x40] sm:$0xff]
      %v2865 = vld [vmem:[%s2855 + $0x48] sm:$0xff]
      %v2866 = vld [vmem:[%s2855 + $0x50] sm:$0xff]
      %v2867 = vld [vmem:[%s2855 + $0x58] sm:$0xff]
      %v2868 = vld [vmem:[%s2855 + $0x60] sm:$0xff]
      %v2869 = vld [vmem:[%s2855 + $0x68] sm:$0xff]
      %v2870 = vld [vmem:[%s2855 + $0x70] sm:$0xff]
      %v2871 = vld [vmem:[%s2855 + $0x78] sm:$0xff]
      %v2872 = vld [vmem:[%s2855 + $0x80] sm:$0xff]
      %v2873 = vld [vmem:[%s2855 + $0x88] sm:$0xff]
      %v2874 = vld [vmem:[%s2855 + $0x90] sm:$0xff]
      %v2875 = vld [vmem:[%s2855 + $0x98] sm:$0xff]
      %v2876 = vld [vmem:[%s2855 + $0xa0] sm:$0xff]
      %v2877 = vld [vmem:[%s2855 + $0xa8] sm:$0xff]
      %v2878 = vld [vmem:[%s2855 + $0xb0] sm:$0xff]
      %v2879 = vld [vmem:[%s2855 + $0xb8] sm:$0xff]
      %v2880 = vld [vmem:[%s2855 + $0xc0] sm:$0xff]
      %v2881 = vld [vmem:[%s2855 + $0xc8] sm:$0xff]
      %v2882 = vld [vmem:[%s2855 + $0xd0] sm:$0xff]
      %v2883 = vld [vmem:[%s2855 + $0xd8] sm:$0xff]
      %v2884 = vld [vmem:[%s2855 + $0xe0] sm:$0xff]
      %v2885 = vld [vmem:[%s2855 + $0xe8] sm:$0xff]
      %v2886 = vld [vmem:[%s2855 + $0xf0] sm:$0xff]
      %v2887 = vld [vmem:[%s2855 + $0xf8] sm:$0xff]
      %v2888 = vld [vmem:[%s2855 + $0x100] sm:$0xff]
      %v2889 = vld [vmem:[%s2855 + $0x108] sm:$0xff]
      %v2890 = vld [vmem:[%s2855 + $0x110] sm:$0xff]
      %v2891 = vld [vmem:[%s2855 + $0x118] sm:$0xff]
      %v2892 = vsel %vm1335, %v258, 0
      %v2894 = vsel %vm1335, %v259, 0
      %v2896 = vsel %vm1335, %v262, 0
      %v2898 = vsel %vm1335, %v263, 0
      %v2900 = vsel %vm1335, %v266, 0
      %v2902 = vsel %vm1335, %v267, 0
      %v2904 = vsel %vm1335, %v270, 0
      %v2906 = vsel %vm1335, %v271, 0
      %v2908 = vsel %vm1335, %v274, 0
      %v2910 = vsel %vm1335, %v275, 0
      %v2912 = vsel %vm1335, %v278, 0
      %v2914 = vsel %vm1335, %v279, 0
      %v2916 = vsel %vm1335, %v282, 0
      %v2918 = vsel %vm1335, %v283, 0
      %v2920 = vsel %vm1335, %v286, 0
      %v2922 = vsel %vm1335, %v287, 0
      %v2924 = vsel %vm1335, %v290, 0
      %v2926 = vsel %vm1335, %v291, 0
      %v2928 = vsel %vm1335, %v294, 0
      %v2930 = vsel %vm1335, %v295, 0
      %v2932 = vsel %vm1335, %v298, 0
      %v2934 = vsel %vm1335, %v299, 0
      %v2936 = vsel %vm1335, %v302, 0
      %v2938 = vsel %vm1335, %v303, 0
      %v2940 = vsel %vm1335, %v306, 0
      %v2942 = vsel %vm1335, %v307, 0
      %v2944 = vsel %vm1335, %v310, 0
      %v2946 = vsel %vm1335, %v311, 0
      %v2948 = vsel %vm1335, %v314, 0
      %v2950 = vsel %vm1335, %v315, 0
      %v2952 = vsel %vm1335, %v318, 0
      %v2954 = vsel %vm1335, %v319, 0
      %2956 = vmatprep.subr.mxu0 0.0
      %2957 = vmatpush1.msra.mxu0 %v2871
      %2958 = vmatprep.subr.mxu0 0.0
      %2959 = vmatpush1.msra.mxu0 %v2870
      %2960 = vmatprep.subr.mxu0 0.0
      %2961 = vmatpush1.msra.mxu0 %v2869
      %2962 = vmatprep.subr.mxu0 0.0
      %2963 = vmatpush1.msra.mxu0 %v2868
      %2964 = vmatprep.subr.mxu0 0.0
      %2965 = vmatpush1.msra.mxu0 %v2867
      %2966 = vmatprep.subr.mxu0 0.0
      %2967 = vmatpush1.msra.mxu0 %v2866
      %2968 = vmatprep.subr.mxu0 0.0
      %2969 = vmatpush1.msra.mxu0 %v2865
      %2970 = vmatprep.subr.mxu0 0.0
      %2971 = vmatpush1.msra.mxu0 %v2864
      %2972 = vmatprep.subr.mxu0 0.0
      %2973 = vmatpush1.msra.mxu0 %v2863
      %2974 = vmatprep.subr.mxu0 0.0
      %2975 = vmatpush1.msra.mxu0 %v2862
      %2976 = vmatprep.subr.mxu0 0.0
      %2977 = vmatpush1.msra.mxu0 %v2861
      %2978 = vmatprep.subr.mxu0 0.0
      %2979 = vmatpush1.msra.mxu0 %v2860
      %2980 = vmatprep.subr.mxu0 0.0
      %2981 = vmatpush1.msra.mxu0 %v2859
      %2982 = vmatprep.subr.mxu0 0.0
      %2983 = vmatpush1.msra.mxu0 %v2858
      %2984 = vmatprep.subr.mxu0 0.0
      %2985 = vmatpush1.msra.mxu0 %v2857
      %2986 = vmatprep.subr.mxu0 0.0
      %2987 = vmatpush1.msra.mxu0 %v2856
      %2988 = vmatprep.subr.mxu0 0.0
      %2989 = vmatpush2.msra.mxu0 %v2887
      %2990 = vmatprep.subr.mxu0 0.0
      %2991 = vmatpush2.msra.mxu0 %v2886
      %2992 = vmatprep.subr.mxu0 0.0
      %2993 = vmatpush2.msra.mxu0 %v2885
      %2994 = vmatprep.subr.mxu0 0.0
      %2995 = vmatpush2.msra.mxu0 %v2884
      %2996 = vmatprep.subr.mxu0 0.0
      %2997 = vmatpush2.msra.mxu0 %v2883
      %2998 = vmatprep.subr.mxu0 0.0
      %2999 = vmatpush2.msra.mxu0 %v2882
      %3000 = vmatprep.subr.mxu0 0.0
      %3001 = vmatpush2.msra.mxu0 %v2881
      %3002 = vmatprep.subr.mxu0 0.0
      %3003 = vmatpush2.msra.mxu0 %v2880
      %3004 = vmatprep.subr.mxu0 0.0
      %3005 = vmatpush2.msra.mxu0 %v2879
      %3006 = vmatprep.subr.mxu0 0.0
      %3007 = vmatpush2.msra.mxu0 %v2878
      %3008 = vmatprep.subr.mxu0 0.0
      %3009 = vmatpush2.msra.mxu0 %v2877
      %3010 = vmatprep.subr.mxu0 0.0
      %3011 = vmatpush2.msra.mxu0 %v2876
      %3012 = vmatprep.subr.mxu0 0.0
      %3013 = vmatpush2.msra.mxu0 %v2875
      %3014 = vmatprep.subr.mxu0 0.0
      %3015 = vmatpush2.msra.mxu0 %v2874
      %3016 = vmatprep.subr.mxu0 0.0
      %3017 = vmatpush2.msra.mxu0 %v2873
      %3018 = vmatprep.subr.mxu0 0.0
      %3019 = vmatpush2.msra.mxu0 %v2872
      %3020 = vmatprep.mubr.f32.mxu0 %v2823
      %3021 = vmatmul.mubr.f32.gmra.mxu0 %v2727
      %v3022 = vpop.f32.mrf.mxu0
      %v3023 = vadd.f32 0.0, %v3022
      %v3024 = vpop.f32.mrf.mxu0
      %3025 = vmatprep.mubr.f32.mxu0 %v2824
      %3026 = vmatmul.mubr.f32.gmra.mxu0 %v2728
      %v3027 = vpop.f32.mrf.mxu0
      %v3028 = vadd.f32 0.0, %v3027
      %v3029 = vpop.f32.mrf.mxu0
      %3030 = vmatprep.mubr.f32.mxu0 %v2825
      %3031 = vmatmul.mubr.f32.gmra.mxu0 %v2729
      %v3032 = vpop.f32.mrf.mxu0
      %v3033 = vadd.f32 0.0, %v3032
      %v3034 = vpop.f32.mrf.mxu0
      %3035 = vmatprep.mubr.f32.mxu0 %v2826
      %3036 = vmatmul.mubr.f32.gmra.mxu0 %v2730
      %v3037 = vpop.f32.mrf.mxu0
      %v3038 = vadd.f32 0.0, %v3037
      %v3039 = vpop.f32.mrf.mxu0
      %3040 = vmatprep.mubr.f32.mxu0 %v2827
      %3041 = vmatmul.mubr.f32.gmra.mxu0 %v2731
      %v3042 = vpop.f32.mrf.mxu0
      %v3043 = vadd.f32 0.0, %v3042
      %v3044 = vpop.f32.mrf.mxu0
      %3045 = vmatprep.mubr.f32.mxu0 %v2828
      %3046 = vmatmul.mubr.f32.gmra.mxu0 %v2732
      %v3047 = vpop.f32.mrf.mxu0
      %v3048 = vadd.f32 0.0, %v3047
      %v3049 = vpop.f32.mrf.mxu0
      %3050 = vmatprep.mubr.f32.mxu0 %v2829
      %3051 = vmatmul.mubr.f32.gmra.mxu0 %v2733
      %v3052 = vpop.f32.mrf.mxu0
      %v3053 = vadd.f32 0.0, %v3052
      %v3054 = vpop.f32.mrf.mxu0
      %3055 = vmatprep.mubr.f32.mxu0 %v2830
      %3056 = vmatmul.mubr.f32.gmra.mxu0 %v2734
      %v3057 = vpop.f32.mrf.mxu0
      %v3058 = vadd.f32 0.0, %v3057
      %v3059 = vpop.f32.mrf.mxu0
      %3060 = vmatprep.mubr.f32.mxu0 %v2831
      %3061 = vmatmul.mubr.f32.gmra.mxu0 %v2735
      %v3062 = vpop.f32.mrf.mxu0
      %v3063 = vadd.f32 0.0, %v3062
      %v3064 = vpop.f32.mrf.mxu0
      %3065 = vmatprep.mubr.f32.mxu0 %v2832
      %3066 = vmatmul.mubr.f32.gmra.mxu0 %v2736
      %v3067 = vpop.f32.mrf.mxu0
      %v3068 = vadd.f32 0.0, %v3067
      %v3069 = vpop.f32.mrf.mxu0
      %3070 = vmatprep.mubr.f32.mxu0 %v2833
      %3071 = vmatmul.mubr.f32.gmra.mxu0 %v2737
      %v3072 = vpop.f32.mrf.mxu0
      %v3073 = vadd.f32 0.0, %v3072
      %v3074 = vpop.f32.mrf.mxu0
      %3075 = vmatprep.mubr.f32.mxu0 %v2834
      %3076 = vmatmul.mubr.f32.gmra.mxu0 %v2738
      %v3077 = vpop.f32.mrf.mxu0
      %v3078 = vadd.f32 0.0, %v3077
      %v3079 = vpop.f32.mrf.mxu0
      %3080 = vmatprep.mubr.f32.mxu0 %v2835
      %3081 = vmatmul.mubr.f32.gmra.mxu0 %v2739
      %v3082 = vpop.f32.mrf.mxu0
      %v3083 = vadd.f32 0.0, %v3082
      %v3084 = vpop.f32.mrf.mxu0
      %3085 = vmatprep.mubr.f32.mxu0 %v2836
      %3086 = vmatmul.mubr.f32.gmra.mxu0 %v2740
      %v3087 = vpop.f32.mrf.mxu0
      %v3088 = vadd.f32 0.0, %v3087
      %v3089 = vpop.f32.mrf.mxu0
      %3090 = vmatprep.mubr.f32.mxu0 %v2837
      %3091 = vmatmul.mubr.f32.gmra.mxu0 %v2741
      %v3092 = vpop.f32.mrf.mxu0
      %v3093 = vadd.f32 0.0, %v3092
      %v3094 = vpop.f32.mrf.mxu0
      %3095 = vmatprep.mubr.f32.mxu0 %v2838
      %3096 = vmatmul.mubr.f32.gmra.mxu0 %v2742
      %v3097 = vpop.f32.mrf.mxu0
      %v3098 = vadd.f32 0.0, %v3097
      %v3099 = vpop.f32.mrf.mxu0
      %3100 = vmatprep.mubr.f32.mxu0 %v2839
      %3101 = vmatmul.mubr.f32.gmra.mxu0 %v2743
      %v3102 = vpop.f32.mrf.mxu0
      %v3103 = vadd.f32 0.0, %v3102
      %v3104 = vpop.f32.mrf.mxu0
      %3105 = vmatprep.mubr.f32.mxu0 %v2840
      %3106 = vmatmul.mubr.f32.gmra.mxu0 %v2744
      %v3107 = vpop.f32.mrf.mxu0
      %v3108 = vadd.f32 0.0, %v3107
      %v3109 = vpop.f32.mrf.mxu0
      %3110 = vmatprep.mubr.f32.mxu0 %v2841
      %3111 = vmatmul.mubr.f32.gmra.mxu0 %v2745
      %v3112 = vpop.f32.mrf.mxu0
      %v3113 = vadd.f32 0.0, %v3112
      %v3114 = vpop.f32.mrf.mxu0
      %3115 = vmatprep.mubr.f32.mxu0 %v2842
      %3116 = vmatmul.mubr.f32.gmra.mxu0 %v2746
      %v3117 = vpop.f32.mrf.mxu0
      %v3118 = vadd.f32 0.0, %v3117
      %v3119 = vpop.f32.mrf.mxu0
      %3120 = vmatprep.mubr.f32.mxu0 %v2843
      %3121 = vmatmul.mubr.f32.gmra.mxu0 %v2747
      %v3122 = vpop.f32.mrf.mxu0
      %v3123 = vadd.f32 0.0, %v3122
      %v3124 = vpop.f32.mrf.mxu0
      %3125 = vmatprep.mubr.f32.mxu0 %v2844
      %3126 = vmatmul.mubr.f32.gmra.mxu0 %v2748
      %v3127 = vpop.f32.mrf.mxu0
      %v3128 = vadd.f32 0.0, %v3127
      %v3129 = vpop.f32.mrf.mxu0
      %3130 = vmatprep.mubr.f32.mxu0 %v2845
      %3131 = vmatmul.mubr.f32.gmra.mxu0 %v2749
      %v3132 = vpop.f32.mrf.mxu0
      %v3133 = vadd.f32 0.0, %v3132
      %v3134 = vpop.f32.mrf.mxu0
      %3135 = vmatprep.mubr.f32.mxu0 %v2846
      %3136 = vmatmul.mubr.f32.gmra.mxu0 %v2750
      %v3137 = vpop.f32.mrf.mxu0
      %v3138 = vadd.f32 0.0, %v3137
      %v3139 = vpop.f32.mrf.mxu0
      %3140 = vmatprep.mubr.f32.mxu0 %v2847
      %3141 = vmatmul.mubr.f32.gmra.mxu0 %v2751
      %v3142 = vpop.f32.mrf.mxu0
      %v3143 = vadd.f32 0.0, %v3142
      %v3144 = vpop.f32.mrf.mxu0
      %3145 = vmatprep.mubr.f32.mxu0 %v2848
      %3146 = vmatmul.mubr.f32.gmra.mxu0 %v2752
      %v3147 = vpop.f32.mrf.mxu0
      %v3148 = vadd.f32 0.0, %v3147
      %v3149 = vpop.f32.mrf.mxu0
      %3150 = vmatprep.mubr.f32.mxu0 %v2849
      %3151 = vmatmul.mubr.f32.gmra.mxu0 %v2753
      %v3152 = vpop.f32.mrf.mxu0
      %v3153 = vadd.f32 0.0, %v3152
      %v3154 = vpop.f32.mrf.mxu0
      %3155 = vmatprep.mubr.f32.mxu0 %v2850
      %3156 = vmatmul.mubr.f32.gmra.mxu0 %v2754
      %v3157 = vpop.f32.mrf.mxu0
      %v3158 = vadd.f32 0.0, %v3157
      %v3159 = vpop.f32.mrf.mxu0
      %3160 = vmatprep.mubr.f32.mxu0 %v2851
      %3161 = vmatmul.mubr.f32.gmra.mxu0 %v2755
      %v3162 = vpop.f32.mrf.mxu0
      %v3163 = vadd.f32 0.0, %v3162
      %v3164 = vpop.f32.mrf.mxu0
      %3165 = vmatprep.mubr.f32.mxu0 %v2852
      %3166 = vmatmul.mubr.f32.gmra.mxu0 %v2756
      %v3167 = vpop.f32.mrf.mxu0
      %v3168 = vadd.f32 0.0, %v3167
      %v3169 = vpop.f32.mrf.mxu0
      %3170 = vmatprep.mubr.f32.mxu0 %v2853
      %3171 = vmatmul.mubr.f32.gmra.mxu0 %v2757
      %v3172 = vpop.f32.mrf.mxu0
      %v3173 = vadd.f32 0.0, %v3172
      %v3174 = vpop.f32.mrf.mxu0
      %3175 = vmatprep.mubr.f32.mxu0 %v2854
      %3176 = vmatmul.mubr.f32.gmra.mxu0 %v2758
      %v3177 = vpop.f32.mrf.mxu0
      %v3178 = vadd.f32 0.0, %v3177
      %v3179 = vpop.f32.mrf.mxu0
      %3180 = vdwg.mxu0
      %3181 = vmatprep.subr.mxu0 0.0
      %3182 = vmatpush1.msra.mxu0 0.0
      %3183 = vmatprep.subr.mxu0 0.0
      %3184 = vmatpush1.msra.mxu0 0.0
      %3185 = vmatprep.subr.mxu0 0.0
      %3186 = vmatpush1.msra.mxu0 0.0
      %3187 = vmatprep.subr.mxu0 0.0
      %3188 = vmatpush1.msra.mxu0 0.0
      %3189 = vmatprep.subr.mxu0 0.0
      %3190 = vmatpush1.msra.mxu0 0.0
      %3191 = vmatprep.subr.mxu0 0.0
      %3192 = vmatpush1.msra.mxu0 0.0
      %3193 = vmatprep.subr.mxu0 0.0
      %3194 = vmatpush1.msra.mxu0 0.0
      %3195 = vmatprep.subr.mxu0 0.0
      %3196 = vmatpush1.msra.mxu0 0.0
      %3197 = vmatprep.subr.mxu0 0.0
      %3198 = vmatpush1.msra.mxu0 0.0
      %3199 = vmatprep.subr.mxu0 0.0
      %3200 = vmatpush1.msra.mxu0 0.0
      %3201 = vmatprep.subr.mxu0 0.0
      %3202 = vmatpush1.msra.mxu0 0.0
      %3203 = vmatprep.subr.mxu0 0.0
      %3204 = vmatpush1.msra.mxu0 0.0
      %3205 = vmatprep.subr.mxu0 0.0
      %3206 = vmatpush1.msra.mxu0 %v2891
      %3207 = vmatprep.subr.mxu0 0.0
      %3208 = vmatpush1.msra.mxu0 %v2890
      %3209 = vmatprep.subr.mxu0 0.0
      %3210 = vmatpush1.msra.mxu0 %v2889
      %3211 = vmatprep.subr.mxu0 0.0
      %3212 = vmatpush1.msra.mxu0 %v2888
      %3213 = vmatprep.subr.mxu0 0.0
      %3214 = vmatpush2.msra.mxu0 0.0
      %3215 = vmatprep.subr.mxu0 0.0
      %3216 = vmatpush2.msra.mxu0 0.0
      %3217 = vmatprep.subr.mxu0 0.0
      %3218 = vmatpush2.msra.mxu0 0.0
      %3219 = vmatprep.subr.mxu0 0.0
      %3220 = vmatpush2.msra.mxu0 0.0
      %3221 = vmatprep.subr.mxu0 0.0
      %3222 = vmatpush2.msra.mxu0 0.0
      %3223 = vmatprep.subr.mxu0 0.0
      %3224 = vmatpush2.msra.mxu0 0.0
      %3225 = vmatprep.subr.mxu0 0.0
      %3226 = vmatpush2.msra.mxu0 0.0
      %3227 = vmatprep.subr.mxu0 0.0
      %3228 = vmatpush2.msra.mxu0 0.0
      %3229 = vmatprep.subr.mxu0 0.0
      %3230 = vmatpush2.msra.mxu0 0.0
      %3231 = vmatprep.subr.mxu0 0.0
      %3232 = vmatpush2.msra.mxu0 0.0
      %3233 = vmatprep.subr.mxu0 0.0
      %3234 = vmatpush2.msra.mxu0 0.0
      %3235 = vmatprep.subr.mxu0 0.0
      %3236 = vmatpush2.msra.mxu0 0.0
      %3237 = vmatprep.subr.mxu0 0.0
      %3238 = vmatpush2.msra.mxu0 0.0
      %3239 = vmatprep.subr.mxu0 0.0
      %3240 = vmatpush2.msra.mxu0 0.0
      %3241 = vmatprep.subr.mxu0 0.0
      %3242 = vmatpush2.msra.mxu0 0.0
      %3243 = vmatprep.subr.mxu0 0.0
      %3244 = vmatpush2.msra.mxu0 0.0
      %3245 = vmatprep.mubr.f32.mxu0 0.0
      %3246 = vmatmul.mubr.f32.gmra.mxu0 %v2892
      %v3247 = vpop.f32.mrf.mxu0
      %v3248 = vadd.f32 %v3023, %v3247
      %v3249 = vpop.f32.mrf.mxu0
      %3250 = vmatprep.mubr.f32.mxu0 0.0
      %3251 = vmatmul.mubr.f32.gmra.mxu0 %v2894
      %v3252 = vpop.f32.mrf.mxu0
      %v3253 = vadd.f32 %v3028, %v3252
      %v3254 = vpop.f32.mrf.mxu0
      %3255 = vmatprep.mubr.f32.mxu0 0.0
      %3256 = vmatmul.mubr.f32.gmra.mxu0 %v2896
      %v3257 = vpop.f32.mrf.mxu0
      %v3258 = vadd.f32 %v3033, %v3257
      %v3259 = vpop.f32.mrf.mxu0
      %3260 = vmatprep.mubr.f32.mxu0 0.0
      %3261 = vmatmul.mubr.f32.gmra.mxu0 %v2898
      %v3262 = vpop.f32.mrf.mxu0
      %v3263 = vadd.f32 %v3038, %v3262
      %v3264 = vpop.f32.mrf.mxu0
      %3265 = vmatprep.mubr.f32.mxu0 0.0
      %3266 = vmatmul.mubr.f32.gmra.mxu0 %v2900
      %v3267 = vpop.f32.mrf.mxu0
      %v3268 = vadd.f32 %v3043, %v3267
      %v3269 = vpop.f32.mrf.mxu0
      %3270 = vmatprep.mubr.f32.mxu0 0.0
      %3271 = vmatmul.mubr.f32.gmra.mxu0 %v2902
      %v3272 = vpop.f32.mrf.mxu0
      %v3273 = vadd.f32 %v3048, %v3272
      %v3274 = vpop.f32.mrf.mxu0
      %3275 = vmatprep.mubr.f32.mxu0 0.0
      %3276 = vmatmul.mubr.f32.gmra.mxu0 %v2904
      %v3277 = vpop.f32.mrf.mxu0
      %v3278 = vadd.f32 %v3053, %v3277
      %v3279 = vpop.f32.mrf.mxu0
      %3280 = vmatprep.mubr.f32.mxu0 0.0
      %3281 = vmatmul.mubr.f32.gmra.mxu0 %v2906
      %v3282 = vpop.f32.mrf.mxu0
      %v3283 = vadd.f32 %v3058, %v3282
      %v3284 = vpop.f32.mrf.mxu0
      %3285 = vmatprep.mubr.f32.mxu0 0.0
      %3286 = vmatmul.mubr.f32.gmra.mxu0 %v2908
      %v3287 = vpop.f32.mrf.mxu0
      %v3288 = vadd.f32 %v3063, %v3287
      %v3289 = vpop.f32.mrf.mxu0
      %3290 = vmatprep.mubr.f32.mxu0 0.0
      %3291 = vmatmul.mubr.f32.gmra.mxu0 %v2910
      %v3292 = vpop.f32.mrf.mxu0
      %v3293 = vadd.f32 %v3068, %v3292
      %v3294 = vpop.f32.mrf.mxu0
      %3295 = vmatprep.mubr.f32.mxu0 0.0
      %3296 = vmatmul.mubr.f32.gmra.mxu0 %v2912
      %v3297 = vpop.f32.mrf.mxu0
      %v3298 = vadd.f32 %v3073, %v3297
      %v3299 = vpop.f32.mrf.mxu0
      %3300 = vmatprep.mubr.f32.mxu0 0.0
      %3301 = vmatmul.mubr.f32.gmra.mxu0 %v2914
      %v3302 = vpop.f32.mrf.mxu0
      %v3303 = vadd.f32 %v3078, %v3302
      %v3304 = vpop.f32.mrf.mxu0
      %3305 = vmatprep.mubr.f32.mxu0 0.0
      %3306 = vmatmul.mubr.f32.gmra.mxu0 %v2916
      %v3307 = vpop.f32.mrf.mxu0
      %v3308 = vadd.f32 %v3083, %v3307
      %v3309 = vpop.f32.mrf.mxu0
      %3310 = vmatprep.mubr.f32.mxu0 0.0
      %3311 = vmatmul.mubr.f32.gmra.mxu0 %v2918
      %v3312 = vpop.f32.mrf.mxu0
      %v3313 = vadd.f32 %v3088, %v3312
      %v3314 = vpop.f32.mrf.mxu0
      %3315 = vmatprep.mubr.f32.mxu0 0.0
      %3316 = vmatmul.mubr.f32.gmra.mxu0 %v2920
      %v3317 = vpop.f32.mrf.mxu0
      %v3318 = vadd.f32 %v3093, %v3317
      %v3319 = vpop.f32.mrf.mxu0
      %3320 = vmatprep.mubr.f32.mxu0 0.0
      %3321 = vmatmul.mubr.f32.gmra.mxu0 %v2922
      %v3322 = vpop.f32.mrf.mxu0
      %v3323 = vadd.f32 %v3098, %v3322
      %v3324 = vpop.f32.mrf.mxu0
      %3325 = vmatprep.mubr.f32.mxu0 0.0
      %3326 = vmatmul.mubr.f32.gmra.mxu0 %v2924
      %v3327 = vpop.f32.mrf.mxu0
      %v3328 = vadd.f32 %v3103, %v3327
      %v3329 = vpop.f32.mrf.mxu0
      %3330 = vmatprep.mubr.f32.mxu0 0.0
      %3331 = vmatmul.mubr.f32.gmra.mxu0 %v2926
      %v3332 = vpop.f32.mrf.mxu0
      %v3333 = vadd.f32 %v3108, %v3332
      %v3334 = vpop.f32.mrf.mxu0
      %3335 = vmatprep.mubr.f32.mxu0 0.0
      %3336 = vmatmul.mubr.f32.gmra.mxu0 %v2928
      %v3337 = vpop.f32.mrf.mxu0
      %v3338 = vadd.f32 %v3113, %v3337
      %v3339 = vpop.f32.mrf.mxu0
      %3340 = vmatprep.mubr.f32.mxu0 0.0
      %3341 = vmatmul.mubr.f32.gmra.mxu0 %v2930
      %v3342 = vpop.f32.mrf.mxu0
      %v3343 = vadd.f32 %v3118, %v3342
      %v3344 = vpop.f32.mrf.mxu0
      %3345 = vmatprep.mubr.f32.mxu0 0.0
      %3346 = vmatmul.mubr.f32.gmra.mxu0 %v2932
      %v3347 = vpop.f32.mrf.mxu0
      %v3348 = vadd.f32 %v3123, %v3347
      %v3349 = vpop.f32.mrf.mxu0
      %3350 = vmatprep.mubr.f32.mxu0 0.0
      %3351 = vmatmul.mubr.f32.gmra.mxu0 %v2934
      %v3352 = vpop.f32.mrf.mxu0
      %v3353 = vadd.f32 %v3128, %v3352
      %v3354 = vpop.f32.mrf.mxu0
      %3355 = vmatprep.mubr.f32.mxu0 0.0
      %3356 = vmatmul.mubr.f32.gmra.mxu0 %v2936
      %v3357 = vpop.f32.mrf.mxu0
      %v3358 = vadd.f32 %v3133, %v3357
      %v3359 = vpop.f32.mrf.mxu0
      %3360 = vmatprep.mubr.f32.mxu0 0.0
      %3361 = vmatmul.mubr.f32.gmra.mxu0 %v2938
      %v3362 = vpop.f32.mrf.mxu0
      %v3363 = vadd.f32 %v3138, %v3362
      %v3364 = vpop.f32.mrf.mxu0
      %3365 = vmatprep.mubr.f32.mxu0 0.0
      %3366 = vmatmul.mubr.f32.gmra.mxu0 %v2940
      %v3367 = vpop.f32.mrf.mxu0
      %v3368 = vadd.f32 %v3143, %v3367
      %v3369 = vpop.f32.mrf.mxu0
      %3370 = vmatprep.mubr.f32.mxu0 0.0
      %3371 = vmatmul.mubr.f32.gmra.mxu0 %v2942
      %v3372 = vpop.f32.mrf.mxu0
      %v3373 = vadd.f32 %v3148, %v3372
      %v3374 = vpop.f32.mrf.mxu0
      %3375 = vmatprep.mubr.f32.mxu0 0.0
      %3376 = vmatmul.mubr.f32.gmra.mxu0 %v2944
      %v3377 = vpop.f32.mrf.mxu0
      %v3378 = vadd.f32 %v3153, %v3377
      %v3379 = vpop.f32.mrf.mxu0
      %3380 = vmatprep.mubr.f32.mxu0 0.0
      %3381 = vmatmul.mubr.f32.gmra.mxu0 %v2946
      %v3382 = vpop.f32.mrf.mxu0
      %v3383 = vadd.f32 %v3158, %v3382
      %v3384 = vpop.f32.mrf.mxu0
      %3385 = vmatprep.mubr.f32.mxu0 0.0
      %3386 = vmatmul.mubr.f32.gmra.mxu0 %v2948
      %v3387 = vpop.f32.mrf.mxu0
      %v3388 = vadd.f32 %v3163, %v3387
      %v3389 = vpop.f32.mrf.mxu0
      %3390 = vmatprep.mubr.f32.mxu0 0.0
      %3391 = vmatmul.mubr.f32.gmra.mxu0 %v2950
      %v3392 = vpop.f32.mrf.mxu0
      %v3393 = vadd.f32 %v3168, %v3392
      %v3394 = vpop.f32.mrf.mxu0
      %3395 = vmatprep.mubr.f32.mxu0 0.0
      %3396 = vmatmul.mubr.f32.gmra.mxu0 %v2952
      %v3397 = vpop.f32.mrf.mxu0
      %v3398 = vadd.f32 %v3173, %v3397
      %v3399 = vpop.f32.mrf.mxu0
      %3400 = vmatprep.mubr.f32.mxu0 0.0
      %3401 = vmatmul.mubr.f32.gmra.mxu0 %v2954
      %v3402 = vpop.f32.mrf.mxu0
      %v3403 = vadd.f32 %v3178, %v3402
      %v3404 = vpop.f32.mrf.mxu0
      %3405 = vdwg.mxu0
      %v3412 = vrot.slane %v225, 5
      %v3413 = vrot.slane %v226, 5
      %v3414 = vsel %vm377, %v3412, %v3413
      %v3415 = vrot.slane %v227, 5
      %v3416 = vsel %vm377, %v3413, %v3415
      %v3417 = vrot.slane %v229, 5
      %v3418 = vrot.slane %v230, 5
      %v3419 = vsel %vm377, %v3417, %v3418
      %v3420 = vrot.slane %v231, 5
      %v3421 = vsel %vm377, %v3418, %v3420
      %v3438 = vrot.slane %v226, 2
      %v3439 = vrot.slane %v227, 2
      %v3440 = vsel %vm2086, %v3438, %v3439
      %v3441 = vrot.slane %v228, 2
      %v3442 = vsel %vm2086, %v3439, %v3441
      %v3443 = vrot.slane %v230, 2
      %v3444 = vrot.slane %v231, 2
      %v3445 = vsel %vm2086, %v3443, %v3444
      %v3446 = vrot.slane %v232, 2
      %v3447 = vsel %vm2086, %v3444, %v3446
      %v3448 = vrot.slane %v236, 2
      %v3449 = vsel %vm2086, %v2090, %v3448
      %v3450 = vrot.slane %v240, 2
      %v3451 = vsel %vm2086, %v2095, %v3450
      %v3452 = vrot.slane %v244, 2
      %v3453 = vsel %vm2086, %v2100, %v3452
      %v3454 = vrot.slane %v248, 2
      %v3455 = vsel %vm2086, %v2105, %v3454
      %v3456 = vrot.slane %v252, 2
      %v3457 = vsel %vm2086, %v2110, %v3456
      %v3458 = vrot.slane %v256, 2
      %v3459 = vsel %vm2086, %v2115, %v3458
      %v3460 = vrot.slane %v260, 2
      %v3461 = vsel %vm2086, %v2120, %v3460
      %v3462 = vrot.slane %v264, 2
      %v3463 = vsel %vm2086, %v2125, %v3462
      %v3464 = vrot.slane %v268, 2
      %v3465 = vsel %vm2086, %v2130, %v3464
      %v3466 = vrot.slane %v272, 2
      %v3467 = vsel %vm2086, %v2135, %v3466
      %v3468 = vrot.slane %v276, 2
      %v3469 = vsel %vm2086, %v2140, %v3468
      %v3470 = vrot.slane %v280, 2
      %v3471 = vsel %vm2086, %v2145, %v3470
      %v3472 = vrot.slane %v284, 2
      %v3473 = vsel %vm2086, %v2150, %v3472
      %v3474 = vrot.slane %v288, 2
      %v3475 = vsel %vm2086, %v2155, %v3474
      %v3481 = vrot.slane %v292, 2
      %v3482 = vsel %vm2086, %v2160, %v3481
      %v3483 = vrot.slane %v296, 2
      %v3484 = vsel %vm2086, %v2165, %v3483
      %v3485 = vrot.slane %v300, 2
      %v3486 = vsel %vm2086, %v2212, %v3485
      %v3487 = vrot.slane %v304, 2
      %v3488 = vsel %vm2086, %v2217, %v3487
      %v3489 = vrot.slane %v308, 2
      %v3490 = vsel %vm2086, %v2222, %v3489
      %v3497 = vrot.slane %v321, 5
      %v3498 = vrot.slane %v322, 5
      %v3499 = vsel %vm377, %v3497, %v3498
      %v3500 = vrot.slane %v323, 5
      %v3501 = vsel %vm377, %v3498, %v3500
      %v3502 = vrot.slane %v325, 5
      %v3503 = vrot.slane %v326, 5
      %v3504 = vsel %vm377, %v3502, %v3503
      %v3505 = vrot.slane %v327, 5
      %v3506 = vsel %vm377, %v3503, %v3505
      %v3512 = vrot.slane %v312, 2
      %v3513 = vsel %vm2086, %v2233, %v3512
      %v3514 = vrot.slane %v316, 2
      %v3515 = vsel %vm2086, %v2238, %v3514
      %v3516 = vrot.slane %v320, 2
      %v3517 = vsel %vm2086, %v2243, %v3516
      %v3518 = vrot.slane %v322, 2
      %v3519 = vrot.slane %v323, 2
      %v3520 = vsel %vm2086, %v3518, %v3519
      %v3521 = vrot.slane %v324, 2
      %v3522 = vsel %vm2086, %v3519, %v3521
      %v3523 = vrot.slane %v326, 2
      %v3524 = vrot.slane %v327, 2
      %v3525 = vsel %vm2086, %v3523, %v3524
      %v3526 = vrot.slane %v328, 2
      %v3527 = vsel %vm2086, %v3524, %v3526
      %3528 = vrot.lane.b32.xlu0 %v3414, 32
      %v3529 = vpop.permute.xlu0 %3528
      %3530 = vrot.lane.b32.xlu0 %v3416, 32
      %v3531 = vpop.permute.xlu0 %3530
      %3532 = vrot.lane.b32.xlu0 %v3419, 32
      %v3533 = vpop.permute.xlu0 %3532
      %3534 = vrot.lane.b32.xlu0 %v3421, 32
      %v3535 = vpop.permute.xlu0 %3534
      %3540 = vrot.lane.b32.xlu0 %v3440, 64
      %v3541 = vpop.permute.xlu0 %3540
      %3542 = vrot.lane.b32.xlu0 %v3442, 64
      %v3543 = vpop.permute.xlu0 %3542
      %3544 = vrot.lane.b32.xlu0 %v3445, 64
      %v3545 = vpop.permute.xlu0 %3544
      %3546 = vrot.lane.b32.xlu0 %v3447, 64
      %v3547 = vpop.permute.xlu0 %3546
      %3548 = vrot.lane.b32.xlu0 %v2091, 64
      %v3549 = vpop.permute.xlu0 %3548
      %3550 = vrot.lane.b32.xlu0 %v3449, 64
      %v3551 = vpop.permute.xlu0 %3550
      %3552 = vrot.lane.b32.xlu0 %v2096, 64
      %v3553 = vpop.permute.xlu0 %3552
      %3554 = vrot.lane.b32.xlu0 %v3451, 64
      %v3555 = vpop.permute.xlu0 %3554
      %3556 = vrot.lane.b32.xlu0 %v2101, 64
      %v3557 = vpop.permute.xlu0 %3556
      %3558 = vrot.lane.b32.xlu0 %v3453, 64
      %v3559 = vpop.permute.xlu0 %3558
      %3560 = vrot.lane.b32.xlu0 %v2106, 64
      %v3561 = vpop.permute.xlu0 %3560
      %3562 = vrot.lane.b32.xlu0 %v3455, 64
      %v3563 = vpop.permute.xlu0 %3562
      %3564 = vrot.lane.b32.xlu0 %v2111, 64
      %v3565 = vpop.permute.xlu0 %3564
      %3566 = vrot.lane.b32.xlu0 %v3457, 64
      %v3567 = vpop.permute.xlu0 %3566
      %3568 = vrot.lane.b32.xlu0 %v2116, 64
      %v3569 = vpop.permute.xlu0 %3568
      %3570 = vrot.lane.b32.xlu0 %v3459, 64
      %v3571 = vpop.permute.xlu0 %3570
      %3572 = vrot.lane.b32.xlu0 %v3461, 64
      %v3573 = vpop.permute.xlu0 %3572
      %3574 = vrot.lane.b32.xlu0 %v3463, 64
      %v3575 = vpop.permute.xlu0 %3574
      %3576 = vrot.lane.b32.xlu0 %v3465, 64
      %v3577 = vpop.permute.xlu0 %3576
      %3578 = vrot.lane.b32.xlu0 %v3467, 64
      %v3579 = vpop.permute.xlu0 %3578
      %3580 = vrot.lane.b32.xlu0 %v3469, 64
      %v3581 = vpop.permute.xlu0 %3580
      %3582 = vrot.lane.b32.xlu0 %v3471, 64
      %v3583 = vpop.permute.xlu0 %3582
      %3584 = vrot.lane.b32.xlu0 %v3473, 64
      %v3585 = vpop.permute.xlu0 %3584
      %3586 = vrot.lane.b32.xlu0 %v3475, 64
      %v3587 = vpop.permute.xlu0 %3586
      %3612 = vrot.lane.b32.xlu0 %v245, 96
      %v3613 = vpop.permute.xlu0 %3612
      %3614 = vrot.lane.b32.xlu0 %v246, 96
      %v3615 = vpop.permute.xlu0 %3614
      %3616 = vrot.lane.b32.xlu0 %v249, 96
      %v3617 = vpop.permute.xlu0 %3616
      %3618 = vrot.lane.b32.xlu0 %v250, 96
      %v3619 = vpop.permute.xlu0 %3618
      %3620 = vrot.lane.b32.xlu0 %v253, 96
      %v3621 = vpop.permute.xlu0 %3620
      %3622 = vrot.lane.b32.xlu0 %v254, 96
      %v3623 = vpop.permute.xlu0 %3622
      %3624 = vrot.lane.b32.xlu0 %v257, 96
      %v3625 = vpop.permute.xlu0 %3624
      %3626 = vrot.lane.b32.xlu0 %v258, 96
      %v3627 = vpop.permute.xlu0 %3626
      %3628 = vrot.lane.b32.xlu0 %v261, 96
      %v3629 = vpop.permute.xlu0 %3628
      %3630 = vrot.lane.b32.xlu0 %v262, 96
      %v3631 = vpop.permute.xlu0 %3630
      %3632 = vrot.lane.b32.xlu0 %v265, 96
      %v3633 = vpop.permute.xlu0 %3632
      %3634 = vrot.lane.b32.xlu0 %v266, 96
      %v3635 = vpop.permute.xlu0 %3634
      %3636 = vrot.lane.b32.xlu0 %v269, 96
      %v3637 = vpop.permute.xlu0 %3636
      %3638 = vrot.lane.b32.xlu0 %v270, 96
      %v3639 = vpop.permute.xlu0 %3638
      %3640 = vrot.lane.b32.xlu0 %v273, 96
      %v3641 = vpop.permute.xlu0 %3640
      %3642 = vrot.lane.b32.xlu0 %v274, 96
      %v3643 = vpop.permute.xlu0 %3642
      %3644 = vrot.lane.b32.xlu0 %v277, 96
      %v3645 = vpop.permute.xlu0 %3644
      %3646 = vrot.lane.b32.xlu0 %v278, 96
      %v3647 = vpop.permute.xlu0 %3646
      %3648 = vrot.lane.b32.xlu0 %v281, 96
      %v3649 = vpop.permute.xlu0 %3648
      %3650 = vrot.lane.b32.xlu0 %v282, 96
      %v3651 = vpop.permute.xlu0 %3650
      %3652 = vrot.lane.b32.xlu0 %v285, 96
      %v3653 = vpop.permute.xlu0 %3652
      %3654 = vrot.lane.b32.xlu0 %v286, 96
      %v3655 = vpop.permute.xlu0 %3654
      %3656 = vrot.lane.b32.xlu0 %v289, 96
      %v3657 = vpop.permute.xlu0 %3656
      %3658 = vrot.lane.b32.xlu0 %v290, 96
      %v3659 = vpop.permute.xlu0 %3658
      %3660 = vrot.lane.b32.xlu0 %v293, 96
      %v3661 = vpop.permute.xlu0 %3660
      %3662 = vrot.lane.b32.xlu0 %v294, 96
      %v3663 = vpop.permute.xlu0 %3662
      %3664 = vrot.lane.b32.xlu0 %v297, 96
      %v3665 = vpop.permute.xlu0 %3664
      %3666 = vrot.lane.b32.xlu0 %v298, 96
      %v3667 = vpop.permute.xlu0 %3666
      %3668 = vrot.lane.b32.xlu0 %v301, 96
      %v3669 = vpop.permute.xlu0 %3668
      %3670 = vrot.lane.b32.xlu0 %v302, 96
      %v3671 = vpop.permute.xlu0 %3670
      %3672 = vrot.lane.b32.xlu0 %v305, 96
      %v3673 = vpop.permute.xlu0 %3672
      %3674 = vrot.lane.b32.xlu0 %v306, 96
      %v3675 = vpop.permute.xlu0 %3674
      %3708 = vrot.lane.b32.xlu0 %v2106, 32
      %v3709 = vpop.permute.xlu0 %3708
      %3710 = vrot.lane.b32.xlu0 %v3455, 32
      %v3711 = vpop.permute.xlu0 %3710
      %3712 = vrot.lane.b32.xlu0 %v2111, 32
      %v3713 = vpop.permute.xlu0 %3712
      %3714 = vrot.lane.b32.xlu0 %v3457, 32
      %v3715 = vpop.permute.xlu0 %3714
      %3716 = vrot.lane.b32.xlu0 %v2116, 32
      %v3717 = vpop.permute.xlu0 %3716
      %3718 = vrot.lane.b32.xlu0 %v3459, 32
      %v3719 = vpop.permute.xlu0 %3718
      %3720 = vrot.lane.b32.xlu0 %v2121, 32
      %v3721 = vpop.permute.xlu0 %3720
      %3722 = vrot.lane.b32.xlu0 %v3461, 32
      %v3723 = vpop.permute.xlu0 %3722
      %3724 = vrot.lane.b32.xlu0 %v2126, 32
      %v3725 = vpop.permute.xlu0 %3724
      %3726 = vrot.lane.b32.xlu0 %v3463, 32
      %v3727 = vpop.permute.xlu0 %3726
      %3728 = vrot.lane.b32.xlu0 %v2131, 32
      %v3729 = vpop.permute.xlu0 %3728
      %3730 = vrot.lane.b32.xlu0 %v3465, 32
      %v3731 = vpop.permute.xlu0 %3730
      %3732 = vrot.lane.b32.xlu0 %v2136, 32
      %v3733 = vpop.permute.xlu0 %3732
      %3734 = vrot.lane.b32.xlu0 %v3467, 32
      %v3735 = vpop.permute.xlu0 %3734
      %3736 = vrot.lane.b32.xlu0 %v2141, 32
      %v3737 = vpop.permute.xlu0 %3736
      %3738 = vrot.lane.b32.xlu0 %v3469, 32
      %v3739 = vpop.permute.xlu0 %3738
      %3740 = vrot.lane.b32.xlu0 %v2146, 32
      %v3741 = vpop.permute.xlu0 %3740
      %3742 = vrot.lane.b32.xlu0 %v3471, 32
      %v3743 = vpop.permute.xlu0 %3742
      %3744 = vrot.lane.b32.xlu0 %v2151, 32
      %v3745 = vpop.permute.xlu0 %3744
      %3746 = vrot.lane.b32.xlu0 %v3473, 32
      %v3747 = vpop.permute.xlu0 %3746
      %3748 = vrot.lane.b32.xlu0 %v2156, 32
      %v3749 = vpop.permute.xlu0 %3748
      %3750 = vrot.lane.b32.xlu0 %v3475, 32
      %v3751 = vpop.permute.xlu0 %3750
      %3752 = vrot.lane.b32.xlu0 %v2161, 32
      %v3753 = vpop.permute.xlu0 %3752
      %3754 = vrot.lane.b32.xlu0 %v3482, 32
      %v3755 = vpop.permute.xlu0 %3754
      %3756 = vrot.lane.b32.xlu0 %v2166, 32
      %v3757 = vpop.permute.xlu0 %3756
      %3758 = vrot.lane.b32.xlu0 %v3484, 32
      %v3759 = vpop.permute.xlu0 %3758
      %3760 = vrot.lane.b32.xlu0 %v2213, 32
      %v3761 = vpop.permute.xlu0 %3760
      %3762 = vrot.lane.b32.xlu0 %v3486, 32
      %v3763 = vpop.permute.xlu0 %3762
      %3764 = vrot.lane.b32.xlu0 %v2218, 32
      %v3765 = vpop.permute.xlu0 %3764
      %3766 = vrot.lane.b32.xlu0 %v3488, 32
      %v3767 = vpop.permute.xlu0 %3766
      %3768 = vrot.lane.b32.xlu0 %v2223, 32
      %v3769 = vpop.permute.xlu0 %3768
      %3770 = vrot.lane.b32.xlu0 %v3490, 32
      %v3771 = vpop.permute.xlu0 %3770
      %3804 = vrot.lane.b32.xlu0 %v265, 64
      %v3805 = vpop.permute.xlu0 %3804
      %3806 = vrot.lane.b32.xlu0 %v269, 64
      %v3807 = vpop.permute.xlu0 %3806
      %3808 = vrot.lane.b32.xlu0 %v273, 64
      %v3809 = vpop.permute.xlu0 %3808
      %3810 = vrot.lane.b32.xlu0 %v277, 64
      %v3811 = vpop.permute.xlu0 %3810
      %3812 = vrot.lane.b32.xlu0 %v281, 64
      %v3813 = vpop.permute.xlu0 %3812
      %3814 = vrot.lane.b32.xlu0 %v285, 64
      %v3815 = vpop.permute.xlu0 %3814
      %3816 = vrot.lane.b32.xlu0 %v289, 64
      %v3817 = vpop.permute.xlu0 %3816
      %3818 = vrot.lane.b32.xlu0 %v293, 64
      %v3819 = vpop.permute.xlu0 %3818
      %3820 = vrot.lane.b32.xlu0 %v297, 64
      %v3821 = vpop.permute.xlu0 %3820
      %3822 = vrot.lane.b32.xlu0 %v298, 64
      %v3823 = vpop.permute.xlu0 %3822
      %3824 = vrot.lane.b32.xlu0 %v301, 64
      %v3825 = vpop.permute.xlu0 %3824
      %3826 = vrot.lane.b32.xlu0 %v302, 64
      %v3827 = vpop.permute.xlu0 %3826
      %3828 = vrot.lane.b32.xlu0 %v305, 64
      %v3829 = vpop.permute.xlu0 %3828
      %3830 = vrot.lane.b32.xlu0 %v306, 64
      %v3831 = vpop.permute.xlu0 %3830
      %3832 = vrot.lane.b32.xlu0 %v309, 64
      %v3833 = vpop.permute.xlu0 %3832
      %3834 = vrot.lane.b32.xlu0 %v310, 64
      %v3835 = vpop.permute.xlu0 %3834
      %3836 = vrot.lane.b32.xlu0 %v313, 64
      %v3837 = vpop.permute.xlu0 %3836
      %3838 = vrot.lane.b32.xlu0 %v314, 64
      %v3839 = vpop.permute.xlu0 %3838
      %3840 = vrot.lane.b32.xlu0 %v317, 64
      %v3841 = vpop.permute.xlu0 %3840
      %3842 = vrot.lane.b32.xlu0 %v318, 64
      %v3843 = vpop.permute.xlu0 %3842
      %3844 = vrot.lane.b32.xlu0 %v321, 64
      %v3845 = vpop.permute.xlu0 %3844
      %3846 = vrot.lane.b32.xlu0 %v322, 64
      %v3847 = vpop.permute.xlu0 %3846
      %3848 = vrot.lane.b32.xlu0 %v325, 64
      %v3849 = vpop.permute.xlu0 %3848
      %3850 = vrot.lane.b32.xlu0 %v326, 64
      %v3851 = vpop.permute.xlu0 %3850
      %3876 = vrot.lane.b32.xlu0 %v3499, 96
      %v3877 = vpop.permute.xlu0 %3876
      %3878 = vrot.lane.b32.xlu0 %v3501, 96
      %v3879 = vpop.permute.xlu0 %3878
      %3880 = vrot.lane.b32.xlu0 %v3504, 96
      %v3881 = vpop.permute.xlu0 %3880
      %3882 = vrot.lane.b32.xlu0 %v3506, 96
      %v3883 = vpop.permute.xlu0 %3882
      %v3888 = vsel %vm1335, %v225, %v3529
      %v3889 = vsel %vm1335, %v226, %v3531
      %v3890 = vsel %vm1335, %v229, %v3533
      %v3891 = vsel %vm1335, %v230, %v3535
      %v3892 = vsel %vm1335, %v233, %v2256
      %v3893 = vsel %vm1335, %v234, %v2258
      %v3894 = vsel %vm1335, %v237, %v2260
      %v3895 = vsel %vm1335, %v238, %v2262
      %v3896 = vsel %vm1335, %v241, %v760
      %v3897 = vsel %vm1335, %v242, %v762
      %v3898 = vsel %vm1335, %v245, %v764
      %v3899 = vsel %vm1335, %v246, %v766
      %v3900 = vsel %vm1335, %v249, %v768
      %v3901 = vsel %vm1335, %v250, %v770
      %v3902 = vsel %vm1335, %v253, %v772
      %v3903 = vsel %vm1335, %v254, %v774
      %v3904 = vsel %vm1335, %v257, %v776
      %v3905 = vsel %vm1335, %v258, %v778
      %v3906 = vsel %vm1335, %v261, %v780
      %v3907 = vsel %vm1335, %v262, %v782
      %v3908 = vsel %vm1335, %v265, %v784
      %v3909 = vsel %vm1335, %v266, %v786
      %v3910 = vsel %vm1335, %v269, %v788
      %v3911 = vsel %vm1335, %v270, %v790
      %v3912 = vsel %vm1335, %v273, %v792
      %v3913 = vsel %vm1335, %v274, %v794
      %v3914 = vsel %vm1335, %v277, %v796
      %v3915 = vsel %vm1335, %v278, %v798
      %v3916 = vsel %vm1335, %v281, %v800
      %v3917 = vsel %vm1335, %v282, %v802
      %v3918 = vsel %vm1335, %v285, %v804
      %v3919 = vsel %vm1335, %v286, %v806
      %v3920 = vsel %vm1368, %v3888, %v3541
      %v3921 = vsel %vm1368, %v3889, %v3543
      %v3922 = vsel %vm1368, %v3890, %v3545
      %v3923 = vsel %vm1368, %v3891, %v3547
      %v3924 = vsel %vm1368, %v3892, %v3549
      %v3925 = vsel %vm1368, %v3893, %v3551
      %v3926 = vsel %vm1368, %v3894, %v3553
      %v3927 = vsel %vm1368, %v3895, %v3555
      %v3928 = vsel %vm1368, %v3896, %v3557
      %v3929 = vsel %vm1368, %v3897, %v3559
      %v3930 = vsel %vm1368, %v3898, %v3561
      %v3931 = vsel %vm1368, %v3899, %v3563
      %v3932 = vsel %vm1368, %v3900, %v3565
      %v3933 = vsel %vm1368, %v3901, %v3567
      %v3934 = vsel %vm1368, %v3902, %v3569
      %v3935 = vsel %vm1368, %v3903, %v3571
      %v3936 = vsel %vm1368, %v3904, %v2558
      %v3937 = vsel %vm1368, %v3905, %v3573
      %v3938 = vsel %vm1368, %v3906, %v2562
      %v3939 = vsel %vm1368, %v3907, %v3575
      %v3940 = vsel %vm1368, %v3908, %v2566
      %v3941 = vsel %vm1368, %v3909, %v3577
      %v3942 = vsel %vm1368, %v3910, %v2570
      %v3943 = vsel %vm1368, %v3911, %v3579
      %v3944 = vsel %vm1368, %v3912, %v2574
      %v3945 = vsel %vm1368, %v3913, %v3581
      %v3946 = vsel %vm1368, %v3914, %v2578
      %v3947 = vsel %vm1368, %v3915, %v3583
      %v3948 = vsel %vm1368, %v3916, %v2582
      %v3949 = vsel %vm1368, %v3917, %v3585
      %v3950 = vsel %vm1368, %v3918, %v2586
      %v3951 = vsel %vm1368, %v3919, %v3587
      %v3952 = vsel %vm1401, %v3920, %v3613
      %v3953 = vsel %vm1401, %v3921, %v3615
      %v3954 = vsel %vm1401, %v3922, %v3617
      %v3955 = vsel %vm1401, %v3923, %v3619
      %v3956 = vsel %vm1401, %v3924, %v3621
      %v3957 = vsel %vm1401, %v3925, %v3623
      %v3958 = vsel %vm1401, %v3926, %v3625
      %v3959 = vsel %vm1401, %v3927, %v3627
      %v3960 = vsel %vm1401, %v3928, %v3629
      %v3961 = vsel %vm1401, %v3929, %v3631
      %v3962 = vsel %vm1401, %v3930, %v3633
      %v3963 = vsel %vm1401, %v3931, %v3635
      %v3964 = vsel %vm1401, %v3932, %v3637
      %v3965 = vsel %vm1401, %v3933, %v3639
      %v3966 = vsel %vm1401, %v3934, %v3641
      %v3967 = vsel %vm1401, %v3935, %v3643
      %v3968 = vsel %vm1401, %v3936, %v3645
      %v3969 = vsel %vm1401, %v3937, %v3647
      %v3970 = vsel %vm1401, %v3938, %v3649
      %v3971 = vsel %vm1401, %v3939, %v3651
      %v3972 = vsel %vm1401, %v3940, %v3653
      %v3973 = vsel %vm1401, %v3941, %v3655
      %v3974 = vsel %vm1401, %v3942, %v3657
      %v3975 = vsel %vm1401, %v3943, %v3659
      %v3976 = vsel %vm1401, %v3944, %v3661
      %v3977 = vsel %vm1401, %v3945, %v3663
      %v3978 = vsel %vm1401, %v3946, %v3665
      %v3979 = vsel %vm1401, %v3947, %v3667
      %v3980 = vsel %vm1401, %v3948, %v3669
      %v3981 = vsel %vm1401, %v3949, %v3671
      %v3982 = vsel %vm1401, %v3950, %v3673
      %v3983 = vsel %vm1401, %v3951, %v3675
      %v3984 = vsel %vm1335, %v380, %v3709
      %v3985 = vsel %vm1335, %v382, %v3711
      %v3986 = vsel %vm1335, %v385, %v3713
      %v3987 = vsel %vm1335, %v387, %v3715
      %v3988 = vsel %vm1335, %v390, %v3717
      %v3989 = vsel %vm1335, %v392, %v3719
      %v3990 = vsel %vm1335, %v395, %v3721
      %v3991 = vsel %vm1335, %v397, %v3723
      %v3992 = vsel %vm1335, %v400, %v3725
      %v3993 = vsel %vm1335, %v402, %v3727
      %v3994 = vsel %vm1335, %v405, %v3729
      %v3995 = vsel %vm1335, %v407, %v3731
      %v3996 = vsel %vm1335, %v410, %v3733
      %v3997 = vsel %vm1335, %v412, %v3735
      %v3998 = vsel %vm1335, %v415, %v3737
      %v3999 = vsel %vm1335, %v417, %v3739
      %v4000 = vsel %vm1335, %v420, %v3741
      %v4001 = vsel %vm1335, %v422, %v3743
      %v4002 = vsel %vm1335, %v425, %v3745
      %v4003 = vsel %vm1335, %v427, %v3747
      %v4004 = vsel %vm1335, %v430, %v3749
      %v4005 = vsel %vm1335, %v432, %v3751
      %v4006 = vsel %vm1335, %v435, %v3753
      %v4007 = vsel %vm1335, %v437, %v3755
      %v4008 = vsel %vm1335, %v440, %v3757
      %v4009 = vsel %vm1335, %v442, %v3759
      %v4010 = vsel %vm1335, %v445, %v3761
      %v4011 = vsel %vm1335, %v447, %v3763
      %v4012 = vsel %vm1335, %v450, %v3765
      %v4013 = vsel %vm1335, %v452, %v3767
      %v4014 = vsel %vm1335, %v455, %v3769
      %v4015 = vsel %vm1335, %v457, %v3771
      %v4016 = vsel %vm1368, %v3984, %v3805
      %v4017 = vsel %vm1368, %v3985, %v2300
      %v4018 = vsel %vm1368, %v3986, %v3807
      %v4019 = vsel %vm1368, %v3987, %v2304
      %v4020 = vsel %vm1368, %v3988, %v3809
      %v4021 = vsel %vm1368, %v3989, %v2308
      %v4022 = vsel %vm1368, %v3990, %v3811
      %v4023 = vsel %vm1368, %v3991, %v2312
      %v4024 = vsel %vm1368, %v3992, %v3813
      %v4025 = vsel %vm1368, %v3993, %v2316
      %v4026 = vsel %vm1368, %v3994, %v3815
      %v4027 = vsel %vm1368, %v3995, %v2320
      %v4028 = vsel %vm1368, %v3996, %v3817
      %v4029 = vsel %vm1368, %v3997, %v2324
      %v4030 = vsel %vm1368, %v3998, %v3819
      %v4031 = vsel %vm1368, %v3999, %v2328
      %v4032 = vsel %vm1368, %v4000, %v3821
      %v4033 = vsel %vm1368, %v4001, %v3823
      %v4034 = vsel %vm1368, %v4002, %v3825
      %v4035 = vsel %vm1368, %v4003, %v3827
      %v4036 = vsel %vm1368, %v4004, %v3829
      %v4037 = vsel %vm1368, %v4005, %v3831
      %v4038 = vsel %vm1368, %v4006, %v3833
      %v4039 = vsel %vm1368, %v4007, %v3835
      %v4040 = vsel %vm1368, %v4008, %v3837
      %v4041 = vsel %vm1368, %v4009, %v3839
      %v4042 = vsel %vm1368, %v4010, %v3841
      %v4043 = vsel %vm1368, %v4011, %v3843
      %v4044 = vsel %vm1368, %v4012, %v3845
      %v4045 = vsel %vm1368, %v4013, %v3847
      %v4046 = vsel %vm1368, %v4014, %v3849
      %v4047 = vsel %vm1368, %v4015, %v3851
      %v4048 = vsel %vm1401, %v4016, %v1256
      %v4049 = vsel %vm1401, %v4017, %v1258
      %v4050 = vsel %vm1401, %v4018, %v1260
      %v4051 = vsel %vm1401, %v4019, %v1262
      %v4052 = vsel %vm1401, %v4020, %v1264
      %v4053 = vsel %vm1401, %v4021, %v1266
      %v4054 = vsel %vm1401, %v4022, %v1268
      %v4055 = vsel %vm1401, %v4023, %v1270
      %v4056 = vsel %vm1401, %v4024, %v1272
      %v4057 = vsel %vm1401, %v4025, %v1274
      %v4058 = vsel %vm1401, %v4026, %v1276
      %v4059 = vsel %vm1401, %v4027, %v1278
      %v4060 = vsel %vm1401, %v4028, %v1280
      %v4061 = vsel %vm1401, %v4029, %v1282
      %v4062 = vsel %vm1401, %v4030, %v1284
      %v4063 = vsel %vm1401, %v4031, %v1286
      %v4064 = vsel %vm1401, %v4032, %v1288
      %v4065 = vsel %vm1401, %v4033, %v1290
      %v4066 = vsel %vm1401, %v4034, %v1292
      %v4067 = vsel %vm1401, %v4035, %v1294
      %v4068 = vsel %vm1401, %v4036, %v1296
      %v4069 = vsel %vm1401, %v4037, %v1298
      %v4070 = vsel %vm1401, %v4038, %v1300
      %v4071 = vsel %vm1401, %v4039, %v1302
      %v4072 = vsel %vm1401, %v4040, %v2652
      %v4073 = vsel %vm1401, %v4041, %v2654
      %v4074 = vsel %vm1401, %v4042, %v2656
      %v4075 = vsel %vm1401, %v4043, %v2658
      %v4076 = vsel %vm1401, %v4044, %v3877
      %v4077 = vsel %vm1401, %v4045, %v3879
      %v4078 = vsel %vm1401, %v4046, %v3881
      %v4079 = vsel %vm1401, %v4047, %v3883
      %s4080 = scalar_lea.vmem %s1, 576
      %v4081 = vld [vmem:[%s4080] sm:$0xff]
      %v4082 = vld [vmem:[%s4080 + $0x8] sm:$0xff]
      %v4083 = vld [vmem:[%s4080 + $0x10] sm:$0xff]
      %v4084 = vld [vmem:[%s4080 + $0x18] sm:$0xff]
      %v4085 = vld [vmem:[%s4080 + $0x20] sm:$0xff]
      %v4086 = vld [vmem:[%s4080 + $0x28] sm:$0xff]
      %v4087 = vld [vmem:[%s4080 + $0x30] sm:$0xff]
      %v4088 = vld [vmem:[%s4080 + $0x38] sm:$0xff]
      %v4089 = vld [vmem:[%s4080 + $0x40] sm:$0xff]
      %v4090 = vld [vmem:[%s4080 + $0x48] sm:$0xff]
      %v4091 = vld [vmem:[%s4080 + $0x50] sm:$0xff]
      %v4092 = vld [vmem:[%s4080 + $0x58] sm:$0xff]
      %v4093 = vld [vmem:[%s4080 + $0x60] sm:$0xff]
      %v4094 = vld [vmem:[%s4080 + $0x68] sm:$0xff]
      %v4095 = vld [vmem:[%s4080 + $0x70] sm:$0xff]
      %v4096 = vld [vmem:[%s4080 + $0x78] sm:$0xff]
      %v4097 = vld [vmem:[%s4080 + $0x80] sm:$0xff]
      %v4098 = vld [vmem:[%s4080 + $0x88] sm:$0xff]
      %v4099 = vld [vmem:[%s4080 + $0x90] sm:$0xff]
      %v4100 = vld [vmem:[%s4080 + $0x98] sm:$0xff]
      %v4101 = vld [vmem:[%s4080 + $0xa0] sm:$0xff]
      %v4102 = vld [vmem:[%s4080 + $0xa8] sm:$0xff]
      %v4103 = vld [vmem:[%s4080 + $0xb0] sm:$0xff]
      %v4104 = vld [vmem:[%s4080 + $0xb8] sm:$0xff]
      %v4105 = vld [vmem:[%s4080 + $0xc0] sm:$0xff]
      %v4106 = vld [vmem:[%s4080 + $0xc8] sm:$0xff]
      %v4107 = vld [vmem:[%s4080 + $0xd0] sm:$0xff]
      %v4108 = vld [vmem:[%s4080 + $0xd8] sm:$0xff]
      %v4109 = vld [vmem:[%s4080 + $0xe0] sm:$0xff]
      %v4110 = vld [vmem:[%s4080 + $0xe8] sm:$0xff]
      %v4111 = vld [vmem:[%s4080 + $0xf0] sm:$0xff]
      %v4112 = vld [vmem:[%s4080 + $0xf8] sm:$0xff]
      %v4113 = vld [vmem:[%s4080 + $0x100] sm:$0xff]
      %v4114 = vld [vmem:[%s4080 + $0x108] sm:$0xff]
      %v4115 = vld [vmem:[%s4080 + $0x110] sm:$0xff]
      %v4116 = vld [vmem:[%s4080 + $0x118] sm:$0xff]
      %v4117 = vsel %vm1335, %v2131, 0
      %v4119 = vsel %vm1335, %v3465, 0
      %v4121 = vsel %vm1335, %v2136, 0
      %v4123 = vsel %vm1335, %v3467, 0
      %v4125 = vsel %vm1335, %v2141, 0
      %v4127 = vsel %vm1335, %v3469, 0
      %v4129 = vsel %vm1335, %v2146, 0
      %v4131 = vsel %vm1335, %v3471, 0
      %v4133 = vsel %vm1335, %v2151, 0
      %v4135 = vsel %vm1335, %v3473, 0
      %v4137 = vsel %vm1335, %v2156, 0
      %v4139 = vsel %vm1335, %v3475, 0
      %v4141 = vsel %vm1335, %v2161, 0
      %v4143 = vsel %vm1335, %v3482, 0
      %v4145 = vsel %vm1335, %v2166, 0
      %v4147 = vsel %vm1335, %v3484, 0
      %v4149 = vsel %vm1335, %v2213, 0
      %v4151 = vsel %vm1335, %v3486, 0
      %v4153 = vsel %vm1335, %v2218, 0
      %v4155 = vsel %vm1335, %v3488, 0
      %v4157 = vsel %vm1335, %v2223, 0
      %v4159 = vsel %vm1335, %v3490, 0
      %v4161 = vsel %vm1335, %v2234, 0
      %v4163 = vsel %vm1335, %v3513, 0
      %v4165 = vsel %vm1335, %v2239, 0
      %v4167 = vsel %vm1335, %v3515, 0
      %v4169 = vsel %vm1335, %v2244, 0
      %v4171 = vsel %vm1335, %v3517, 0
      %v4173 = vsel %vm1335, %v3520, 0
      %v4175 = vsel %vm1335, %v3522, 0
      %v4177 = vsel %vm1335, %v3525, 0
      %v4179 = vsel %vm1335, %v3527, 0
      %4181 = vmatprep.subr.mxu0 0.0
      %4182 = vmatpush1.msra.mxu0 %v4096
      %4183 = vmatprep.subr.mxu0 0.0
      %4184 = vmatpush1.msra.mxu0 %v4095
      %4185 = vmatprep.subr.mxu0 0.0
      %4186 = vmatpush1.msra.mxu0 %v4094
      %4187 = vmatprep.subr.mxu0 0.0
      %4188 = vmatpush1.msra.mxu0 %v4093
      %4189 = vmatprep.subr.mxu0 0.0
      %4190 = vmatpush1.msra.mxu0 %v4092
      %4191 = vmatprep.subr.mxu0 0.0
      %4192 = vmatpush1.msra.mxu0 %v4091
      %4193 = vmatprep.subr.mxu0 0.0
      %4194 = vmatpush1.msra.mxu0 %v4090
      %4195 = vmatprep.subr.mxu0 0.0
      %4196 = vmatpush1.msra.mxu0 %v4089
      %4197 = vmatprep.subr.mxu0 0.0
      %4198 = vmatpush1.msra.mxu0 %v4088
      %4199 = vmatprep.subr.mxu0 0.0
      %4200 = vmatpush1.msra.mxu0 %v4087
      %4201 = vmatprep.subr.mxu0 0.0
      %4202 = vmatpush1.msra.mxu0 %v4086
      %4203 = vmatprep.subr.mxu0 0.0
      %4204 = vmatpush1.msra.mxu0 %v4085
      %4205 = vmatprep.subr.mxu0 0.0
      %4206 = vmatpush1.msra.mxu0 %v4084
      %4207 = vmatprep.subr.mxu0 0.0
      %4208 = vmatpush1.msra.mxu0 %v4083
      %4209 = vmatprep.subr.mxu0 0.0
      %4210 = vmatpush1.msra.mxu0 %v4082
      %4211 = vmatprep.subr.mxu0 0.0
      %4212 = vmatpush1.msra.mxu0 %v4081
      %4213 = vmatprep.subr.mxu0 0.0
      %4214 = vmatpush2.msra.mxu0 %v4112
      %4215 = vmatprep.subr.mxu0 0.0
      %4216 = vmatpush2.msra.mxu0 %v4111
      %4217 = vmatprep.subr.mxu0 0.0
      %4218 = vmatpush2.msra.mxu0 %v4110
      %4219 = vmatprep.subr.mxu0 0.0
      %4220 = vmatpush2.msra.mxu0 %v4109
      %4221 = vmatprep.subr.mxu0 0.0
      %4222 = vmatpush2.msra.mxu0 %v4108
      %4223 = vmatprep.subr.mxu0 0.0
      %4224 = vmatpush2.msra.mxu0 %v4107
      %4225 = vmatprep.subr.mxu0 0.0
      %4226 = vmatpush2.msra.mxu0 %v4106
      %4227 = vmatprep.subr.mxu0 0.0
      %4228 = vmatpush2.msra.mxu0 %v4105
      %4229 = vmatprep.subr.mxu0 0.0
      %4230 = vmatpush2.msra.mxu0 %v4104
      %4231 = vmatprep.subr.mxu0 0.0
      %4232 = vmatpush2.msra.mxu0 %v4103
      %4233 = vmatprep.subr.mxu0 0.0
      %4234 = vmatpush2.msra.mxu0 %v4102
      %4235 = vmatprep.subr.mxu0 0.0
      %4236 = vmatpush2.msra.mxu0 %v4101
      %4237 = vmatprep.subr.mxu0 0.0
      %4238 = vmatpush2.msra.mxu0 %v4100
      %4239 = vmatprep.subr.mxu0 0.0
      %4240 = vmatpush2.msra.mxu0 %v4099
      %4241 = vmatprep.subr.mxu0 0.0
      %4242 = vmatpush2.msra.mxu0 %v4098
      %4243 = vmatprep.subr.mxu0 0.0
      %4244 = vmatpush2.msra.mxu0 %v4097
      %4245 = vmatprep.mubr.f32.mxu0 %v4048
      %4246 = vmatmul.mubr.f32.gmra.mxu0 %v3952
      %v4247 = vpop.f32.mrf.mxu0
      %v4248 = vadd.f32 0.0, %v4247
      %v4249 = vpop.f32.mrf.mxu0
      %4250 = vmatprep.mubr.f32.mxu0 %v4049
      %4251 = vmatmul.mubr.f32.gmra.mxu0 %v3953
      %v4252 = vpop.f32.mrf.mxu0
      %v4253 = vadd.f32 0.0, %v4252
      %v4254 = vpop.f32.mrf.mxu0
      %4255 = vmatprep.mubr.f32.mxu0 %v4050
      %4256 = vmatmul.mubr.f32.gmra.mxu0 %v3954
      %v4257 = vpop.f32.mrf.mxu0
      %v4258 = vadd.f32 0.0, %v4257
      %v4259 = vpop.f32.mrf.mxu0
      %4260 = vmatprep.mubr.f32.mxu0 %v4051
      %4261 = vmatmul.mubr.f32.gmra.mxu0 %v3955
      %v4262 = vpop.f32.mrf.mxu0
      %v4263 = vadd.f32 0.0, %v4262
      %v4264 = vpop.f32.mrf.mxu0
      %4265 = vmatprep.mubr.f32.mxu0 %v4052
      %4266 = vmatmul.mubr.f32.gmra.mxu0 %v3956
      %v4267 = vpop.f32.mrf.mxu0
      %v4268 = vadd.f32 0.0, %v4267
      %v4269 = vpop.f32.mrf.mxu0
      %4270 = vmatprep.mubr.f32.mxu0 %v4053
      %4271 = vmatmul.mubr.f32.gmra.mxu0 %v3957
      %v4272 = vpop.f32.mrf.mxu0
      %v4273 = vadd.f32 0.0, %v4272
      %v4274 = vpop.f32.mrf.mxu0
      %4275 = vmatprep.mubr.f32.mxu0 %v4054
      %4276 = vmatmul.mubr.f32.gmra.mxu0 %v3958
      %v4277 = vpop.f32.mrf.mxu0
      %v4278 = vadd.f32 0.0, %v4277
      %v4279 = vpop.f32.mrf.mxu0
      %4280 = vmatprep.mubr.f32.mxu0 %v4055
      %4281 = vmatmul.mubr.f32.gmra.mxu0 %v3959
      %v4282 = vpop.f32.mrf.mxu0
      %v4283 = vadd.f32 0.0, %v4282
      %v4284 = vpop.f32.mrf.mxu0
      %4285 = vmatprep.mubr.f32.mxu0 %v4056
      %4286 = vmatmul.mubr.f32.gmra.mxu0 %v3960
      %v4287 = vpop.f32.mrf.mxu0
      %v4288 = vadd.f32 0.0, %v4287
      %v4289 = vpop.f32.mrf.mxu0
      %4290 = vmatprep.mubr.f32.mxu0 %v4057
      %4291 = vmatmul.mubr.f32.gmra.mxu0 %v3961
      %v4292 = vpop.f32.mrf.mxu0
      %v4293 = vadd.f32 0.0, %v4292
      %v4294 = vpop.f32.mrf.mxu0
      %4295 = vmatprep.mubr.f32.mxu0 %v4058
      %4296 = vmatmul.mubr.f32.gmra.mxu0 %v3962
      %v4297 = vpop.f32.mrf.mxu0
      %v4298 = vadd.f32 0.0, %v4297
      %v4299 = vpop.f32.mrf.mxu0
      %4300 = vmatprep.mubr.f32.mxu0 %v4059
      %4301 = vmatmul.mubr.f32.gmra.mxu0 %v3963
      %v4302 = vpop.f32.mrf.mxu0
      %v4303 = vadd.f32 0.0, %v4302
      %v4304 = vpop.f32.mrf.mxu0
      %4305 = vmatprep.mubr.f32.mxu0 %v4060
      %4306 = vmatmul.mubr.f32.gmra.mxu0 %v3964
      %v4307 = vpop.f32.mrf.mxu0
      %v4308 = vadd.f32 0.0, %v4307
      %v4309 = vpop.f32.mrf.mxu0
      %4310 = vmatprep.mubr.f32.mxu0 %v4061
      %4311 = vmatmul.mubr.f32.gmra.mxu0 %v3965
      %v4312 = vpop.f32.mrf.mxu0
      %v4313 = vadd.f32 0.0, %v4312
      %v4314 = vpop.f32.mrf.mxu0
      %4315 = vmatprep.mubr.f32.mxu0 %v4062
      %4316 = vmatmul.mubr.f32.gmra.mxu0 %v3966
      %v4317 = vpop.f32.mrf.mxu0
      %v4318 = vadd.f32 0.0, %v4317
      %v4319 = vpop.f32.mrf.mxu0
      %4320 = vmatprep.mubr.f32.mxu0 %v4063
      %4321 = vmatmul.mubr.f32.gmra.mxu0 %v3967
      %v4322 = vpop.f32.mrf.mxu0
      %v4323 = vadd.f32 0.0, %v4322
      %v4324 = vpop.f32.mrf.mxu0
      %4325 = vmatprep.mubr.f32.mxu0 %v4064
      %4326 = vmatmul.mubr.f32.gmra.mxu0 %v3968
      %v4327 = vpop.f32.mrf.mxu0
      %v4328 = vadd.f32 0.0, %v4327
      %v4329 = vpop.f32.mrf.mxu0
      %4330 = vmatprep.mubr.f32.mxu0 %v4065
      %4331 = vmatmul.mubr.f32.gmra.mxu0 %v3969
      %v4332 = vpop.f32.mrf.mxu0
      %v4333 = vadd.f32 0.0, %v4332
      %v4334 = vpop.f32.mrf.mxu0
      %4335 = vmatprep.mubr.f32.mxu0 %v4066
      %4336 = vmatmul.mubr.f32.gmra.mxu0 %v3970
      %v4337 = vpop.f32.mrf.mxu0
      %v4338 = vadd.f32 0.0, %v4337
      %v4339 = vpop.f32.mrf.mxu0
      %4340 = vmatprep.mubr.f32.mxu0 %v4067
      %4341 = vmatmul.mubr.f32.gmra.mxu0 %v3971
      %v4342 = vpop.f32.mrf.mxu0
      %v4343 = vadd.f32 0.0, %v4342
      %v4344 = vpop.f32.mrf.mxu0
      %4345 = vmatprep.mubr.f32.mxu0 %v4068
      %4346 = vmatmul.mubr.f32.gmra.mxu0 %v3972
      %v4347 = vpop.f32.mrf.mxu0
      %v4348 = vadd.f32 0.0, %v4347
      %v4349 = vpop.f32.mrf.mxu0
      %4350 = vmatprep.mubr.f32.mxu0 %v4069
      %4351 = vmatmul.mubr.f32.gmra.mxu0 %v3973
      %v4352 = vpop.f32.mrf.mxu0
      %v4353 = vadd.f32 0.0, %v4352
      %v4354 = vpop.f32.mrf.mxu0
      %4355 = vmatprep.mubr.f32.mxu0 %v4070
      %4356 = vmatmul.mubr.f32.gmra.mxu0 %v3974
      %v4357 = vpop.f32.mrf.mxu0
      %v4358 = vadd.f32 0.0, %v4357
      %v4359 = vpop.f32.mrf.mxu0
      %4360 = vmatprep.mubr.f32.mxu0 %v4071
      %4361 = vmatmul.mubr.f32.gmra.mxu0 %v3975
      %v4362 = vpop.f32.mrf.mxu0
      %v4363 = vadd.f32 0.0, %v4362
      %v4364 = vpop.f32.mrf.mxu0
      %4365 = vmatprep.mubr.f32.mxu0 %v4072
      %4366 = vmatmul.mubr.f32.gmra.mxu0 %v3976
      %v4367 = vpop.f32.mrf.mxu0
      %v4368 = vadd.f32 0.0, %v4367
      %v4369 = vpop.f32.mrf.mxu0
      %4370 = vmatprep.mubr.f32.mxu0 %v4073
      %4371 = vmatmul.mubr.f32.gmra.mxu0 %v3977
      %v4372 = vpop.f32.mrf.mxu0
      %v4373 = vadd.f32 0.0, %v4372
      %v4374 = vpop.f32.mrf.mxu0
      %4375 = vmatprep.mubr.f32.mxu0 %v4074
      %4376 = vmatmul.mubr.f32.gmra.mxu0 %v3978
      %v4377 = vpop.f32.mrf.mxu0
      %v4378 = vadd.f32 0.0, %v4377
      %v4379 = vpop.f32.mrf.mxu0
      %4380 = vmatprep.mubr.f32.mxu0 %v4075
      %4381 = vmatmul.mubr.f32.gmra.mxu0 %v3979
      %v4382 = vpop.f32.mrf.mxu0
      %v4383 = vadd.f32 0.0, %v4382
      %v4384 = vpop.f32.mrf.mxu0
      %4385 = vmatprep.mubr.f32.mxu0 %v4076
      %4386 = vmatmul.mubr.f32.gmra.mxu0 %v3980
      %v4387 = vpop.f32.mrf.mxu0
      %v4388 = vadd.f32 0.0, %v4387
      %v4389 = vpop.f32.mrf.mxu0
      %4390 = vmatprep.mubr.f32.mxu0 %v4077
      %4391 = vmatmul.mubr.f32.gmra.mxu0 %v3981
      %v4392 = vpop.f32.mrf.mxu0
      %v4393 = vadd.f32 0.0, %v4392
      %v4394 = vpop.f32.mrf.mxu0
      %4395 = vmatprep.mubr.f32.mxu0 %v4078
      %4396 = vmatmul.mubr.f32.gmra.mxu0 %v3982
      %v4397 = vpop.f32.mrf.mxu0
      %v4398 = vadd.f32 0.0, %v4397
      %v4399 = vpop.f32.mrf.mxu0
      %4400 = vmatprep.mubr.f32.mxu0 %v4079
      %4401 = vmatmul.mubr.f32.gmra.mxu0 %v3983
      %v4402 = vpop.f32.mrf.mxu0
      %v4403 = vadd.f32 0.0, %v4402
      %v4404 = vpop.f32.mrf.mxu0
      %4405 = vdwg.mxu0
      %4406 = vmatprep.subr.mxu0 0.0
      %4407 = vmatpush1.msra.mxu0 0.0
      %4408 = vmatprep.subr.mxu0 0.0
      %4409 = vmatpush1.msra.mxu0 0.0
      %4410 = vmatprep.subr.mxu0 0.0
      %4411 = vmatpush1.msra.mxu0 0.0
      %4412 = vmatprep.subr.mxu0 0.0
      %4413 = vmatpush1.msra.mxu0 0.0
      %4414 = vmatprep.subr.mxu0 0.0
      %4415 = vmatpush1.msra.mxu0 0.0
      %4416 = vmatprep.subr.mxu0 0.0
      %4417 = vmatpush1.msra.mxu0 0.0
      %4418 = vmatprep.subr.mxu0 0.0
      %4419 = vmatpush1.msra.mxu0 0.0
      %4420 = vmatprep.subr.mxu0 0.0
      %4421 = vmatpush1.msra.mxu0 0.0
      %4422 = vmatprep.subr.mxu0 0.0
      %4423 = vmatpush1.msra.mxu0 0.0
      %4424 = vmatprep.subr.mxu0 0.0
      %4425 = vmatpush1.msra.mxu0 0.0
      %4426 = vmatprep.subr.mxu0 0.0
      %4427 = vmatpush1.msra.mxu0 0.0
      %4428 = vmatprep.subr.mxu0 0.0
      %4429 = vmatpush1.msra.mxu0 0.0
      %4430 = vmatprep.subr.mxu0 0.0
      %4431 = vmatpush1.msra.mxu0 %v4116
      %4432 = vmatprep.subr.mxu0 0.0
      %4433 = vmatpush1.msra.mxu0 %v4115
      %4434 = vmatprep.subr.mxu0 0.0
      %4435 = vmatpush1.msra.mxu0 %v4114
      %4436 = vmatprep.subr.mxu0 0.0
      %4437 = vmatpush1.msra.mxu0 %v4113
      %4438 = vmatprep.subr.mxu0 0.0
      %4439 = vmatpush2.msra.mxu0 0.0
      %4440 = vmatprep.subr.mxu0 0.0
      %4441 = vmatpush2.msra.mxu0 0.0
      %4442 = vmatprep.subr.mxu0 0.0
      %4443 = vmatpush2.msra.mxu0 0.0
      %4444 = vmatprep.subr.mxu0 0.0
      %4445 = vmatpush2.msra.mxu0 0.0
      %4446 = vmatprep.subr.mxu0 0.0
      %4447 = vmatpush2.msra.mxu0 0.0
      %4448 = vmatprep.subr.mxu0 0.0
      %4449 = vmatpush2.msra.mxu0 0.0
      %4450 = vmatprep.subr.mxu0 0.0
      %4451 = vmatpush2.msra.mxu0 0.0
      %4452 = vmatprep.subr.mxu0 0.0
      %4453 = vmatpush2.msra.mxu0 0.0
      %4454 = vmatprep.subr.mxu0 0.0
      %4455 = vmatpush2.msra.mxu0 0.0
      %4456 = vmatprep.subr.mxu0 0.0
      %4457 = vmatpush2.msra.mxu0 0.0
      %4458 = vmatprep.subr.mxu0 0.0
      %4459 = vmatpush2.msra.mxu0 0.0
      %4460 = vmatprep.subr.mxu0 0.0
      %4461 = vmatpush2.msra.mxu0 0.0
      %4462 = vmatprep.subr.mxu0 0.0
      %4463 = vmatpush2.msra.mxu0 0.0
      %4464 = vmatprep.subr.mxu0 0.0
      %4465 = vmatpush2.msra.mxu0 0.0
      %4466 = vmatprep.subr.mxu0 0.0
      %4467 = vmatpush2.msra.mxu0 0.0
      %4468 = vmatprep.subr.mxu0 0.0
      %4469 = vmatpush2.msra.mxu0 0.0
      %4470 = vmatprep.mubr.f32.mxu0 0.0
      %4471 = vmatmul.mubr.f32.gmra.mxu0 %v4117
      %v4472 = vpop.f32.mrf.mxu0
      %v4473 = vadd.f32 %v4248, %v4472
      %v4474 = vpop.f32.mrf.mxu0
      %4475 = vmatprep.mubr.f32.mxu0 0.0
      %4476 = vmatmul.mubr.f32.gmra.mxu0 %v4119
      %v4477 = vpop.f32.mrf.mxu0
      %v4478 = vadd.f32 %v4253, %v4477
      %v4479 = vpop.f32.mrf.mxu0
      %4480 = vmatprep.mubr.f32.mxu0 0.0
      %4481 = vmatmul.mubr.f32.gmra.mxu0 %v4121
      %v4482 = vpop.f32.mrf.mxu0
      %v4483 = vadd.f32 %v4258, %v4482
      %v4484 = vpop.f32.mrf.mxu0
      %4485 = vmatprep.mubr.f32.mxu0 0.0
      %4486 = vmatmul.mubr.f32.gmra.mxu0 %v4123
      %v4487 = vpop.f32.mrf.mxu0
      %v4488 = vadd.f32 %v4263, %v4487
      %v4489 = vpop.f32.mrf.mxu0
      %4490 = vmatprep.mubr.f32.mxu0 0.0
      %4491 = vmatmul.mubr.f32.gmra.mxu0 %v4125
      %v4492 = vpop.f32.mrf.mxu0
      %v4493 = vadd.f32 %v4268, %v4492
      %v4494 = vpop.f32.mrf.mxu0
      %4495 = vmatprep.mubr.f32.mxu0 0.0
      %4496 = vmatmul.mubr.f32.gmra.mxu0 %v4127
      %v4497 = vpop.f32.mrf.mxu0
      %v4498 = vadd.f32 %v4273, %v4497
      %v4499 = vpop.f32.mrf.mxu0
      %4500 = vmatprep.mubr.f32.mxu0 0.0
      %4501 = vmatmul.mubr.f32.gmra.mxu0 %v4129
      %v4502 = vpop.f32.mrf.mxu0
      %v4503 = vadd.f32 %v4278, %v4502
      %v4504 = vpop.f32.mrf.mxu0
      %4505 = vmatprep.mubr.f32.mxu0 0.0
      %4506 = vmatmul.mubr.f32.gmra.mxu0 %v4131
      %v4507 = vpop.f32.mrf.mxu0
      %v4508 = vadd.f32 %v4283, %v4507
      %v4509 = vpop.f32.mrf.mxu0
      %4510 = vmatprep.mubr.f32.mxu0 0.0
      %4511 = vmatmul.mubr.f32.gmra.mxu0 %v4133
      %v4512 = vpop.f32.mrf.mxu0
      %v4513 = vadd.f32 %v4288, %v4512
      %v4514 = vpop.f32.mrf.mxu0
      %4515 = vmatprep.mubr.f32.mxu0 0.0
      %4516 = vmatmul.mubr.f32.gmra.mxu0 %v4135
      %v4517 = vpop.f32.mrf.mxu0
      %v4518 = vadd.f32 %v4293, %v4517
      %v4519 = vpop.f32.mrf.mxu0
      %4520 = vmatprep.mubr.f32.mxu0 0.0
      %4521 = vmatmul.mubr.f32.gmra.mxu0 %v4137
      %v4522 = vpop.f32.mrf.mxu0
      %v4523 = vadd.f32 %v4298, %v4522
      %v4524 = vpop.f32.mrf.mxu0
      %4525 = vmatprep.mubr.f32.mxu0 0.0
      %4526 = vmatmul.mubr.f32.gmra.mxu0 %v4139
      %v4527 = vpop.f32.mrf.mxu0
      %v4528 = vadd.f32 %v4303, %v4527
      %v4529 = vpop.f32.mrf.mxu0
      %4530 = vmatprep.mubr.f32.mxu0 0.0
      %4531 = vmatmul.mubr.f32.gmra.mxu0 %v4141
      %v4532 = vpop.f32.mrf.mxu0
      %v4533 = vadd.f32 %v4308, %v4532
      %v4534 = vpop.f32.mrf.mxu0
      %4535 = vmatprep.mubr.f32.mxu0 0.0
      %4536 = vmatmul.mubr.f32.gmra.mxu0 %v4143
      %v4537 = vpop.f32.mrf.mxu0
      %v4538 = vadd.f32 %v4313, %v4537
      %v4539 = vpop.f32.mrf.mxu0
      %4540 = vmatprep.mubr.f32.mxu0 0.0
      %4541 = vmatmul.mubr.f32.gmra.mxu0 %v4145
      %v4542 = vpop.f32.mrf.mxu0
      %v4543 = vadd.f32 %v4318, %v4542
      %v4544 = vpop.f32.mrf.mxu0
      %4545 = vmatprep.mubr.f32.mxu0 0.0
      %4546 = vmatmul.mubr.f32.gmra.mxu0 %v4147
      %v4547 = vpop.f32.mrf.mxu0
      %v4548 = vadd.f32 %v4323, %v4547
      %v4549 = vpop.f32.mrf.mxu0
      %4550 = vmatprep.mubr.f32.mxu0 0.0
      %4551 = vmatmul.mubr.f32.gmra.mxu0 %v4149
      %v4552 = vpop.f32.mrf.mxu0
      %v4553 = vadd.f32 %v4328, %v4552
      %v4554 = vpop.f32.mrf.mxu0
      %4555 = vmatprep.mubr.f32.mxu0 0.0
      %4556 = vmatmul.mubr.f32.gmra.mxu0 %v4151
      %v4557 = vpop.f32.mrf.mxu0
      %v4558 = vadd.f32 %v4333, %v4557
      %v4559 = vpop.f32.mrf.mxu0
      %4560 = vmatprep.mubr.f32.mxu0 0.0
      %4561 = vmatmul.mubr.f32.gmra.mxu0 %v4153
      %v4562 = vpop.f32.mrf.mxu0
      %v4563 = vadd.f32 %v4338, %v4562
      %v4564 = vpop.f32.mrf.mxu0
      %4565 = vmatprep.mubr.f32.mxu0 0.0
      %4566 = vmatmul.mubr.f32.gmra.mxu0 %v4155
      %v4567 = vpop.f32.mrf.mxu0
      %v4568 = vadd.f32 %v4343, %v4567
      %v4569 = vpop.f32.mrf.mxu0
      %4570 = vmatprep.mubr.f32.mxu0 0.0
      %4571 = vmatmul.mubr.f32.gmra.mxu0 %v4157
      %v4572 = vpop.f32.mrf.mxu0
      %v4573 = vadd.f32 %v4348, %v4572
      %v4574 = vpop.f32.mrf.mxu0
      %4575 = vmatprep.mubr.f32.mxu0 0.0
      %4576 = vmatmul.mubr.f32.gmra.mxu0 %v4159
      %v4577 = vpop.f32.mrf.mxu0
      %v4578 = vadd.f32 %v4353, %v4577
      %v4579 = vpop.f32.mrf.mxu0
      %4580 = vmatprep.mubr.f32.mxu0 0.0
      %4581 = vmatmul.mubr.f32.gmra.mxu0 %v4161
      %v4582 = vpop.f32.mrf.mxu0
      %v4583 = vadd.f32 %v4358, %v4582
      %v4584 = vpop.f32.mrf.mxu0
      %4585 = vmatprep.mubr.f32.mxu0 0.0
      %4586 = vmatmul.mubr.f32.gmra.mxu0 %v4163
      %v4587 = vpop.f32.mrf.mxu0
      %v4588 = vadd.f32 %v4363, %v4587
      %v4589 = vpop.f32.mrf.mxu0
      %4590 = vmatprep.mubr.f32.mxu0 0.0
      %4591 = vmatmul.mubr.f32.gmra.mxu0 %v4165
      %v4592 = vpop.f32.mrf.mxu0
      %v4593 = vadd.f32 %v4368, %v4592
      %v4594 = vpop.f32.mrf.mxu0
      %4595 = vmatprep.mubr.f32.mxu0 0.0
      %4596 = vmatmul.mubr.f32.gmra.mxu0 %v4167
      %v4597 = vpop.f32.mrf.mxu0
      %v4598 = vadd.f32 %v4373, %v4597
      %v4599 = vpop.f32.mrf.mxu0
      %4600 = vmatprep.mubr.f32.mxu0 0.0
      %4601 = vmatmul.mubr.f32.gmra.mxu0 %v4169
      %v4602 = vpop.f32.mrf.mxu0
      %v4603 = vadd.f32 %v4378, %v4602
      %v4604 = vpop.f32.mrf.mxu0
      %4605 = vmatprep.mubr.f32.mxu0 0.0
      %4606 = vmatmul.mubr.f32.gmra.mxu0 %v4171
      %v4607 = vpop.f32.mrf.mxu0
      %v4608 = vadd.f32 %v4383, %v4607
      %v4609 = vpop.f32.mrf.mxu0
      %4610 = vmatprep.mubr.f32.mxu0 0.0
      %4611 = vmatmul.mubr.f32.gmra.mxu0 %v4173
      %v4612 = vpop.f32.mrf.mxu0
      %v4613 = vadd.f32 %v4388, %v4612
      %v4614 = vpop.f32.mrf.mxu0
      %4615 = vmatprep.mubr.f32.mxu0 0.0
      %4616 = vmatmul.mubr.f32.gmra.mxu0 %v4175
      %v4617 = vpop.f32.mrf.mxu0
      %v4618 = vadd.f32 %v4393, %v4617
      %v4619 = vpop.f32.mrf.mxu0
      %4620 = vmatprep.mubr.f32.mxu0 0.0
      %4621 = vmatmul.mubr.f32.gmra.mxu0 %v4177
      %v4622 = vpop.f32.mrf.mxu0
      %v4623 = vadd.f32 %v4398, %v4622
      %v4624 = vpop.f32.mrf.mxu0
      %4625 = vmatprep.mubr.f32.mxu0 0.0
      %4626 = vmatmul.mubr.f32.gmra.mxu0 %v4179
      %v4627 = vpop.f32.mrf.mxu0
      %v4628 = vadd.f32 %v4403, %v4627
      %v4629 = vpop.f32.mrf.mxu0
      %4630 = vdwg.mxu0
      %4663 = vrot.lane.b32.xlu0 %v3248, 4
      %v4664 = vpop.permute.xlu0 %4663
      %4665 = vrot.lane.b32.xlu0 %v3253, 4
      %v4666 = vpop.permute.xlu0 %4665
      %4667 = vrot.lane.b32.xlu0 %v3258, 4
      %v4668 = vpop.permute.xlu0 %4667
      %4669 = vrot.lane.b32.xlu0 %v3263, 4
      %v4670 = vpop.permute.xlu0 %4669
      %4671 = vrot.lane.b32.xlu0 %v3268, 4
      %v4672 = vpop.permute.xlu0 %4671
      %4673 = vrot.lane.b32.xlu0 %v3273, 4
      %v4674 = vpop.permute.xlu0 %4673
      %4675 = vrot.lane.b32.xlu0 %v3278, 4
      %v4676 = vpop.permute.xlu0 %4675
      %4677 = vrot.lane.b32.xlu0 %v3283, 4
      %v4678 = vpop.permute.xlu0 %4677
      %4679 = vrot.lane.b32.xlu0 %v3288, 4
      %v4680 = vpop.permute.xlu0 %4679
      %4681 = vrot.lane.b32.xlu0 %v3293, 4
      %v4682 = vpop.permute.xlu0 %4681
      %4683 = vrot.lane.b32.xlu0 %v3298, 4
      %v4684 = vpop.permute.xlu0 %4683
      %4685 = vrot.lane.b32.xlu0 %v3303, 4
      %v4686 = vpop.permute.xlu0 %4685
      %4687 = vrot.lane.b32.xlu0 %v3308, 4
      %v4688 = vpop.permute.xlu0 %4687
      %4689 = vrot.lane.b32.xlu0 %v3313, 4
      %v4690 = vpop.permute.xlu0 %4689
      %4691 = vrot.lane.b32.xlu0 %v3318, 4
      %v4692 = vpop.permute.xlu0 %4691
      %4693 = vrot.lane.b32.xlu0 %v3323, 4
      %v4694 = vpop.permute.xlu0 %4693
      %4695 = vrot.lane.b32.xlu0 %v3328, 4
      %v4696 = vpop.permute.xlu0 %4695
      %4697 = vrot.lane.b32.xlu0 %v3333, 4
      %v4698 = vpop.permute.xlu0 %4697
      %4699 = vrot.lane.b32.xlu0 %v3338, 4
      %v4700 = vpop.permute.xlu0 %4699
      %4701 = vrot.lane.b32.xlu0 %v3343, 4
      %v4702 = vpop.permute.xlu0 %4701
      %4703 = vrot.lane.b32.xlu0 %v3348, 4
      %v4704 = vpop.permute.xlu0 %4703
      %4705 = vrot.lane.b32.xlu0 %v3353, 4
      %v4706 = vpop.permute.xlu0 %4705
      %4707 = vrot.lane.b32.xlu0 %v3358, 4
      %v4708 = vpop.permute.xlu0 %4707
      %4709 = vrot.lane.b32.xlu0 %v3363, 4
      %v4710 = vpop.permute.xlu0 %4709
      %4711 = vrot.lane.b32.xlu0 %v3368, 4
      %v4712 = vpop.permute.xlu0 %4711
      %4713 = vrot.lane.b32.xlu0 %v3373, 4
      %v4714 = vpop.permute.xlu0 %4713
      %4715 = vrot.lane.b32.xlu0 %v3378, 4
      %v4716 = vpop.permute.xlu0 %4715
      %4717 = vrot.lane.b32.xlu0 %v3383, 4
      %v4718 = vpop.permute.xlu0 %4717
      %4719 = vrot.lane.b32.xlu0 %v3388, 4
      %v4720 = vpop.permute.xlu0 %4719
      %4721 = vrot.lane.b32.xlu0 %v3393, 4
      %v4722 = vpop.permute.xlu0 %4721
      %4723 = vrot.lane.b32.xlu0 %v3398, 4
      %v4724 = vpop.permute.xlu0 %4723
      %4725 = vrot.lane.b32.xlu0 %v3403, 4
      %v4726 = vpop.permute.xlu0 %4725
      %4791 = vrot.lane.b32.xlu0 %v4473, 8
      %v4792 = vpop.permute.xlu0 %4791
      %4793 = vrot.lane.b32.xlu0 %v4478, 8
      %v4794 = vpop.permute.xlu0 %4793
      %4795 = vrot.lane.b32.xlu0 %v4483, 8
      %v4796 = vpop.permute.xlu0 %4795
      %4797 = vrot.lane.b32.xlu0 %v4488, 8
      %v4798 = vpop.permute.xlu0 %4797
      %4799 = vrot.lane.b32.xlu0 %v4493, 8
      %v4800 = vpop.permute.xlu0 %4799
      %4801 = vrot.lane.b32.xlu0 %v4498, 8
      %v4802 = vpop.permute.xlu0 %4801
      %4803 = vrot.lane.b32.xlu0 %v4503, 8
      %v4804 = vpop.permute.xlu0 %4803
      %4805 = vrot.lane.b32.xlu0 %v4508, 8
      %v4806 = vpop.permute.xlu0 %4805
      %4807 = vrot.lane.b32.xlu0 %v4513, 8
      %v4808 = vpop.permute.xlu0 %4807
      %4809 = vrot.lane.b32.xlu0 %v4518, 8
      %v4810 = vpop.permute.xlu0 %4809
      %4811 = vrot.lane.b32.xlu0 %v4523, 8
      %v4812 = vpop.permute.xlu0 %4811
      %4813 = vrot.lane.b32.xlu0 %v4528, 8
      %v4814 = vpop.permute.xlu0 %4813
      %4815 = vrot.lane.b32.xlu0 %v4533, 8
      %v4816 = vpop.permute.xlu0 %4815
      %4817 = vrot.lane.b32.xlu0 %v4538, 8
      %v4818 = vpop.permute.xlu0 %4817
      %4819 = vrot.lane.b32.xlu0 %v4543, 8
      %v4820 = vpop.permute.xlu0 %4819
      %4821 = vrot.lane.b32.xlu0 %v4548, 8
      %v4822 = vpop.permute.xlu0 %4821
      %4823 = vrot.lane.b32.xlu0 %v4553, 8
      %v4824 = vpop.permute.xlu0 %4823
      %4825 = vrot.lane.b32.xlu0 %v4558, 8
      %v4826 = vpop.permute.xlu0 %4825
      %4827 = vrot.lane.b32.xlu0 %v4563, 8
      %v4828 = vpop.permute.xlu0 %4827
      %4829 = vrot.lane.b32.xlu0 %v4568, 8
      %v4830 = vpop.permute.xlu0 %4829
      %4831 = vrot.lane.b32.xlu0 %v4573, 8
      %v4832 = vpop.permute.xlu0 %4831
      %4833 = vrot.lane.b32.xlu0 %v4578, 8
      %v4834 = vpop.permute.xlu0 %4833
      %4835 = vrot.lane.b32.xlu0 %v4583, 8
      %v4836 = vpop.permute.xlu0 %4835
      %4837 = vrot.lane.b32.xlu0 %v4588, 8
      %v4838 = vpop.permute.xlu0 %4837
      %4839 = vrot.lane.b32.xlu0 %v4593, 8
      %v4840 = vpop.permute.xlu0 %4839
      %4841 = vrot.lane.b32.xlu0 %v4598, 8
      %v4842 = vpop.permute.xlu0 %4841
      %4843 = vrot.lane.b32.xlu0 %v4603, 8
      %v4844 = vpop.permute.xlu0 %4843
      %4845 = vrot.lane.b32.xlu0 %v4608, 8
      %v4846 = vpop.permute.xlu0 %4845
      %4847 = vrot.lane.b32.xlu0 %v4613, 8
      %v4848 = vpop.permute.xlu0 %4847
      %4849 = vrot.lane.b32.xlu0 %v4618, 8
      %v4850 = vpop.permute.xlu0 %4849
      %4851 = vrot.lane.b32.xlu0 %v4623, 8
      %v4852 = vpop.permute.xlu0 %4851
      %4853 = vrot.lane.b32.xlu0 %v4628, 8
      %v4854 = vpop.permute.xlu0 %4853
      %vm4887 = vcmask 31744
      %v4888 = vsel %vm4887, %v1922, %v4664
      %v4889 = vsel %vm4887, %v1927, %v4666
      %v4890 = vsel %vm4887, %v1932, %v4668
      %v4891 = vsel %vm4887, %v1937, %v4670
      %v4892 = vsel %vm4887, %v1942, %v4672
      %v4893 = vsel %vm4887, %v1947, %v4674
      %v4894 = vsel %vm4887, %v1952, %v4676
      %v4895 = vsel %vm4887, %v1957, %v4678
      %v4896 = vsel %vm4887, %v1962, %v4680
      %v4897 = vsel %vm4887, %v1967, %v4682
      %v4898 = vsel %vm4887, %v1972, %v4684
      %v4899 = vsel %vm4887, %v1977, %v4686
      %v4900 = vsel %vm4887, %v1982, %v4688
      %v4901 = vsel %vm4887, %v1987, %v4690
      %v4902 = vsel %vm4887, %v1992, %v4692
      %v4903 = vsel %vm4887, %v1997, %v4694
      %v4904 = vsel %vm4887, %v2002, %v4696
      %v4905 = vsel %vm4887, %v2007, %v4698
      %v4906 = vsel %vm4887, %v2012, %v4700
      %v4907 = vsel %vm4887, %v2017, %v4702
      %v4908 = vsel %vm4887, %v2022, %v4704
      %v4909 = vsel %vm4887, %v2027, %v4706
      %v4910 = vsel %vm4887, %v2032, %v4708
      %v4911 = vsel %vm4887, %v2037, %v4710
      %v4912 = vsel %vm4887, %v2042, %v4712
      %v4913 = vsel %vm4887, %v2047, %v4714
      %v4914 = vsel %vm4887, %v2052, %v4716
      %v4915 = vsel %vm4887, %v2057, %v4718
      %v4916 = vsel %vm4887, %v2062, %v4720
      %v4917 = vsel %vm4887, %v2067, %v4722
      %v4918 = vsel %vm4887, %v2072, %v4724
      %v4919 = vsel %vm4887, %v2077, %v4726
      %vm4920 = vcmask 64512
      %v4921 = vsel %vm4920, %v4888, %v4792
      %v4922 = vsel %vm4920, %v4889, %v4794
      %v4923 = vsel %vm4920, %v4890, %v4796
      %v4924 = vsel %vm4920, %v4891, %v4798
      %v4925 = vsel %vm4920, %v4892, %v4800
      %v4926 = vsel %vm4920, %v4893, %v4802
      %v4927 = vsel %vm4920, %v4894, %v4804
      %v4928 = vsel %vm4920, %v4895, %v4806
      %v4929 = vsel %vm4920, %v4896, %v4808
      %v4930 = vsel %vm4920, %v4897, %v4810
      %v4931 = vsel %vm4920, %v4898, %v4812
      %v4932 = vsel %vm4920, %v4899, %v4814
      %v4933 = vsel %vm4920, %v4900, %v4816
      %v4934 = vsel %vm4920, %v4901, %v4818
      %v4935 = vsel %vm4920, %v4902, %v4820
      %v4936 = vsel %vm4920, %v4903, %v4822
      %v4937 = vsel %vm4920, %v4904, %v4824
      %v4938 = vsel %vm4920, %v4905, %v4826
      %v4939 = vsel %vm4920, %v4906, %v4828
      %v4940 = vsel %vm4920, %v4907, %v4830
      %v4941 = vsel %vm4920, %v4908, %v4832
      %v4942 = vsel %vm4920, %v4909, %v4834
      %v4943 = vsel %vm4920, %v4910, %v4836
      %v4944 = vsel %vm4920, %v4911, %v4838
      %v4945 = vsel %vm4920, %v4912, %v4840
      %v4946 = vsel %vm4920, %v4913, %v4842
      %v4947 = vsel %vm4920, %v4914, %v4844
      %v4948 = vsel %vm4920, %v4915, %v4846
      %v4949 = vsel %vm4920, %v4916, %v4848
      %v4950 = vsel %vm4920, %v4917, %v4850
      %v4951 = vsel %vm4920, %v4918, %v4852
      %v4952 = vsel %vm4920, %v4919, %v4854
      %v4953 = vld [vmem:[%s2] sm:$0x1]
      %v4955 = vlaneseq
      %v4956 = vshrl.u32 %v4955, 7
      %v4957 = vsub.s32 0, %v4956
      %v4958 = vrot.slane %v4953, %v4957
      %v4960 = vadd.f32 %v4921, %v4958
      %v4961 = vadd.f32 %v4922, %v4958
      %v4962 = vadd.f32 %v4923, %v4958
      %v4963 = vadd.f32 %v4924, %v4958
      %v4964 = vadd.f32 %v4925, %v4958
      %v4965 = vadd.f32 %v4926, %v4958
      %v4966 = vadd.f32 %v4927, %v4958
      %v4967 = vadd.f32 %v4928, %v4958
      %v4968 = vadd.f32 %v4929, %v4958
      %v4969 = vadd.f32 %v4930, %v4958
      %v4970 = vadd.f32 %v4931, %v4958
      %v4971 = vadd.f32 %v4932, %v4958
      %v4972 = vadd.f32 %v4933, %v4958
      %v4973 = vadd.f32 %v4934, %v4958
      %v4974 = vadd.f32 %v4935, %v4958
      %v4975 = vadd.f32 %v4936, %v4958
      %v4976 = vadd.f32 %v4937, %v4958
      %v4977 = vadd.f32 %v4938, %v4958
      %v4978 = vadd.f32 %v4939, %v4958
      %v4979 = vadd.f32 %v4940, %v4958
      %v4980 = vadd.f32 %v4941, %v4958
      %v4981 = vadd.f32 %v4942, %v4958
      %v4982 = vadd.f32 %v4943, %v4958
      %v4983 = vadd.f32 %v4944, %v4958
      %v4984 = vadd.f32 %v4945, %v4958
      %v4985 = vadd.f32 %v4946, %v4958
      %v4986 = vadd.f32 %v4947, %v4958
      %v4987 = vadd.f32 %v4948, %v4958
      %v4988 = vadd.f32 %v4949, %v4958
      %v4989 = vadd.f32 %v4950, %v4958
      %v4990 = vadd.f32 %v4951, %v4958
      %v4991 = vadd.f32 %v4952, %v4958
      %v4992 = vmax.f32 %v4960, 0.0
      %v4993 = vmax.f32 %v4961, 0.0
      %v4994 = vmax.f32 %v4962, 0.0
      %v4995 = vmax.f32 %v4963, 0.0
      %v4996 = vmax.f32 %v4964, 0.0
      %v4997 = vmax.f32 %v4965, 0.0
      %v4998 = vmax.f32 %v4966, 0.0
      %v4999 = vmax.f32 %v4967, 0.0
      %v5000 = vmax.f32 %v4968, 0.0
      %v5001 = vmax.f32 %v4969, 0.0
      %v5002 = vmax.f32 %v4970, 0.0
      %v5003 = vmax.f32 %v4971, 0.0
      %v5004 = vmax.f32 %v4972, 0.0
      %v5005 = vmax.f32 %v4973, 0.0
      %v5006 = vmax.f32 %v4974, 0.0
      %v5007 = vmax.f32 %v4975, 0.0
      %v5008 = vmax.f32 %v4976, 0.0
      %v5009 = vmax.f32 %v4977, 0.0
      %v5010 = vmax.f32 %v4978, 0.0
      %v5011 = vmax.f32 %v4979, 0.0
      %v5012 = vmax.f32 %v4980, 0.0
      %v5013 = vmax.f32 %v4981, 0.0
      %v5014 = vmax.f32 %v4982, 0.0
      %v5015 = vmax.f32 %v4983, 0.0
      %v5016 = vmax.f32 %v4984, 0.0
      %v5017 = vmax.f32 %v4985, 0.0
      %v5018 = vmax.f32 %v4986, 0.0
      %v5019 = vmax.f32 %v4987, 0.0
      %v5020 = vmax.f32 %v4988, 0.0
      %v5021 = vmax.f32 %v4989, 0.0
      %v5022 = vmax.f32 %v4990, 0.0
      %v5023 = vmax.f32 %v4991, 0.0
      %v5024 = vld [vmem:[%s3] sm:$0xff]
      %v5025 = vld [vmem:[%s3 + $0x8] sm:$0xf]
      %vm5026 = vcmask 97280
      %v5028 = vsel %vm5026, %v4992, 0
      %v5031 = vsel %vm5026, %v4993, 0
      %v5034 = vsel %vm5026, %v4994, 0
      %v5037 = vsel %vm5026, %v4995, 0
      %v5040 = vsel %vm5026, %v4996, 0
      %v5043 = vsel %vm5026, %v4997, 0
      %v5046 = vsel %vm5026, %v4998, 0
      %v5049 = vsel %vm5026, %v4999, 0
      %v5052 = vsel %vm5026, %v5000, 0
      %v5055 = vsel %vm5026, %v5001, 0
      %v5058 = vsel %vm5026, %v5002, 0
      %v5061 = vsel %vm5026, %v5003, 0
      %v5064 = vsel %vm5026, %v5004, 0
      %v5067 = vsel %vm5026, %v5005, 0
      %v5070 = vsel %vm5026, %v5006, 0
      %v5073 = vsel %vm5026, %v5007, 0
      %v5076 = vsel %vm5026, %v5008, 0
      %v5079 = vsel %vm5026, %v5009, 0
      %v5082 = vsel %vm5026, %v5010, 0
      %v5085 = vsel %vm5026, %v5011, 0
      %v5088 = vsel %vm5026, %v5012, 0
      %v5091 = vsel %vm5026, %v5013, 0
      %v5094 = vsel %vm5026, %v5014, 0
      %v5097 = vsel %vm5026, %v5015, 0
      %v5100 = vsel %vm5026, %v5016, 0
      %v5103 = vsel %vm5026, %v5017, 0
      %v5106 = vsel %vm5026, %v5018, 0
      %v5109 = vsel %vm5026, %v5019, 0
      %v5112 = vsel %vm5026, %v5020, 0
      %v5115 = vsel %vm5026, %v5021, 0
      %v5118 = vsel %vm5026, %v5022, 0
      %v5121 = vsel %vm5026, %v5023, 0
      %v5124 = vsel %vm532, %v5025, 0
      %5126 = vmatprep.subr.mxu0 0.0
      %5127 = vmatpush1.msra.mxu0 0.0
      %5128 = vmatprep.subr.mxu0 0.0
      %5129 = vmatpush1.msra.mxu0 0.0
      %5130 = vmatprep.subr.mxu0 0.0
      %5131 = vmatpush1.msra.mxu0 0.0
      %5132 = vmatprep.subr.mxu0 0.0
      %5133 = vmatpush1.msra.mxu0 0.0
      %5134 = vmatprep.subr.mxu0 0.0
      %5135 = vmatpush1.msra.mxu0 0.0
      %5136 = vmatprep.subr.mxu0 0.0
      %5137 = vmatpush1.msra.mxu0 0.0
      %5138 = vmatprep.subr.mxu0 0.0
      %5139 = vmatpush1.msra.mxu0 0.0
      %5140 = vmatprep.subr.mxu0 0.0
      %5141 = vmatpush1.msra.mxu0 0.0
      %5142 = vmatprep.subr.mxu0 0.0
      %5143 = vmatpush1.msra.mxu0 0.0
      %5144 = vmatprep.subr.mxu0 0.0
      %5145 = vmatpush1.msra.mxu0 0.0
      %5146 = vmatprep.subr.mxu0 0.0
      %5147 = vmatpush1.msra.mxu0 0.0
      %5148 = vmatprep.subr.mxu0 0.0
      %5149 = vmatpush1.msra.mxu0 0.0
      %5150 = vmatprep.subr.mxu0 0.0
      %5151 = vmatpush1.msra.mxu0 0.0
      %5152 = vmatprep.subr.mxu0 0.0
      %5153 = vmatpush1.msra.mxu0 0.0
      %5154 = vmatprep.subr.mxu0 0.0
      %5155 = vmatpush1.msra.mxu0 %v5124
      %5156 = vmatprep.subr.mxu0 0.0
      %5157 = vmatpush1.msra.mxu0 %v5024
      %5158 = vmatprep.subr.mxu0 0.0
      %5159 = vmatpush2.msra.mxu0 0.0
      %5160 = vmatprep.subr.mxu0 0.0
      %5161 = vmatpush2.msra.mxu0 0.0
      %5162 = vmatprep.subr.mxu0 0.0
      %5163 = vmatpush2.msra.mxu0 0.0
      %5164 = vmatprep.subr.mxu0 0.0
      %5165 = vmatpush2.msra.mxu0 0.0
      %5166 = vmatprep.subr.mxu0 0.0
      %5167 = vmatpush2.msra.mxu0 0.0
      %5168 = vmatprep.subr.mxu0 0.0
      %5169 = vmatpush2.msra.mxu0 0.0
      %5170 = vmatprep.subr.mxu0 0.0
      %5171 = vmatpush2.msra.mxu0 0.0
      %5172 = vmatprep.subr.mxu0 0.0
      %5173 = vmatpush2.msra.mxu0 0.0
      %5174 = vmatprep.subr.mxu0 0.0
      %5175 = vmatpush2.msra.mxu0 0.0
      %5176 = vmatprep.subr.mxu0 0.0
      %5177 = vmatpush2.msra.mxu0 0.0
      %5178 = vmatprep.subr.mxu0 0.0
      %5179 = vmatpush2.msra.mxu0 0.0
      %5180 = vmatprep.subr.mxu0 0.0
      %5181 = vmatpush2.msra.mxu0 0.0
      %5182 = vmatprep.subr.mxu0 0.0
      %5183 = vmatpush2.msra.mxu0 0.0
      %5184 = vmatprep.subr.mxu0 0.0
      %5185 = vmatpush2.msra.mxu0 0.0
      %5186 = vmatprep.subr.mxu0 0.0
      %5187 = vmatpush2.msra.mxu0 0.0
      %5188 = vmatprep.subr.mxu0 0.0
      %5189 = vmatpush2.msra.mxu0 0.0
      %5190 = vmatprep.mubr.f32.mxu0 0.0
      %5191 = vmatmul.mubr.f32.gmra.mxu0 %v5028
      %v5192 = vpop.f32.mrf.mxu0
      %v5193 = vadd.f32 0.0, %v5192
      %v5194 = vpop.f32.mrf.mxu0
      %5195 = vmatprep.mubr.f32.mxu0 0.0
      %5196 = vmatmul.mubr.f32.gmra.mxu0 %v5031
      %v5197 = vpop.f32.mrf.mxu0
      %v5198 = vadd.f32 0.0, %v5197
      %v5199 = vpop.f32.mrf.mxu0
      %5200 = vmatprep.mubr.f32.mxu0 0.0
      %5201 = vmatmul.mubr.f32.gmra.mxu0 %v5034
      %v5202 = vpop.f32.mrf.mxu0
      %v5203 = vadd.f32 0.0, %v5202
      %v5204 = vpop.f32.mrf.mxu0
      %5205 = vmatprep.mubr.f32.mxu0 0.0
      %5206 = vmatmul.mubr.f32.gmra.mxu0 %v5037
      %v5207 = vpop.f32.mrf.mxu0
      %v5208 = vadd.f32 0.0, %v5207
      %v5209 = vpop.f32.mrf.mxu0
      %5210 = vmatprep.mubr.f32.mxu0 0.0
      %5211 = vmatmul.mubr.f32.gmra.mxu0 %v5040
      %v5212 = vpop.f32.mrf.mxu0
      %v5213 = vadd.f32 0.0, %v5212
      %v5214 = vpop.f32.mrf.mxu0
      %5215 = vmatprep.mubr.f32.mxu0 0.0
      %5216 = vmatmul.mubr.f32.gmra.mxu0 %v5043
      %v5217 = vpop.f32.mrf.mxu0
      %v5218 = vadd.f32 0.0, %v5217
      %v5219 = vpop.f32.mrf.mxu0
      %5220 = vmatprep.mubr.f32.mxu0 0.0
      %5221 = vmatmul.mubr.f32.gmra.mxu0 %v5046
      %v5222 = vpop.f32.mrf.mxu0
      %v5223 = vadd.f32 0.0, %v5222
      %v5224 = vpop.f32.mrf.mxu0
      %5225 = vmatprep.mubr.f32.mxu0 0.0
      %5226 = vmatmul.mubr.f32.gmra.mxu0 %v5049
      %v5227 = vpop.f32.mrf.mxu0
      %v5228 = vadd.f32 0.0, %v5227
      %v5229 = vpop.f32.mrf.mxu0
      %5230 = vmatprep.mubr.f32.mxu0 0.0
      %5231 = vmatmul.mubr.f32.gmra.mxu0 %v5052
      %v5232 = vpop.f32.mrf.mxu0
      %v5233 = vadd.f32 0.0, %v5232
      %v5234 = vpop.f32.mrf.mxu0
      %5235 = vmatprep.mubr.f32.mxu0 0.0
      %5236 = vmatmul.mubr.f32.gmra.mxu0 %v5055
      %v5237 = vpop.f32.mrf.mxu0
      %v5238 = vadd.f32 0.0, %v5237
      %v5239 = vpop.f32.mrf.mxu0
      %5240 = vmatprep.mubr.f32.mxu0 0.0
      %5241 = vmatmul.mubr.f32.gmra.mxu0 %v5058
      %v5242 = vpop.f32.mrf.mxu0
      %v5243 = vadd.f32 0.0, %v5242
      %v5244 = vpop.f32.mrf.mxu0
      %5245 = vmatprep.mubr.f32.mxu0 0.0
      %5246 = vmatmul.mubr.f32.gmra.mxu0 %v5061
      %v5247 = vpop.f32.mrf.mxu0
      %v5248 = vadd.f32 0.0, %v5247
      %v5249 = vpop.f32.mrf.mxu0
      %5250 = vmatprep.mubr.f32.mxu0 0.0
      %5251 = vmatmul.mubr.f32.gmra.mxu0 %v5064
      %v5252 = vpop.f32.mrf.mxu0
      %v5253 = vadd.f32 0.0, %v5252
      %v5254 = vpop.f32.mrf.mxu0
      %5255 = vmatprep.mubr.f32.mxu0 0.0
      %5256 = vmatmul.mubr.f32.gmra.mxu0 %v5067
      %v5257 = vpop.f32.mrf.mxu0
      %v5258 = vadd.f32 0.0, %v5257
      %v5259 = vpop.f32.mrf.mxu0
      %5260 = vmatprep.mubr.f32.mxu0 0.0
      %5261 = vmatmul.mubr.f32.gmra.mxu0 %v5070
      %v5262 = vpop.f32.mrf.mxu0
      %v5263 = vadd.f32 0.0, %v5262
      %v5264 = vpop.f32.mrf.mxu0
      %5265 = vmatprep.mubr.f32.mxu0 0.0
      %5266 = vmatmul.mubr.f32.gmra.mxu0 %v5073
      %v5267 = vpop.f32.mrf.mxu0
      %v5268 = vadd.f32 0.0, %v5267
      %v5269 = vpop.f32.mrf.mxu0
      %5270 = vmatprep.mubr.f32.mxu0 0.0
      %5271 = vmatmul.mubr.f32.gmra.mxu0 %v5076
      %v5272 = vpop.f32.mrf.mxu0
      %v5273 = vadd.f32 0.0, %v5272
      %v5274 = vpop.f32.mrf.mxu0
      %5275 = vmatprep.mubr.f32.mxu0 0.0
      %5276 = vmatmul.mubr.f32.gmra.mxu0 %v5079
      %v5277 = vpop.f32.mrf.mxu0
      %v5278 = vadd.f32 0.0, %v5277
      %v5279 = vpop.f32.mrf.mxu0
      %5280 = vmatprep.mubr.f32.mxu0 0.0
      %5281 = vmatmul.mubr.f32.gmra.mxu0 %v5082
      %v5282 = vpop.f32.mrf.mxu0
      %v5283 = vadd.f32 0.0, %v5282
      %v5284 = vpop.f32.mrf.mxu0
      %5285 = vmatprep.mubr.f32.mxu0 0.0
      %5286 = vmatmul.mubr.f32.gmra.mxu0 %v5085
      %v5287 = vpop.f32.mrf.mxu0
      %v5288 = vadd.f32 0.0, %v5287
      %v5289 = vpop.f32.mrf.mxu0
      %5290 = vmatprep.mubr.f32.mxu0 0.0
      %5291 = vmatmul.mubr.f32.gmra.mxu0 %v5088
      %v5292 = vpop.f32.mrf.mxu0
      %v5293 = vadd.f32 0.0, %v5292
      %v5294 = vpop.f32.mrf.mxu0
      %5295 = vmatprep.mubr.f32.mxu0 0.0
      %5296 = vmatmul.mubr.f32.gmra.mxu0 %v5091
      %v5297 = vpop.f32.mrf.mxu0
      %v5298 = vadd.f32 0.0, %v5297
      %v5299 = vpop.f32.mrf.mxu0
      %5300 = vmatprep.mubr.f32.mxu0 0.0
      %5301 = vmatmul.mubr.f32.gmra.mxu0 %v5094
      %v5302 = vpop.f32.mrf.mxu0
      %v5303 = vadd.f32 0.0, %v5302
      %v5304 = vpop.f32.mrf.mxu0
      %5305 = vmatprep.mubr.f32.mxu0 0.0
      %5306 = vmatmul.mubr.f32.gmra.mxu0 %v5097
      %v5307 = vpop.f32.mrf.mxu0
      %v5308 = vadd.f32 0.0, %v5307
      %v5309 = vpop.f32.mrf.mxu0
      %5310 = vmatprep.mubr.f32.mxu0 0.0
      %5311 = vmatmul.mubr.f32.gmra.mxu0 %v5100
      %v5312 = vpop.f32.mrf.mxu0
      %v5313 = vadd.f32 0.0, %v5312
      %v5314 = vpop.f32.mrf.mxu0
      %5315 = vmatprep.mubr.f32.mxu0 0.0
      %5316 = vmatmul.mubr.f32.gmra.mxu0 %v5103
      %v5317 = vpop.f32.mrf.mxu0
      %v5318 = vadd.f32 0.0, %v5317
      %v5319 = vpop.f32.mrf.mxu0
      %5320 = vmatprep.mubr.f32.mxu0 0.0
      %5321 = vmatmul.mubr.f32.gmra.mxu0 %v5106
      %v5322 = vpop.f32.mrf.mxu0
      %v5323 = vadd.f32 0.0, %v5322
      %v5324 = vpop.f32.mrf.mxu0
      %5325 = vmatprep.mubr.f32.mxu0 0.0
      %5326 = vmatmul.mubr.f32.gmra.mxu0 %v5109
      %v5327 = vpop.f32.mrf.mxu0
      %v5328 = vadd.f32 0.0, %v5327
      %v5329 = vpop.f32.mrf.mxu0
      %5330 = vmatprep.mubr.f32.mxu0 0.0
      %5331 = vmatmul.mubr.f32.gmra.mxu0 %v5112
      %v5332 = vpop.f32.mrf.mxu0
      %v5333 = vadd.f32 0.0, %v5332
      %v5334 = vpop.f32.mrf.mxu0
      %5335 = vmatprep.mubr.f32.mxu0 0.0
      %5336 = vmatmul.mubr.f32.gmra.mxu0 %v5115
      %v5337 = vpop.f32.mrf.mxu0
      %v5338 = vadd.f32 0.0, %v5337
      %v5339 = vpop.f32.mrf.mxu0
      %5340 = vmatprep.mubr.f32.mxu0 0.0
      %5341 = vmatmul.mubr.f32.gmra.mxu0 %v5118
      %v5342 = vpop.f32.mrf.mxu0
      %v5343 = vadd.f32 0.0, %v5342
      %v5344 = vpop.f32.mrf.mxu0
      %5345 = vmatprep.mubr.f32.mxu0 0.0
      %5346 = vmatmul.mubr.f32.gmra.mxu0 %v5121
      %v5347 = vpop.f32.mrf.mxu0
      %v5348 = vadd.f32 0.0, %v5347
      %v5349 = vpop.f32.mrf.mxu0
      %5350 = vdwg.mxu0
      %v5351 = vadd.f32 %v497, %v5193
      %v5352 = vadd.f32 %v498, %v5198
      %v5353 = vadd.f32 %v499, %v5203
      %v5354 = vadd.f32 %v500, %v5208
      %v5355 = vadd.f32 %v501, %v5213
      %v5356 = vadd.f32 %v502, %v5218
      %v5357 = vadd.f32 %v503, %v5223
      %v5358 = vadd.f32 %v504, %v5228
      %v5359 = vadd.f32 %v505, %v5233
      %v5360 = vadd.f32 %v506, %v5238
      %v5361 = vadd.f32 %v507, %v5243
      %v5362 = vadd.f32 %v508, %v5248
      %v5363 = vadd.f32 %v509, %v5253
      %v5364 = vadd.f32 %v510, %v5258
      %v5365 = vadd.f32 %v511, %v5263
      %v5366 = vadd.f32 %v512, %v5268
      %v5367 = vadd.f32 %v513, %v5273
      %v5368 = vadd.f32 %v514, %v5278
      %v5369 = vadd.f32 %v515, %v5283
      %v5370 = vadd.f32 %v516, %v5288
      %v5371 = vadd.f32 %v517, %v5293
      %v5372 = vadd.f32 %v518, %v5298
      %v5373 = vadd.f32 %v519, %v5303
      %v5374 = vadd.f32 %v520, %v5308
      %v5375 = vadd.f32 %v521, %v5313
      %v5376 = vadd.f32 %v522, %v5318
      %v5377 = vadd.f32 %v523, %v5323
      %v5378 = vadd.f32 %v524, %v5328
      %v5379 = vadd.f32 %v525, %v5333
      %v5380 = vadd.f32 %v526, %v5338
      %v5381 = vadd.f32 %v527, %v5343
      %v5382 = vadd.f32 %v528, %v5348
      %5383 = vst.msk [vmem:[%s224] sm:$0xff] %vm1335, %v5351
      %5384 = vst.msk [vmem:[%s224 + $0x8] sm:$0xff] %vm1335, %v5352
      %5385 = vst.msk [vmem:[%s224 + $0x10] sm:$0xff] %vm1335, %v5353
      %5386 = vst.msk [vmem:[%s224 + $0x18] sm:$0xff] %vm1335, %v5354
      %5387 = vst.msk [vmem:[%s224 + $0x20] sm:$0xff] %vm1335, %v5355
      %5388 = vst.msk [vmem:[%s224 + $0x28] sm:$0xff] %vm1335, %v5356
      %5389 = vst.msk [vmem:[%s224 + $0x30] sm:$0xff] %vm1335, %v5357
      %5390 = vst.msk [vmem:[%s224 + $0x38] sm:$0xff] %vm1335, %v5358
      %5391 = vst.msk [vmem:[%s224 + $0x40] sm:$0xff] %vm1335, %v5359
      %5392 = vst.msk [vmem:[%s224 + $0x48] sm:$0xff] %vm1335, %v5360
      %5393 = vst.msk [vmem:[%s224 + $0x50] sm:$0xff] %vm1335, %v5361
      %5394 = vst.msk [vmem:[%s224 + $0x58] sm:$0xff] %vm1335, %v5362
      %5395 = vst.msk [vmem:[%s224 + $0x60] sm:$0xff] %vm1335, %v5363
      %5396 = vst.msk [vmem:[%s224 + $0x68] sm:$0xff] %vm1335, %v5364
      %5397 = vst.msk [vmem:[%s224 + $0x70] sm:$0xff] %vm1335, %v5365
      %5398 = vst.msk [vmem:[%s224 + $0x78] sm:$0xff] %vm1335, %v5366
      %5399 = vst.msk [vmem:[%s224 + $0x80] sm:$0xff] %vm1335, %v5367
      %5400 = vst.msk [vmem:[%s224 + $0x88] sm:$0xff] %vm1335, %v5368
      %5401 = vst.msk [vmem:[%s224 + $0x90] sm:$0xff] %vm1335, %v5369
      %5402 = vst.msk [vmem:[%s224 + $0x98] sm:$0xff] %vm1335, %v5370
      %5403 = vst.msk [vmem:[%s224 + $0xa0] sm:$0xff] %vm1335, %v5371
      %5404 = vst.msk [vmem:[%s224 + $0xa8] sm:$0xff] %vm1335, %v5372
      %5405 = vst.msk [vmem:[%s224 + $0xb0] sm:$0xff] %vm1335, %v5373
      %5406 = vst.msk [vmem:[%s224 + $0xb8] sm:$0xff] %vm1335, %v5374
      %5407 = vst.msk [vmem:[%s224 + $0xc0] sm:$0xff] %vm1335, %v5375
      %5408 = vst.msk [vmem:[%s224 + $0xc8] sm:$0xff] %vm1335, %v5376
      %5409 = vst.msk [vmem:[%s224 + $0xd0] sm:$0xff] %vm1335, %v5377
      %5410 = vst.msk [vmem:[%s224 + $0xd8] sm:$0xff] %vm1335, %v5378
      %5411 = vst.msk [vmem:[%s224 + $0xe0] sm:$0xff] %vm1335, %v5379
      %5412 = vst.msk [vmem:[%s224 + $0xe8] sm:$0xff] %vm1335, %v5380
      %5413 = vst.msk [vmem:[%s224 + $0xf0] sm:$0xff] %vm1335, %v5381
      %5414 = vst.msk [vmem:[%s224 + $0xf8] sm:$0xff] %vm1335, %v5382
      %p5415 = scmp.lt.s32.totalorder %s16, 1
      %s5416 = scalar_select %p5415, %s16, 1
      %s5417 = smul.addr %s5416, 32
      %s5418 = smul.addr %s5417, 8
      %s5419 = scalar_lea.vmem %s5, %s5418
      // Predicated region
      $region41: #{tpu_custom_call.1} parent=39 // pred_check
        %p5420 = pneg %p144
      $region42: #{tpu_custom_call.1} parent=39 // pred_check_branch
        %5422 = sbr.rel (%p5420) target = $region44
      $region43: #{tpu_custom_call.1} parent=39 // pred_region
        _
      $region44: #{tpu_custom_call.1} parent=39 // pred_fallthru
        _
    $region40: #{tpu_custom_call.1} parent=5 // pred_fallthru
      _
    %p5423 = scmp.le.s32.totalorder 2, %s11
    // Predicated region
    $region45: #{tpu_custom_call.1} parent=5 // pred_check
      %p5424 = pneg %p5423
    $region46: #{tpu_custom_call.1} parent=5 // pred_check_branch
      %5426 = sbr.rel (%p5424) target = $region48
    $region47: #{tpu_custom_call.1} parent=5 // pred_region
      %s5427 = ssub.s32 %s11, 2
      // Predicated region
      $region49: #{tpu_custom_call.1} parent=47 // pred_check
        %p5428 = pneg %p150
      $region50: #{tpu_custom_call.1} parent=47 // pred_check_branch
        %5430 = sbr.rel (%p5428) target = $region52
      $region51: #{tpu_custom_call.1} parent=47 // pred_region
        %p5431 = scmp.lt.s32.totalorder %s17, 1
        %s5432 = scalar_select %p5431, %s17, 1
        %s5433 = smul.addr %s5432, 32
        %s5434 = smul.addr %s5433, 8
        %s5435 = scalar_lea.vmem %s5, %s5434
      $region52: #{tpu_custom_call.1} parent=47 // pred_fallthru
        _
    $region48: #{tpu_custom_call.1} parent=5 // pred_fallthru
      _
  $region6: #{tpu_custom_call.1} parent=0 // loop_footer
    %s15 = sadd.s32 1, %s11
  $region7: #{tpu_custom_call.1} parent=0 // loop_footer_branch
    %10 = sbr.rel target = $region3
  $region8: #{tpu_custom_call.1} parent=0 // loop_exit
    _

</llo_original>
